<compile_context>
chip_gen: v6e
topology: v6e:2x2x1
jax: 0.10.0
libtpu: 0.0.40
codegen_flags: <defaults>
</compile_context>

<pallas_src>
import jax
import jax.numpy as jnp
from jax import lax
from jax.experimental import pallas as pl
from jax.experimental.pallas import tpu as pltpu


def calConvSize(lin, kernel, stride, padding=0, dilation=1):
    return int((lin + 2 * padding - dilation * (kernel - 1) - 1) / stride + 1)


def calPoolSize(inLen, kernelSz, stride=None, padding=0, dilation=1):
    if stride is None:
        stride = kernelSz
    return int((inLen + 2 * padding - dilation * (kernelSz - 1) - 1) / stride + 1)


def _make_kernel(cfg, tb):
    n_layers = len(cfg["nKernel"])
    strides = cfg["stride"]
    pools = cfg["poolKerSz"]
    nz, nx, in_len = cfg["nz"], cfg["nx"], cfg["inLen"]

    def kernel(*refs):
        x_ref = refs[0]
        conv_w = refs[1:1 + n_layers]
        conv_b = refs[1 + n_layers:1 + 2 * n_layers]
        (wf1e_ref, wf1a_ref, bf1_ref, wf2_ref, bf2_ref,
         out_ref) = refs[1 + 2 * n_layers:]

        # One bf16 DMA of the raw input tile; channel slicing is a free static
        # lane slice.  Elementwise / layout work is done in f32 (v5e has no bf16
        # VPU); matmul operands are cast back to bf16 right before each dot.
        xb = x_ref[...].astype(jnp.float32)          # [TB, L, nz+nx]
        h3 = xb[:, :, :nz]                           # forcing, BLC   [TB, L, nz]
        # static attrs = last timestep's trailing nx channels -> [TB, nx]
        # (sum over the size-1 time slice == squeeze; keeps lowering simple)
        attrs = jnp.sum(xb[:, in_len - 1:in_len, nz:], axis=1)

        L = in_len
        for i in range(n_layers):
            w = conv_w[i][...]                       # bf16 [K, C_in, C_out]
            K, c_in, c_out = w.shape
            s = strides[i]
            l_out = (L - K) // s + 1
            acc = None
            for k in range(K):                       # unrolled taps -> MXU matmuls
                if s == 1:
                    xk = h3[:, k:k + l_out, :]
                else:
                    # stride > 1: pick rows k, k+s, ... via unit-stride slice +
                    # reshape selection (non-unit-stride value slices do not
                    # lower reliably on Mosaic).  Not exercised by __main__.
                    lim = k + l_out * s
                    hk = h3[:, k:min(lim, L), :]
                    if lim > L:                      # pad tail rows (never selected)
                        hk = jnp.concatenate(
                            [hk, jnp.zeros((tb, lim - L, c_in), hk.dtype)], axis=1)
                    xk = hk.reshape(tb, l_out, s, c_in)[:, :, 0, :]
                # fold the batch into the matmul M dimension: [TB*l_out, C_in]
                xk = xk.reshape(tb * l_out, c_in).astype(jnp.bfloat16)
                part = jnp.dot(xk, w[k], preferred_element_type=jnp.float32)
                acc = part if acc is None else acc + part   # init from tap 0 (no zeros+add)
            # ReLU appears twice in the torch module (CNN1dKernel + nn.ReLU); idempotent.
            # TODO(synk): nn.Dropout is identity in eval mode; not modeled here.
            hflat = jnp.maximum(acc + conv_b[i][...], 0.0)   # f32 [TB*l_out, C_out]
            h3 = hflat.reshape(tb, l_out, c_out)
            L = l_out
            p = pools[i]
            if p is not None:                        # MaxPool1d(p, stride=p), floor
                lp = L // p
                # Kept as reshape + max over the p sublanes: strided value slices
                # (reviewer's pairwise-max form) are not reliably lowered, and a
                # p-wide sublane reduce is negligible at these sizes.
                h3 = jnp.max(h3[:, :lp * p, :].reshape(tb, lp, p, c_out), axis=2)
                L = lp

        # torch: encoded [B, C_last(=1), L_out] --squeeze(1)--> [B, L_out]
        enc = jnp.sum(h3, axis=2)                    # C_last == 1, so this is a squeeze
        # fc1(cat(encoded, attrs)) == enc @ W_enc + attrs @ W_attr + b
        z = jnp.dot(enc.astype(jnp.bfloat16), wf1e_ref[...],
                    preferred_element_type=jnp.float32)      # [TB, hidden]
        z = z + jnp.dot(attrs.astype(jnp.bfloat16), wf1a_ref[...],
                        preferred_element_type=jnp.float32)
        z = jnp.maximum(z + bf1_ref[...], 0.0)                # f32 bias + ReLU
        out = jnp.dot(z.astype(jnp.bfloat16), wf2_ref[...],
                      preferred_element_type=jnp.float32) + bf2_ref[...]
        out_ref[...] = out.astype(out_ref.dtype)     # lane-dense [TB, NY_PAD] store

    return kernel


def sta_paras_conv1d_mlp(x, params, cfg, *, tb=8):
    """x: [B, inLen, nz + nx] float32 (same layout as the torch input) -> [B, ny]."""
    B, in_len, nfeat = x.shape
    nz, nx, ny = cfg["nz"], cfg["nx"], cfg["ny"]
    assert nfeat == nz + nx and in_len == cfg["inLen"]
    # torch's encoded.squeeze(1) is only valid when the last conv has 1 output channel.
    assert cfg["nKernel"][-1] == 1, "nKernel[-1] must be 1 (torch squeeze(1))"
    assert tb % 8 == 0, "tb must be a multiple of 8 (sublane-aligned output block)"

    # Batch tiling: TB samples per grid step.  Keep >= 2 steps when possible so
    # the parallel grid axis can shard across v7x's two TensorCores.  VMEM use
    # is tiny (a few KiB per buffer), far under the 32 MiB default scoped limit
    # even on v7x, so no vmem_limit_bytes override is needed.
    grid = pl.cdiv(B, tb)
    b_pad = grid * tb
    xb = x.astype(jnp.bfloat16)            # bf16 streaming: halves per-step DMA bytes
    if b_pad != B:
        xb = jnp.pad(xb, ((0, b_pad - B), (0, 0), (0, 0)))

    # Weights as bf16 MXU operands; biases stay f32 (bias/ReLU done in f32 in-kernel).
    conv_ws = [w.astype(jnp.bfloat16) for w in params["conv_w"]]
    conv_bs = [b.astype(jnp.float32) for b in params["conv_b"]]
    wf1e = params["wf1_enc"].astype(jnp.bfloat16)
    wf1a = params["wf1_attr"].astype(jnp.bfloat16)
    bf1 = params["bf1"].astype(jnp.float32)
    # Lane-dense output: pad ny up to a full 128-lane tile, slice it off outside.
    ny_pad = ((ny + 127) // 128) * 128
    hidden = params["wf2"].shape[0]
    wf2 = jnp.zeros((hidden, ny_pad), jnp.bfloat16).at[:, :ny].set(
        params["wf2"].astype(jnp.bfloat16))
    bf2 = jnp.zeros((1, ny_pad), jnp.float32).at[:, :ny].set(
        params["bf2"].astype(jnp.float32))

    def full_spec(a):
        return pl.BlockSpec(a.shape, lambda g, _nd=a.ndim: (0,) * _nd)

    in_specs = [pl.BlockSpec((tb, in_len, nz + nx), lambda g: (g, 0, 0))]
    args = [xb]
    for w in conv_ws:
        in_specs.append(full_spec(w)); args.append(w)
    for b in conv_bs:
        in_specs.append(full_spec(b)); args.append(b)
    for w in (wf1e, wf1a, bf1, wf2, bf2):
        in_specs.append(full_spec(w)); args.append(w)

    out = pl.pallas_call(
        _make_kernel(cfg, tb),
        out_shape=jax.ShapeDtypeStruct((b_pad, ny_pad), jnp.float32),
        grid=(grid,),
        in_specs=in_specs,
        out_specs=pl.BlockSpec((tb, ny_pad), lambda g: (g, 0)),
        compiler_params=pltpu.CompilerParams(dimension_semantics=("parallel",)),
    )(*args)
    return out[:B, :ny]


def init_params(key, cfg):
    nz, nx = cfg["nz"], cfg["nx"]
    in_len, hidden, ny = cfg["inLen"], cfg["hidden"], cfg["ny"]
    nKernel, kernelSz = cfg["nKernel"], cfg["kernelSz"]
    stride, poolKerSz = cfg["stride"], cfg["poolKerSz"]
    keys = jax.random.split(key, 2 * len(nKernel) + 6)

    conv_w, conv_b = [], []
    in_chan, out_len = nz, in_len
    ki = 0
    for i in range(len(nKernel)):
        conv_w.append(0.2 * jax.random.normal(keys[ki], (kernelSz[i], in_chan, nKernel[i]),
                                              jnp.float32)); ki += 1
        conv_b.append(0.1 * jax.random.normal(keys[ki], (1, nKernel[i]), jnp.float32)); ki += 1
        in_chan = nKernel[i]
        out_len = calConvSize(out_len, kernelSz[i], stride[i])
        if poolKerSz[i] is not None:
            out_len = calPoolSize(out_len, poolKerSz[i])
    n_out = out_len * nKernel[-1]   # torch: self.nOut (requires nKernel[-1] == 1)

    wf1_enc = 0.2 * jax.random.normal(keys[ki], (n_out, hidden), jnp.float32); ki += 1
    wf1_attr = 0.2 * jax.random.normal(keys[ki], (nx, hidden), jnp.float32); ki += 1
    bf1 = 0.1 * jax.random.normal(keys[ki], (1, hidden), jnp.float32); ki += 1
    wf2 = 0.2 * jax.random.normal(keys[ki], (hidden, ny), jnp.float32); ki += 1
    bf2 = 0.1 * jax.random.normal(keys[ki], (1, ny), jnp.float32); ki += 1
    return dict(conv_w=conv_w, conv_b=conv_b, wf1_enc=wf1_enc, wf1_attr=wf1_attr,
                bf1=bf1, wf2=wf2, bf2=bf2)


def reference_forward(x, params, cfg):
    """Pure-JAX f32 reference mirroring the PyTorch forward (NCW convs)."""
    nz = cfg["nz"]
    forcing = jnp.transpose(x[:, :, :nz], (0, 2, 1)).astype(jnp.float32)  # [B, C, L]
    attrs_last = x[:, -1, nz:].astype(jnp.float32)
    h = forcing
    for i, (w, b) in enumerate(zip(params["conv_w"], params["conv_b"])):
        w_oih = jnp.transpose(w, (2, 1, 0))                 # [C_out, C_in, K] (torch layout)
        h = lax.conv_general_dilated(h, w_oih, window_strides=(cfg["stride"][i],),
                                     padding="VALID",
                                     dimension_numbers=("NCH", "OIH", "NCH"),
                                     precision=lax.Precision.HIGHEST)
        h = jax.nn.relu(h + b.reshape(1, -1, 1))
        p = cfg["poolKerSz"][i]
        if p is not None:
            h = lax.reduce_window(h, -jnp.inf, lax.max, (1, 1, p), (1, 1, p), "VALID")
    B = x.shape[0]
    enc = h.reshape(B, -1)                                  # == encoded.squeeze(1) (C_last == 1)
    feat = jnp.concatenate([enc, attrs_last], axis=-1)
    wf1 = jnp.concatenate([params["wf1_enc"], params["wf1_attr"]], axis=0)
    z = jax.nn.relu(jnp.dot(feat, wf1, precision=lax.Precision.HIGHEST) + params["bf1"])
    return jnp.dot(z, params["wf2"], precision=lax.Precision.HIGHEST) + params["bf2"]


if __name__ == "__main__":
    cfg = dict(nx=4, nz=5, ny=3, inLen=16, hidden=32,
               nKernel=[8, 1], kernelSz=[3, 3], stride=[1, 1], poolKerSz=[2, None])
    key = jax.random.PRNGKey(0)
    kp, kx = jax.random.split(key)
    params = init_params(kp, cfg)

    B = 16                                 # two TB=8 grid steps (v7x megacore-friendly)
    x = jax.random.normal(kx, (B, cfg["inLen"], cfg["nz"] + cfg["nx"]), jnp.float32)

    out = sta_paras_conv1d_mlp(x, params, cfg, tb=8)
    out = jax.block_until_ready(out)

    ref = reference_forward(x, params, cfg)
    assert out.shape == (B, cfg["ny"])
    # bf16 matmul operands (f32 accumulation / bias / ReLU) vs. a pure-f32 reference.
    if not jnp.allclose(out, ref, atol=2e-2, rtol=2e-2):
        raise AssertionError(f"mismatch: max abs err = {jnp.max(jnp.abs(out - ref))}")
    print("KERNEL_OK")
</pallas_src>

<mosaic_0001>
module attributes {stable_mosaic.version = 11 : i64} {
  func.func @kernel(%arg0: i32, %arg1: memref<8x16x9xbf16, #tpu.memory_space<vmem>>, %arg2: memref<3x5x8xbf16, #tpu.memory_space<vmem>>, %arg3: memref<3x8x1xbf16, #tpu.memory_space<vmem>>, %arg4: memref<1x8xf32, #tpu.memory_space<vmem>>, %arg5: memref<1x1xf32, #tpu.memory_space<vmem>>, %arg6: memref<5x32xbf16, #tpu.memory_space<vmem>>, %arg7: memref<4x32xbf16, #tpu.memory_space<vmem>>, %arg8: memref<1x32xf32, #tpu.memory_space<vmem>>, %arg9: memref<32x128xbf16, #tpu.memory_space<vmem>>, %arg10: memref<1x128xf32, #tpu.memory_space<vmem>>, %arg11: memref<8x128xf32, #tpu.memory_space<vmem>>) attributes {dimension_semantics = [#tpu.dimension_semantics<parallel>], iteration_bounds = array<i64: 2>, scalar_prefetch = 0 : i64, scratch_operands = 0 : i64, tpu.core_type = #tpu.core_type<tc>, window_params = [{transform_indices = @transform_0, window_bounds = array<i64: 8, 16, 9>}, {pipeline_mode = #tpu.pipeline_mode<synchronous>, transform_indices = @transform_1, window_bounds = array<i64: 3, 5, 8>}, {pipeline_mode = #tpu.pipeline_mode<synchronous>, transform_indices = @transform_2, window_bounds = array<i64: 3, 8, 1>}, {pipeline_mode = #tpu.pipeline_mode<synchronous>, transform_indices = @transform_3, window_bounds = array<i64: 1, 8>}, {pipeline_mode = #tpu.pipeline_mode<synchronous>, transform_indices = @transform_4, window_bounds = array<i64: 1, 1>}, {pipeline_mode = #tpu.pipeline_mode<synchronous>, transform_indices = @transform_5, window_bounds = array<i64: 5, 32>}, {pipeline_mode = #tpu.pipeline_mode<synchronous>, transform_indices = @transform_6, window_bounds = array<i64: 4, 32>}, {pipeline_mode = #tpu.pipeline_mode<synchronous>, transform_indices = @transform_7, window_bounds = array<i64: 1, 32>}, {pipeline_mode = #tpu.pipeline_mode<synchronous>, transform_indices = @transform_8, window_bounds = array<i64: 32, 128>}, {pipeline_mode = #tpu.pipeline_mode<synchronous>, transform_indices = @transform_9, window_bounds = array<i64: 1, 128>}, {transform_indices = @transform_10, window_bounds = array<i64: 8, 128>}]} {
    %c0 = arith.constant 0 : index
    %c0_0 = arith.constant 0 : index
    %c0_1 = arith.constant 0 : index
    %0 = vector.load %arg1[%c0, %c0_0, %c0_1] : memref<8x16x9xbf16, #tpu.memory_space<vmem>>, vector<8x16x9xbf16>
    %1 = arith.extf %0 : vector<8x16x9xbf16> to vector<8x16x9xf32>
    %2 = vector.extract_strided_slice %1 {offsets = [0, 0, 0], sizes = [8, 16, 5], strides = [1, 1, 1]} : vector<8x16x9xf32> to vector<8x16x5xf32>
    %3 = vector.extract_strided_slice %1 {offsets = [0, 15, 5], sizes = [8, 1, 4], strides = [1, 1, 1]} : vector<8x16x9xf32> to vector<8x1x4xf32>
    %cst = arith.constant dense<0.000000e+00> : vector<8x4xf32>
    %4 = vector.multi_reduction <add>, %3, %cst [1] : vector<8x1x4xf32> to vector<8x4xf32>
    %c0_2 = arith.constant 0 : index
    %c0_3 = arith.constant 0 : index
    %c0_4 = arith.constant 0 : index
    %5 = vector.load %arg2[%c0_2, %c0_3, %c0_4] : memref<3x5x8xbf16, #tpu.memory_space<vmem>>, vector<3x5x8xbf16>
    %6 = vector.extract_strided_slice %2 {offsets = [0, 0, 0], sizes = [8, 14, 5], strides = [1, 1, 1]} : vector<8x16x5xf32> to vector<8x14x5xf32>
    %7 = vector.shape_cast %6 : vector<8x14x5xf32> to vector<112x5xf32>
    %8 = arith.truncf %7 : vector<112x5xf32> to vector<112x5xbf16>
    %9 = vector.extract_strided_slice %5 {offsets = [0, 0, 0], sizes = [1, 5, 8], strides = [1, 1, 1]} : vector<3x5x8xbf16> to vector<1x5x8xbf16>
    %10 = vector.shape_cast %9 : vector<1x5x8xbf16> to vector<5x8xbf16>
    %cst_5 = arith.constant dense<0.000000e+00> : vector<112x8xf32>
    %11 = tpu.matmul %8, %10, %cst_5 {dimension_numbers = #tpu.dot_dimension_numbers<[1], [0], [0], [1], [0, 0, 1, 1], [], []>} : vector<112x5xbf16>, vector<5x8xbf16>, vector<112x8xf32> -> vector<112x8xf32>
    %12 = vector.extract_strided_slice %2 {offsets = [0, 1, 0], sizes = [8, 14, 5], strides = [1, 1, 1]} : vector<8x16x5xf32> to vector<8x14x5xf32>
    %13 = vector.shape_cast %12 : vector<8x14x5xf32> to vector<112x5xf32>
    %14 = arith.truncf %13 : vector<112x5xf32> to vector<112x5xbf16>
    %15 = vector.extract_strided_slice %5 {offsets = [1, 0, 0], sizes = [1, 5, 8], strides = [1, 1, 1]} : vector<3x5x8xbf16> to vector<1x5x8xbf16>
    %16 = vector.shape_cast %15 : vector<1x5x8xbf16> to vector<5x8xbf16>
    %cst_6 = arith.constant dense<0.000000e+00> : vector<112x8xf32>
    %17 = tpu.matmul %14, %16, %cst_6 {dimension_numbers = #tpu.dot_dimension_numbers<[1], [0], [0], [1], [0, 0, 1, 1], [], []>} : vector<112x5xbf16>, vector<5x8xbf16>, vector<112x8xf32> -> vector<112x8xf32>
    %18 = arith.addf %11, %17 : vector<112x8xf32>
    %19 = vector.extract_strided_slice %2 {offsets = [0, 2, 0], sizes = [8, 14, 5], strides = [1, 1, 1]} : vector<8x16x5xf32> to vector<8x14x5xf32>
    %20 = vector.shape_cast %19 : vector<8x14x5xf32> to vector<112x5xf32>
    %21 = arith.truncf %20 : vector<112x5xf32> to vector<112x5xbf16>
    %22 = vector.extract_strided_slice %5 {offsets = [2, 0, 0], sizes = [1, 5, 8], strides = [1, 1, 1]} : vector<3x5x8xbf16> to vector<1x5x8xbf16>
    %23 = vector.shape_cast %22 : vector<1x5x8xbf16> to vector<5x8xbf16>
    %cst_7 = arith.constant dense<0.000000e+00> : vector<112x8xf32>
    %24 = tpu.matmul %21, %23, %cst_7 {dimension_numbers = #tpu.dot_dimension_numbers<[1], [0], [0], [1], [0, 0, 1, 1], [], []>} : vector<112x5xbf16>, vector<5x8xbf16>, vector<112x8xf32> -> vector<112x8xf32>
    %25 = arith.addf %18, %24 : vector<112x8xf32>
    %c0_8 = arith.constant 0 : index
    %c0_9 = arith.constant 0 : index
    %26 = vector.load %arg4[%c0_8, %c0_9] : memref<1x8xf32, #tpu.memory_space<vmem>>, vector<1x8xf32>
    %27 = vector.broadcast %26 : vector<1x8xf32> to vector<112x8xf32>
    %28 = arith.addf %25, %27 : vector<112x8xf32>
    %cst_10 = arith.constant 0.000000e+00 : f32
    %29 = vector.broadcast %cst_10 : f32 to vector<112x8xf32>
    %30 = arith.maximumf %28, %29 : vector<112x8xf32>
    %31 = vector.shape_cast %30 : vector<112x8xf32> to vector<8x14x8xf32>
    %32 = vector.shape_cast %31 : vector<8x14x8xf32> to vector<8x7x2x8xf32>
    %cst_11 = arith.constant dense<0xFF800000> : vector<8x7x8xf32>
    %33 = vector.multi_reduction <maximumf>, %32, %cst_11 [2] : vector<8x7x2x8xf32> to vector<8x7x8xf32>
    %c0_12 = arith.constant 0 : index
    %c0_13 = arith.constant 0 : index
    %c0_14 = arith.constant 0 : index
    %34 = vector.load %arg3[%c0_12, %c0_13, %c0_14] : memref<3x8x1xbf16, #tpu.memory_space<vmem>>, vector<3x8x1xbf16>
    %35 = vector.extract_strided_slice %33 {offsets = [0, 0, 0], sizes = [8, 5, 8], strides = [1, 1, 1]} : vector<8x7x8xf32> to vector<8x5x8xf32>
    %36 = vector.shape_cast %35 : vector<8x5x8xf32> to vector<40x8xf32>
    %37 = arith.truncf %36 : vector<40x8xf32> to vector<40x8xbf16>
    %38 = vector.extract_strided_slice %34 {offsets = [0, 0, 0], sizes = [1, 8, 1], strides = [1, 1, 1]} : vector<3x8x1xbf16> to vector<1x8x1xbf16>
    %39 = vector.shape_cast %38 : vector<1x8x1xbf16> to vector<8x1xbf16>
    %cst_15 = arith.constant dense<0.000000e+00> : vector<40x1xf32>
    %40 = tpu.matmul %37, %39, %cst_15 {dimension_numbers = #tpu.dot_dimension_numbers<[1], [0], [0], [1], [0, 0, 1, 1], [], []>} : vector<40x8xbf16>, vector<8x1xbf16>, vector<40x1xf32> -> vector<40x1xf32>
    %41 = vector.extract_strided_slice %33 {offsets = [0, 1, 0], sizes = [8, 5, 8], strides = [1, 1, 1]} : vector<8x7x8xf32> to vector<8x5x8xf32>
    %42 = vector.shape_cast %41 : vector<8x5x8xf32> to vector<40x8xf32>
    %43 = arith.truncf %42 : vector<40x8xf32> to vector<40x8xbf16>
    %44 = vector.extract_strided_slice %34 {offsets = [1, 0, 0], sizes = [1, 8, 1], strides = [1, 1, 1]} : vector<3x8x1xbf16> to vector<1x8x1xbf16>
    %45 = vector.shape_cast %44 : vector<1x8x1xbf16> to vector<8x1xbf16>
    %cst_16 = arith.constant dense<0.000000e+00> : vector<40x1xf32>
    %46 = tpu.matmul %43, %45, %cst_16 {dimension_numbers = #tpu.dot_dimension_numbers<[1], [0], [0], [1], [0, 0, 1, 1], [], []>} : vector<40x8xbf16>, vector<8x1xbf16>, vector<40x1xf32> -> vector<40x1xf32>
    %47 = arith.addf %40, %46 : vector<40x1xf32>
    %48 = vector.extract_strided_slice %33 {offsets = [0, 2, 0], sizes = [8, 5, 8], strides = [1, 1, 1]} : vector<8x7x8xf32> to vector<8x5x8xf32>
    %49 = vector.shape_cast %48 : vector<8x5x8xf32> to vector<40x8xf32>
    %50 = arith.truncf %49 : vector<40x8xf32> to vector<40x8xbf16>
    %51 = vector.extract_strided_slice %34 {offsets = [2, 0, 0], sizes = [1, 8, 1], strides = [1, 1, 1]} : vector<3x8x1xbf16> to vector<1x8x1xbf16>
    %52 = vector.shape_cast %51 : vector<1x8x1xbf16> to vector<8x1xbf16>
    %cst_17 = arith.constant dense<0.000000e+00> : vector<40x1xf32>
    %53 = tpu.matmul %50, %52, %cst_17 {dimension_numbers = #tpu.dot_dimension_numbers<[1], [0], [0], [1], [0, 0, 1, 1], [], []>} : vector<40x8xbf16>, vector<8x1xbf16>, vector<40x1xf32> -> vector<40x1xf32>
    %54 = arith.addf %47, %53 : vector<40x1xf32>
    %c0_18 = arith.constant 0 : index
    %c0_19 = arith.constant 0 : index
    %55 = vector.load %arg5[%c0_18, %c0_19] : memref<1x1xf32, #tpu.memory_space<vmem>>, vector<1x1xf32>
    %56 = vector.broadcast %55 : vector<1x1xf32> to vector<40x1xf32>
    %57 = arith.addf %54, %56 : vector<40x1xf32>
    %cst_20 = arith.constant 0.000000e+00 : f32
    %58 = vector.broadcast %cst_20 : f32 to vector<40x1xf32>
    %59 = arith.maximumf %57, %58 : vector<40x1xf32>
    %60 = vector.shape_cast %59 : vector<40x1xf32> to vector<8x5x1xf32>
    %cst_21 = arith.constant dense<0.000000e+00> : vector<8x5xf32>
    %61 = vector.multi_reduction <add>, %60, %cst_21 [2] : vector<8x5x1xf32> to vector<8x5xf32>
    %62 = arith.truncf %61 : vector<8x5xf32> to vector<8x5xbf16>
    %c0_22 = arith.constant 0 : index
    %c0_23 = arith.constant 0 : index
    %63 = vector.load %arg6[%c0_22, %c0_23] : memref<5x32xbf16, #tpu.memory_space<vmem>>, vector<5x32xbf16>
    %cst_24 = arith.constant dense<0.000000e+00> : vector<8x32xf32>
    %64 = tpu.matmul %62, %63, %cst_24 {dimension_numbers = #tpu.dot_dimension_numbers<[1], [0], [0], [1], [0, 0, 1, 1], [], []>} : vector<8x5xbf16>, vector<5x32xbf16>, vector<8x32xf32> -> vector<8x32xf32>
    %65 = arith.truncf %4 : vector<8x4xf32> to vector<8x4xbf16>
    %c0_25 = arith.constant 0 : index
    %c0_26 = arith.constant 0 : index
    %66 = vector.load %arg7[%c0_25, %c0_26] : memref<4x32xbf16, #tpu.memory_space<vmem>>, vector<4x32xbf16>
    %cst_27 = arith.constant dense<0.000000e+00> : vector<8x32xf32>
    %67 = tpu.matmul %65, %66, %cst_27 {dimension_numbers = #tpu.dot_dimension_numbers<[1], [0], [0], [1], [0, 0, 1, 1], [], []>} : vector<8x4xbf16>, vector<4x32xbf16>, vector<8x32xf32> -> vector<8x32xf32>
    %68 = arith.addf %64, %67 : vector<8x32xf32>
    %c0_28 = arith.constant 0 : index
    %c0_29 = arith.constant 0 : index
    %69 = vector.load %arg8[%c0_28, %c0_29] : memref<1x32xf32, #tpu.memory_space<vmem>>, vector<1x32xf32>
    %70 = vector.broadcast %69 : vector<1x32xf32> to vector<8x32xf32>
    %71 = arith.addf %68, %70 : vector<8x32xf32>
    %cst_30 = arith.constant 0.000000e+00 : f32
    %72 = vector.broadcast %cst_30 : f32 to vector<8x32xf32>
    %73 = arith.maximumf %71, %72 : vector<8x32xf32>
    %74 = arith.truncf %73 : vector<8x32xf32> to vector<8x32xbf16>
    %c0_31 = arith.constant 0 : index
    %c0_32 = arith.constant 0 : index
    %75 = vector.load %arg9[%c0_31, %c0_32] : memref<32x128xbf16, #tpu.memory_space<vmem>>, vector<32x128xbf16>
    %cst_33 = arith.constant dense<0.000000e+00> : vector<8x128xf32>
    %76 = tpu.matmul %74, %75, %cst_33 {dimension_numbers = #tpu.dot_dimension_numbers<[1], [0], [0], [1], [0, 0, 1, 1], [], []>} : vector<8x32xbf16>, vector<32x128xbf16>, vector<8x128xf32> -> vector<8x128xf32>
    %c0_34 = arith.constant 0 : index
    %c0_35 = arith.constant 0 : index
    %77 = vector.load %arg10[%c0_34, %c0_35] : memref<1x128xf32, #tpu.memory_space<vmem>>, vector<1x128xf32>
    %78 = vector.broadcast %77 : vector<1x128xf32> to vector<8x128xf32>
    %79 = arith.addf %76, %78 : vector<8x128xf32>
    %c0_36 = arith.constant 0 : index
    %c0_37 = arith.constant 0 : index
    %80 = vector.load %arg11[%c0_36, %c0_37] : memref<8x128xf32, #tpu.memory_space<vmem>>, vector<8x128xf32>
    tpu.vector_store %arg11[%c0_36, %c0_37], %79 {strides = array<i32>} : memref<8x128xf32, #tpu.memory_space<vmem>>, vector<8x128xf32>,
    return
  }
  func.func @transform_0(%arg0: i32) -> (i32, i32, i32) {
    %c0_i32 = arith.constant 0 : i32
    %c0_i32_0 = arith.constant 0 : i32
    %c0_i32_1 = arith.constant 0 : i32
    return %arg0, %c0_i32, %c0_i32_0 : i32, i32, i32
  }
  func.func @transform_1(%arg0: i32) -> (i32, i32, i32) {
    %c0_i32 = arith.constant 0 : i32
    %c0_i32_0 = arith.constant 0 : i32
    %c0_i32_1 = arith.constant 0 : i32
    %c0_i32_2 = arith.constant 0 : i32
    return %c0_i32, %c0_i32_0, %c0_i32_1 : i32, i32, i32
  }
  func.func @transform_2(%arg0: i32) -> (i32, i32, i32) {
    %c0_i32 = arith.constant 0 : i32
    %c0_i32_0 = arith.constant 0 : i32
    %c0_i32_1 = arith.constant 0 : i32
    %c0_i32_2 = arith.constant 0 : i32
    return %c0_i32, %c0_i32_0, %c0_i32_1 : i32, i32, i32
  }
  func.func @transform_3(%arg0: i32) -> (i32, i32) {
    %c0_i32 = arith.constant 0 : i32
    %c0_i32_0 = arith.constant 0 : i32
    %c0_i32_1 = arith.constant 0 : i32
    return %c0_i32, %c0_i32_0 : i32, i32
  }
  func.func @transform_4(%arg0: i32) -> (i32, i32) {
    %c0_i32 = arith.constant 0 : i32
    %c0_i32_0 = arith.constant 0 : i32
    %c0_i32_1 = arith.constant 0 : i32
    return %c0_i32, %c0_i32_0 : i32, i32
  }
  func.func @transform_5(%arg0: i32) -> (i32, i32) {
    %c0_i32 = arith.constant 0 : i32
    %c0_i32_0 = arith.constant 0 : i32
    %c0_i32_1 = arith.constant 0 : i32
    return %c0_i32, %c0_i32_0 : i32, i32
  }
  func.func @transform_6(%arg0: i32) -> (i32, i32) {
    %c0_i32 = arith.constant 0 : i32
    %c0_i32_0 = arith.constant 0 : i32
    %c0_i32_1 = arith.constant 0 : i32
    return %c0_i32, %c0_i32_0 : i32, i32
  }
  func.func @transform_7(%arg0: i32) -> (i32, i32) {
    %c0_i32 = arith.constant 0 : i32
    %c0_i32_0 = arith.constant 0 : i32
    %c0_i32_1 = arith.constant 0 : i32
    return %c0_i32, %c0_i32_0 : i32, i32
  }
  func.func @transform_8(%arg0: i32) -> (i32, i32) {
    %c0_i32 = arith.constant 0 : i32
    %c0_i32_0 = arith.constant 0 : i32
    %c0_i32_1 = arith.constant 0 : i32
    return %c0_i32, %c0_i32_0 : i32, i32
  }
  func.func @transform_9(%arg0: i32) -> (i32, i32) {
    %c0_i32 = arith.constant 0 : i32
    %c0_i32_0 = arith.constant 0 : i32
    %c0_i32_1 = arith.constant 0 : i32
    return %c0_i32, %c0_i32_0 : i32, i32
  }
  func.func @transform_10(%arg0: i32) -> (i32, i32) {
    %c0_i32 = arith.constant 0 : i32
    %c0_i32_0 = arith.constant 0 : i32
    return %arg0, %c0_i32 : i32, i32
  }
}

</mosaic_0001>

<llo_original>
// kernel: tpu_custom_call.1
$region0: #{tpu_custom_call.1}
  #allocation0 [shape = 'u32[]', space=smem, size = 0x4, offset = 0x4, fixed_abs, tag = 'smem constant byte address 0x4 - core index']
  #allocation1 [shape = 'u32[144,128]{1,0:T(1,128)}', space=vmem, size = 0x12000, scoped, tag = 'internal scratch']
  #allocation2 [shape = 'f32[1,1]{1,0:T(1,128)S(1)}', space=vmem, size = 0x200, scoped, tag = 'scoped memory for tpu_custom_call.1']
  %s0 = inlined_call_operand.vmem [shape: bf16[16,16,9], index: 0, kind: input, shape index: {}]
  %s1 = inlined_call_operand.vmem [shape: bf16[3,5,8], index: 1, kind: input, shape index: {}]
  %s2 = inlined_call_operand.vmem [shape: bf16[3,8,1], index: 2, kind: input, shape index: {}]
  %s3 = inlined_call_operand.vmem [shape: f32[1,8], index: 3, kind: input, shape index: {}]
  %s4 = inlined_call_operand.<no memory space> [shape: f32[1,1], index: 4, kind: input, shape index: {}]
  %s5 = inlined_call_operand.vmem [shape: bf16[5,32], index: 5, kind: input, shape index: {}]
  %s6 = inlined_call_operand.vmem [shape: bf16[4,32], index: 6, kind: input, shape index: {}]
  %s7 = inlined_call_operand.vmem [shape: f32[1,32], index: 7, kind: input, shape index: {}]
  %s8 = inlined_call_operand.vmem [shape: bf16[32,128], index: 8, kind: input, shape index: {}]
  %s9 = inlined_call_operand.vmem [shape: f32[1,128], index: 9, kind: input, shape index: {}]
  %s10 = inlined_call_operand.hbm [shape: f32[16,128], index: 10, kind: output, shape index: {}]
  %s11 = sld [smem:[#allocation0]]
  $region73: #{tpu_custom_call.1} parent=0
    _
  %s13 = ssub.s32 1, %s11
  %s14 = scalar_select 0, %s13, %s11
  %v15 = vstv %s4
  %16 = vst [vmem:[#allocation2] sm:$0x1] %v15
  $region1: #{tpu_custom_call.1} parent=0
    #allocation3 [shape = 'u8[8192]{0}', space=vmem, size = 0x2000, scoped, tag = 'output window, operand 0']
    #allocation4 [shape = 's32[2]{0}', space=sflag, size = 0x8, scoped, tag = 'scoped memory for tpu_custom_call.1']
    %17 = vsyncpa [#allocation4], 0
    %s18 = scalar_lea.sflag [#allocation4], 1
    %19 = vsyncpa %s18, 0
    loop: start=0, step=1, limit=4
    $region2: #{tpu_custom_call.1} parent=1 // loop_pre_header
      _
    $region3: #{tpu_custom_call.1} parent=1 // loop_header
      %s21 = sphi 0, %s25
      %p22 = scmp.ge.s32.totalorder %s21, 4
      %s31 = sphi 0, %s33
      %s34 = sphi 0, %s31
      %s35 = sphi 0, %s34
      %s51 = sphi 0, %s35
      %s55 = sphi 0, %s55
      %s57 = sphi 0, %s55
      %s58 = sphi 0, %s57
      %s72 = sphi 0, %s58
      %s76 = sphi 0, %s76
      %s78 = sphi 0, %s76
      %s79 = sphi 0, %s78
      %s93 = sphi 0, %s79
      %s97 = sphi 0, %s97
      %s99 = sphi 0, %s97
      %s100 = sphi 0, %s99
      %s114 = sphi 0, %s100
      %s118 = sphi 0, %s118
      %s120 = sphi 0, %s118
      %s121 = sphi 0, %s120
      %s135 = sphi 0, %s121
      %s139 = sphi 0, %s139
      %s141 = sphi 0, %s139
      %s142 = sphi 0, %s141
      %s156 = sphi 0, %s142
      %s160 = sphi 0, %s160
      %s162 = sphi 0, %s160
      %s163 = sphi 0, %s162
      %s177 = sphi 0, %s163
      %s181 = sphi 0, %s181
      %s183 = sphi 0, %s181
      %s184 = sphi 0, %s183
      %s198 = sphi 0, %s184
      %s202 = sphi 0, %s202
      %s204 = sphi 0, %s202
      %s205 = sphi 0, %s204
      %s219 = sphi 0, %s205
      %s223 = sphi 0, %s223
      %s225 = sphi 0, %s223
      %s226 = sphi 0, %s225
      %s240 = sphi 0, %s226
      %s246 = sphi 0, %s248
      %s249 = sphi 0, %s246
      %s250 = sphi 0, %s249
      %s266 = sphi 0, %s250
    $region4: #{tpu_custom_call.1} parent=1 // loop_header_branch
      %24 = sbr.rel (%p22) target = $region8
    $region5: #{tpu_custom_call.1} parent=1 // loop_body
      %s26 = ssub.s32 %s21, 1
      %s27 = ssub.s32 %s21, 2
      %s28 = sadd.s32 %s21, 1
      %s29 = ssub.s32 %s21, %s28
      %p30 = scmp.eq.s32.totalorder %s29, 0
      %s32 = sadd.s32 %s31, 1
      %s33 = scalar_select %p30, %s31, %s32
      %p36 = pneg %p30
      %p37 = scmp.eq.s32.totalorder %s21, 1
      %p38 = por %p36, %p37
      %p39 = scmp.ne.s32.totalorder %s31, %s34
      %p40 = scmp.eq.s32.totalorder %s21, 0
      %p41 = por %p39, %p40
      %p42 = scmp.ne.s32.totalorder %s31, %s34
      %p43 = scmp.eq.s32.totalorder %s26, 1
      %p44 = por %p42, %p43
      %p45 = scmp.ne.s32.totalorder %s34, %s35
      %p46 = scmp.eq.s32.totalorder %s26, 0
      %p47 = por %p45, %p46
      %p48 = scmp.ne.s32.totalorder %s34, %s35
      %p49 = scmp.eq.s32.totalorder %s27, 1
      %p50 = por %p48, %p49
      %p52 = scmp.ne.s32.totalorder %s35, %s51
      %p53 = scmp.eq.s32.totalorder %s27, 0
      %p54 = por %p52, %p53
      %s56 = sadd.s32 %s55, 1
      %p59 = scmp.eq.s32.totalorder %s21, 1
      %p60 = scmp.ne.s32.totalorder %s55, %s57
      %p61 = scmp.eq.s32.totalorder %s21, 0
      %p62 = por %p60, %p61
      %p63 = scmp.ne.s32.totalorder %s55, %s57
      %p64 = scmp.eq.s32.totalorder %s26, 1
      %p65 = por %p63, %p64
      %p66 = scmp.ne.s32.totalorder %s57, %s58
      %p67 = scmp.eq.s32.totalorder %s26, 0
      %p68 = por %p66, %p67
      %p69 = scmp.ne.s32.totalorder %s57, %s58
      %p70 = scmp.eq.s32.totalorder %s27, 1
      %p71 = por %p69, %p70
      %p73 = scmp.ne.s32.totalorder %s58, %s72
      %p74 = scmp.eq.s32.totalorder %s27, 0
      %p75 = por %p73, %p74
      %s77 = sadd.s32 %s76, 1
      %p80 = scmp.eq.s32.totalorder %s21, 1
      %p81 = scmp.ne.s32.totalorder %s76, %s78
      %p82 = scmp.eq.s32.totalorder %s21, 0
      %p83 = por %p81, %p82
      %p84 = scmp.ne.s32.totalorder %s76, %s78
      %p85 = scmp.eq.s32.totalorder %s26, 1
      %p86 = por %p84, %p85
      %p87 = scmp.ne.s32.totalorder %s78, %s79
      %p88 = scmp.eq.s32.totalorder %s26, 0
      %p89 = por %p87, %p88
      %p90 = scmp.ne.s32.totalorder %s78, %s79
      %p91 = scmp.eq.s32.totalorder %s27, 1
      %p92 = por %p90, %p91
      %p94 = scmp.ne.s32.totalorder %s79, %s93
      %p95 = scmp.eq.s32.totalorder %s27, 0
      %p96 = por %p94, %p95
      %s98 = sadd.s32 %s97, 1
      %p101 = scmp.eq.s32.totalorder %s21, 1
      %p102 = scmp.ne.s32.totalorder %s97, %s99
      %p103 = scmp.eq.s32.totalorder %s21, 0
      %p104 = por %p102, %p103
      %p105 = scmp.ne.s32.totalorder %s97, %s99
      %p106 = scmp.eq.s32.totalorder %s26, 1
      %p107 = por %p105, %p106
      %p108 = scmp.ne.s32.totalorder %s99, %s100
      %p109 = scmp.eq.s32.totalorder %s26, 0
      %p110 = por %p108, %p109
      %p111 = scmp.ne.s32.totalorder %s99, %s100
      %p112 = scmp.eq.s32.totalorder %s27, 1
      %p113 = por %p111, %p112
      %p115 = scmp.ne.s32.totalorder %s100, %s114
      %p116 = scmp.eq.s32.totalorder %s27, 0
      %p117 = por %p115, %p116
      %s119 = sadd.s32 %s118, 1
      %p122 = scmp.eq.s32.totalorder %s21, 1
      %p123 = scmp.ne.s32.totalorder %s118, %s120
      %p124 = scmp.eq.s32.totalorder %s21, 0
      %p125 = por %p123, %p124
      %p126 = scmp.ne.s32.totalorder %s118, %s120
      %p127 = scmp.eq.s32.totalorder %s26, 1
      %p128 = por %p126, %p127
      %p129 = scmp.ne.s32.totalorder %s120, %s121
      %p130 = scmp.eq.s32.totalorder %s26, 0
      %p131 = por %p129, %p130
      %p132 = scmp.ne.s32.totalorder %s120, %s121
      %p133 = scmp.eq.s32.totalorder %s27, 1
      %p134 = por %p132, %p133
      %p136 = scmp.ne.s32.totalorder %s121, %s135
      %p137 = scmp.eq.s32.totalorder %s27, 0
      %p138 = por %p136, %p137
      %s140 = sadd.s32 %s139, 1
      %p143 = scmp.eq.s32.totalorder %s21, 1
      %p144 = scmp.ne.s32.totalorder %s139, %s141
      %p145 = scmp.eq.s32.totalorder %s21, 0
      %p146 = por %p144, %p145
      %p147 = scmp.ne.s32.totalorder %s139, %s141
      %p148 = scmp.eq.s32.totalorder %s26, 1
      %p149 = por %p147, %p148
      %p150 = scmp.ne.s32.totalorder %s141, %s142
      %p151 = scmp.eq.s32.totalorder %s26, 0
      %p152 = por %p150, %p151
      %p153 = scmp.ne.s32.totalorder %s141, %s142
      %p154 = scmp.eq.s32.totalorder %s27, 1
      %p155 = por %p153, %p154
      %p157 = scmp.ne.s32.totalorder %s142, %s156
      %p158 = scmp.eq.s32.totalorder %s27, 0
      %p159 = por %p157, %p158
      %s161 = sadd.s32 %s160, 1
      %p164 = scmp.eq.s32.totalorder %s21, 1
      %p165 = scmp.ne.s32.totalorder %s160, %s162
      %p166 = scmp.eq.s32.totalorder %s21, 0
      %p167 = por %p165, %p166
      %p168 = scmp.ne.s32.totalorder %s160, %s162
      %p169 = scmp.eq.s32.totalorder %s26, 1
      %p170 = por %p168, %p169
      %p171 = scmp.ne.s32.totalorder %s162, %s163
      %p172 = scmp.eq.s32.totalorder %s26, 0
      %p173 = por %p171, %p172
      %p174 = scmp.ne.s32.totalorder %s162, %s163
      %p175 = scmp.eq.s32.totalorder %s27, 1
      %p176 = por %p174, %p175
      %p178 = scmp.ne.s32.totalorder %s163, %s177
      %p179 = scmp.eq.s32.totalorder %s27, 0
      %p180 = por %p178, %p179
      %s182 = sadd.s32 %s181, 1
      %p185 = scmp.eq.s32.totalorder %s21, 1
      %p186 = scmp.ne.s32.totalorder %s181, %s183
      %p187 = scmp.eq.s32.totalorder %s21, 0
      %p188 = por %p186, %p187
      %p189 = scmp.ne.s32.totalorder %s181, %s183
      %p190 = scmp.eq.s32.totalorder %s26, 1
      %p191 = por %p189, %p190
      %p192 = scmp.ne.s32.totalorder %s183, %s184
      %p193 = scmp.eq.s32.totalorder %s26, 0
      %p194 = por %p192, %p193
      %p195 = scmp.ne.s32.totalorder %s183, %s184
      %p196 = scmp.eq.s32.totalorder %s27, 1
      %p197 = por %p195, %p196
      %p199 = scmp.ne.s32.totalorder %s184, %s198
      %p200 = scmp.eq.s32.totalorder %s27, 0
      %p201 = por %p199, %p200
      %s203 = sadd.s32 %s202, 1
      %p206 = scmp.eq.s32.totalorder %s21, 1
      %p207 = scmp.ne.s32.totalorder %s202, %s204
      %p208 = scmp.eq.s32.totalorder %s21, 0
      %p209 = por %p207, %p208
      %p210 = scmp.ne.s32.totalorder %s202, %s204
      %p211 = scmp.eq.s32.totalorder %s26, 1
      %p212 = por %p210, %p211
      %p213 = scmp.ne.s32.totalorder %s204, %s205
      %p214 = scmp.eq.s32.totalorder %s26, 0
      %p215 = por %p213, %p214
      %p216 = scmp.ne.s32.totalorder %s204, %s205
      %p217 = scmp.eq.s32.totalorder %s27, 1
      %p218 = por %p216, %p217
      %p220 = scmp.ne.s32.totalorder %s205, %s219
      %p221 = scmp.eq.s32.totalorder %s27, 0
      %p222 = por %p220, %p221
      %s224 = sadd.s32 %s223, 1
      %p227 = scmp.eq.s32.totalorder %s21, 1
      %p228 = scmp.ne.s32.totalorder %s223, %s225
      %p229 = scmp.eq.s32.totalorder %s21, 0
      %p230 = por %p228, %p229
      %p231 = scmp.ne.s32.totalorder %s223, %s225
      %p232 = scmp.eq.s32.totalorder %s26, 1
      %p233 = por %p231, %p232
      %p234 = scmp.ne.s32.totalorder %s225, %s226
      %p235 = scmp.eq.s32.totalorder %s26, 0
      %p236 = por %p234, %p235
      %p237 = scmp.ne.s32.totalorder %s225, %s226
      %p238 = scmp.eq.s32.totalorder %s27, 1
      %p239 = por %p237, %p238
      %p241 = scmp.ne.s32.totalorder %s226, %s240
      %p242 = scmp.eq.s32.totalorder %s27, 0
      %p243 = por %p241, %p242
      %s244 = ssub.s32 %s21, %s28
      %p245 = scmp.eq.s32.totalorder %s244, 0
      %s247 = sadd.s32 %s246, 1
      %s248 = scalar_select %p245, %s246, %s247
      %p251 = pneg %p245
      %p252 = scmp.eq.s32.totalorder %s21, 1
      %p253 = por %p251, %p252
      %p254 = scmp.ne.s32.totalorder %s246, %s249
      %p255 = scmp.eq.s32.totalorder %s21, 0
      %p256 = por %p254, %p255
      %p257 = scmp.ne.s32.totalorder %s246, %s249
      %p258 = scmp.eq.s32.totalorder %s26, 1
      %p259 = por %p257, %p258
      %p260 = scmp.ne.s32.totalorder %s249, %s250
      %p261 = scmp.eq.s32.totalorder %s26, 0
      %p262 = por %p260, %p261
      %p263 = scmp.ne.s32.totalorder %s249, %s250
      %p264 = scmp.eq.s32.totalorder %s27, 1
      %p265 = por %p263, %p264
      %p267 = scmp.ne.s32.totalorder %s250, %s266
      %p268 = scmp.eq.s32.totalorder %s27, 0
      %p269 = por %p267, %p268
      %p270 = scmp.le.s32.totalorder 1, %s21
      %p271 = scmp.lt.s32.totalorder %s21, 3
      %p272 = pnand %p270, %p271
      %p273 = pneg %p272
      // Predicated region
      $region9: #{tpu_custom_call.1} parent=5 // pred_check
        _
      $region10: #{tpu_custom_call.1} parent=5 // pred_check_branch
        %275 = sbr.rel (%p272) target = $region12
      $region11: #{tpu_custom_call.1} parent=5 // pred_region
        %s276 = ssub.s32 %s21, 1
        // Predicated region
        $region13: #{tpu_custom_call.1} parent=11 // pred_check
          %p277 = pneg %p68
        $region14: #{tpu_custom_call.1} parent=11 // pred_check_branch
          %279 = sbr.rel (%p277) target = $region16
        $region15: #{tpu_custom_call.1} parent=11 // pred_region
          _
        $region16: #{tpu_custom_call.1} parent=11 // pred_fallthru
          _
        // Predicated region
        $region17: #{tpu_custom_call.1} parent=11 // pred_check
          %p280 = pneg %p89
        $region18: #{tpu_custom_call.1} parent=11 // pred_check_branch
          %282 = sbr.rel (%p280) target = $region20
        $region19: #{tpu_custom_call.1} parent=11 // pred_region
          _
        $region20: #{tpu_custom_call.1} parent=11 // pred_fallthru
          _
        // Predicated region
        $region21: #{tpu_custom_call.1} parent=11 // pred_check
          %p283 = pneg %p110
        $region22: #{tpu_custom_call.1} parent=11 // pred_check_branch
          %285 = sbr.rel (%p283) target = $region24
        $region23: #{tpu_custom_call.1} parent=11 // pred_region
          _
        $region24: #{tpu_custom_call.1} parent=11 // pred_fallthru
          _
        // Predicated region
        $region25: #{tpu_custom_call.1} parent=11 // pred_check
          %p286 = pneg %p131
        $region26: #{tpu_custom_call.1} parent=11 // pred_check_branch
          %288 = sbr.rel (%p286) target = $region28
        $region27: #{tpu_custom_call.1} parent=11 // pred_region
          _
        $region28: #{tpu_custom_call.1} parent=11 // pred_fallthru
          _
        // Predicated region
        $region29: #{tpu_custom_call.1} parent=11 // pred_check
          %p289 = pneg %p152
        $region30: #{tpu_custom_call.1} parent=11 // pred_check_branch
          %291 = sbr.rel (%p289) target = $region32
        $region31: #{tpu_custom_call.1} parent=11 // pred_region
          _
        $region32: #{tpu_custom_call.1} parent=11 // pred_fallthru
          _
        // Predicated region
        $region33: #{tpu_custom_call.1} parent=11 // pred_check
          %p292 = pneg %p173
        $region34: #{tpu_custom_call.1} parent=11 // pred_check_branch
          %294 = sbr.rel (%p292) target = $region36
        $region35: #{tpu_custom_call.1} parent=11 // pred_region
          _
        $region36: #{tpu_custom_call.1} parent=11 // pred_fallthru
          _
        // Predicated region
        $region37: #{tpu_custom_call.1} parent=11 // pred_check
          %p295 = pneg %p194
        $region38: #{tpu_custom_call.1} parent=11 // pred_check_branch
          %297 = sbr.rel (%p295) target = $region40
        $region39: #{tpu_custom_call.1} parent=11 // pred_region
          _
        $region40: #{tpu_custom_call.1} parent=11 // pred_fallthru
          _
        // Predicated region
        $region41: #{tpu_custom_call.1} parent=11 // pred_check
          %p298 = pneg %p215
        $region42: #{tpu_custom_call.1} parent=11 // pred_check_branch
          %300 = sbr.rel (%p298) target = $region44
        $region43: #{tpu_custom_call.1} parent=11 // pred_region
          _
        $region44: #{tpu_custom_call.1} parent=11 // pred_fallthru
          _
        // Predicated region
        $region45: #{tpu_custom_call.1} parent=11 // pred_check
          %p301 = pneg %p236
        $region46: #{tpu_custom_call.1} parent=11 // pred_check_branch
          %303 = sbr.rel (%p301) target = $region48
        $region47: #{tpu_custom_call.1} parent=11 // pred_region
          _
        $region48: #{tpu_custom_call.1} parent=11 // pred_fallthru
          _
      $region12: #{tpu_custom_call.1} parent=5 // pred_fallthru
        _
      %p304 = scmp.lt.s32.totalorder %s21, 2
      // Predicated region
      $region49: #{tpu_custom_call.1} parent=5 // pred_check
        %p305 = pneg %p304
      $region50: #{tpu_custom_call.1} parent=5 // pred_check_branch
        %307 = sbr.rel (%p305) target = $region52
      $region51: #{tpu_custom_call.1} parent=5 // pred_region
        // Predicated region
        $region53: #{tpu_custom_call.1} parent=51 // pred_check
          %p308 = pneg %p41
        $region54: #{tpu_custom_call.1} parent=51 // pred_check_branch
          %310 = sbr.rel (%p308) target = $region56
        $region55: #{tpu_custom_call.1} parent=51 // pred_region
          %s311 = smul.u32 8, %s21
          %p312 = scmp.lt.s32.totalorder %s311, 15
          %s313 = scalar_select %p312, %s311, 15
          %s314 = smul.addr %s313, 2
          %s315 = smul.addr %s314, 4
          %s316 = scalar_lea.vmem %s0, %s315
          %s317 = smul.u32 8, %s21
        $region56: #{tpu_custom_call.1} parent=51 // pred_fallthru
          _
      $region52: #{tpu_custom_call.1} parent=5 // pred_fallthru
        _
      %p318 = scmp.le.s32.totalorder 1, %s21
      %p319 = scmp.lt.s32.totalorder %s21, 3
      %p320 = pnand %p318, %p319
      %p321 = pneg %p320
      // Predicated region
      $region57: #{tpu_custom_call.1} parent=5 // pred_check
        _
      $region58: #{tpu_custom_call.1} parent=5 // pred_check_branch
        %323 = sbr.rel (%p320) target = $region60
      $region59: #{tpu_custom_call.1} parent=5 // pred_region
        %s324 = ssub.s32 %s21, 1
        %s325 = smul.u32 8, %s26
        %p326 = scmp.lt.s32.totalorder %s325, 15
        %s327 = scalar_select %p326, %s325, 15
        %s328 = smul.addr %s327, 2
        %s329 = smul.addr %s328, 4
        %s330 = scalar_lea.vmem %s0, %s329
        %p331 = pneg %p47
        %p332 = pneg %p44
        %p333 = pneg %p68
        %p334 = pneg %p65
        %p335 = pneg %p89
        %p336 = pneg %p86
        %p337 = pneg %p110
        %p338 = pneg %p107
        %p339 = pneg %p131
        %p340 = pneg %p128
        %p341 = pneg %p152
        %p342 = pneg %p149
        %p343 = pneg %p173
        %p344 = pneg %p170
        %p345 = pneg %p194
        %p346 = pneg %p191
        %p347 = pneg %p215
        %p348 = pneg %p212
        %p349 = pneg %p236
        %p350 = pneg %p233
        %p351 = pneg %p262
        %p352 = pneg %p259
        %s353 = sand.u32 %s249, 1
        %s354 = scalar_lea.sflag [#allocation4], %s353
        %s355 = sand.u32 %s249, 1
        %s356 = smul.addr %s355, 8
        %s357 = scalar_lea.vmem [#allocation3], %s356
        %s358 = smul.u32 8, %s26
        %p359 = scmp.lt.s32.totalorder %s358, 15
        %s360 = scalar_select %p359, %s358, 15
        %s361 = smul.addr %s360, 2
        %s362 = smul.addr %s361, 4
        %s363 = scalar_lea.vmem %s0, %s362
        %s364 = smul.u32 8, %s26
        %v366 = vld [vmem:[%s363] sm:$0xf]
        %v367 = vld [vmem:[%s363 + $0x4] sm:$0xf]
        %v368 = vld [vmem:[%s363 + $0x8] sm:$0xf]
        %v369 = vld [vmem:[%s363 + $0xc] sm:$0xf]
        %v370 = vld [vmem:[%s363 + $0x10] sm:$0xf]
        %v371 = vld [vmem:[%s363 + $0x14] sm:$0xf]
        %v372 = vld [vmem:[%s363 + $0x18] sm:$0xf]
        %v373 = vld [vmem:[%s363 + $0x1c] sm:$0xf]
        %v374 = vld [vmem:[%s363 + $0x20] sm:$0xf]
        %v375 = vld [vmem:[%s363 + $0x24] sm:$0xf]
        %v376 = vld [vmem:[%s363 + $0x28] sm:$0xf]
        %v377 = vld [vmem:[%s363 + $0x2c] sm:$0xf]
        %v378 = vld [vmem:[%s363 + $0x30] sm:$0xf]
        %v379 = vld [vmem:[%s363 + $0x34] sm:$0xf]
        %v380 = vld [vmem:[%s363 + $0x38] sm:$0xf]
        %v381 = vld [vmem:[%s363 + $0x3c] sm:$0xf]
        %v382 = vunpack.c.l.bf16 %v366
        %v383 = vunpack.c.l.bf16 %v367
        %v384 = vunpack.c.l.bf16 %v368
        %v385 = vunpack.c.l.bf16 %v369
        %v386 = vunpack.c.l.bf16 %v370
        %v387 = vunpack.c.l.bf16 %v371
        %v388 = vunpack.c.l.bf16 %v372
        %v389 = vunpack.c.l.bf16 %v373
        %v390 = vunpack.c.l.bf16 %v374
        %v391 = vunpack.c.l.bf16 %v375
        %v392 = vunpack.c.l.bf16 %v376
        %v393 = vunpack.c.l.bf16 %v377
        %v394 = vunpack.c.l.bf16 %v378
        %v395 = vunpack.c.l.bf16 %v379
        %v396 = vunpack.c.l.bf16 %v380
        %v397 = vunpack.c.l.bf16 %v381
        %v398 = vadd.f32 %v383, 0.0
        %v399 = vadd.f32 %v385, 0.0
        %v400 = vadd.f32 %v387, 0.0
        %v401 = vadd.f32 %v389, 0.0
        %v402 = vadd.f32 %v391, 0.0
        %v403 = vadd.f32 %v393, 0.0
        %v404 = vadd.f32 %v395, 0.0
        %v405 = vadd.f32 %v397, 0.0
        %v406 = vld [vmem:[%s1] sm:$0x7]
        %v407 = vld [vmem:[%s1 + $0x4] sm:$0x7]
        %v408 = vld [vmem:[%s1 + $0x8] sm:$0x7]
        %v425 = vcombine.high %v382, %v382
        %v427 = vunpack.c.l.s4 1983009808
        %v428 = vunpack.c.0.s8 %v427
        %v429 = vlaneseq
        %v430 = vshrl.u32 %v429, 7
        %v431 = vsub.s32 %v428, %v430
        %v432 = vrot.slane %v382, %v431
        %v434 = vunpack.c.l.s4 1983009808
        %v435 = vunpack.c.0.s8 %v434
        %v436 = vlaneseq
        %v437 = vshrl.u32 %v436, 7
        %v438 = vsub.s32 %v435, %v437
        %v439 = vrot.slane %v425, %v438
        %v440 = vcombine.high %v432, %v432
        %v441 = vcombine.high %v439, %v439
        %v442 = vcombine.high %v383, %v383
        %v444 = vunpack.c.l.s4 1983009808
        %v445 = vunpack.c.0.s8 %v444
        %v446 = vlaneseq
        %v447 = vshrl.u32 %v446, 7
        %v448 = vsub.s32 %v445, %v447
        %v449 = vrot.slane %v383, %v448
        %v451 = vunpack.c.l.s4 1983009808
        %v452 = vunpack.c.0.s8 %v451
        %v453 = vlaneseq
        %v454 = vshrl.u32 %v453, 7
        %v455 = vsub.s32 %v452, %v454
        %v456 = vrot.slane %v442, %v455
        %v457 = vcombine.high %v449, %v449
        %v458 = vcombine.high %v384, %v384
        %v460 = vunpack.c.l.s4 1983009808
        %v461 = vunpack.c.0.s8 %v460
        %v462 = vlaneseq
        %v463 = vshrl.u32 %v462, 7
        %v464 = vsub.s32 %v461, %v463
        %v465 = vrot.slane %v384, %v464
        %v467 = vunpack.c.l.s4 1983009808
        %v468 = vunpack.c.0.s8 %v467
        %v469 = vlaneseq
        %v470 = vshrl.u32 %v469, 7
        %v471 = vsub.s32 %v468, %v470
        %v472 = vrot.slane %v458, %v471
        %v473 = vcombine.high %v465, %v465
        %v474 = vcombine.high %v472, %v472
        %v475 = vcombine.high %v385, %v385
        %v477 = vunpack.c.l.s4 1983009808
        %v478 = vunpack.c.0.s8 %v477
        %v479 = vlaneseq
        %v480 = vshrl.u32 %v479, 7
        %v481 = vsub.s32 %v478, %v480
        %v482 = vrot.slane %v385, %v481
        %v484 = vunpack.c.l.s4 1983009808
        %v485 = vunpack.c.0.s8 %v484
        %v486 = vlaneseq
        %v487 = vshrl.u32 %v486, 7
        %v488 = vsub.s32 %v485, %v487
        %v489 = vrot.slane %v475, %v488
        %v490 = vcombine.high %v482, %v482
        %v491 = vcombine.high %v386, %v386
        %v493 = vunpack.c.l.s4 1983009808
        %v494 = vunpack.c.0.s8 %v493
        %v495 = vlaneseq
        %v496 = vshrl.u32 %v495, 7
        %v497 = vsub.s32 %v494, %v496
        %v498 = vrot.slane %v386, %v497
        %v500 = vunpack.c.l.s4 1983009808
        %v501 = vunpack.c.0.s8 %v500
        %v502 = vlaneseq
        %v503 = vshrl.u32 %v502, 7
        %v504 = vsub.s32 %v501, %v503
        %v505 = vrot.slane %v491, %v504
        %v506 = vcombine.high %v498, %v498
        %v507 = vcombine.high %v505, %v505
        %v508 = vcombine.high %v387, %v387
        %v510 = vunpack.c.l.s4 1983009808
        %v511 = vunpack.c.0.s8 %v510
        %v512 = vlaneseq
        %v513 = vshrl.u32 %v512, 7
        %v514 = vsub.s32 %v511, %v513
        %v515 = vrot.slane %v387, %v514
        %v517 = vunpack.c.l.s4 1983009808
        %v518 = vunpack.c.0.s8 %v517
        %v519 = vlaneseq
        %v520 = vshrl.u32 %v519, 7
        %v521 = vsub.s32 %v518, %v520
        %v522 = vrot.slane %v508, %v521
        %v523 = vcombine.high %v515, %v515
        %v524 = vcombine.high %v388, %v388
        %v526 = vunpack.c.l.s4 1983009808
        %v527 = vunpack.c.0.s8 %v526
        %v528 = vlaneseq
        %v529 = vshrl.u32 %v528, 7
        %v530 = vsub.s32 %v527, %v529
        %v531 = vrot.slane %v388, %v530
        %v533 = vunpack.c.l.s4 1983009808
        %v534 = vunpack.c.0.s8 %v533
        %v535 = vlaneseq
        %v536 = vshrl.u32 %v535, 7
        %v537 = vsub.s32 %v534, %v536
        %v538 = vrot.slane %v524, %v537
        %v539 = vcombine.high %v531, %v531
        %v540 = vcombine.high %v538, %v538
        %v541 = vcombine.high %v389, %v389
        %v543 = vunpack.c.l.s4 1983009808
        %v544 = vunpack.c.0.s8 %v543
        %v545 = vlaneseq
        %v546 = vshrl.u32 %v545, 7
        %v547 = vsub.s32 %v544, %v546
        %v548 = vrot.slane %v389, %v547
        %v550 = vunpack.c.l.s4 1983009808
        %v551 = vunpack.c.0.s8 %v550
        %v552 = vlaneseq
        %v553 = vshrl.u32 %v552, 7
        %v554 = vsub.s32 %v551, %v553
        %v555 = vrot.slane %v541, %v554
        %v556 = vcombine.high %v548, %v548
        %v557 = vcombine.high %v390, %v390
        %v559 = vunpack.c.l.s4 1983009808
        %v560 = vunpack.c.0.s8 %v559
        %v561 = vlaneseq
        %v562 = vshrl.u32 %v561, 7
        %v563 = vsub.s32 %v560, %v562
        %v564 = vrot.slane %v390, %v563
        %v566 = vunpack.c.l.s4 1983009808
        %v567 = vunpack.c.0.s8 %v566
        %v568 = vlaneseq
        %v569 = vshrl.u32 %v568, 7
        %v570 = vsub.s32 %v567, %v569
        %v571 = vrot.slane %v557, %v570
        %v572 = vcombine.high %v564, %v564
        %v573 = vcombine.high %v571, %v571
        %v574 = vcombine.high %v391, %v391
        %v576 = vunpack.c.l.s4 1983009808
        %v577 = vunpack.c.0.s8 %v576
        %v578 = vlaneseq
        %v579 = vshrl.u32 %v578, 7
        %v580 = vsub.s32 %v577, %v579
        %v581 = vrot.slane %v391, %v580
        %v583 = vunpack.c.l.s4 1983009808
        %v584 = vunpack.c.0.s8 %v583
        %v585 = vlaneseq
        %v586 = vshrl.u32 %v585, 7
        %v587 = vsub.s32 %v584, %v586
        %v588 = vrot.slane %v574, %v587
        %v589 = vcombine.high %v581, %v581
        %v590 = vcombine.high %v392, %v392
        %v592 = vunpack.c.l.s4 1983009808
        %v593 = vunpack.c.0.s8 %v592
        %v594 = vlaneseq
        %v595 = vshrl.u32 %v594, 7
        %v596 = vsub.s32 %v593, %v595
        %v597 = vrot.slane %v392, %v596
        %v599 = vunpack.c.l.s4 1983009808
        %v600 = vunpack.c.0.s8 %v599
        %v601 = vlaneseq
        %v602 = vshrl.u32 %v601, 7
        %v603 = vsub.s32 %v600, %v602
        %v604 = vrot.slane %v590, %v603
        %v605 = vcombine.high %v597, %v597
        %v606 = vcombine.high %v604, %v604
        %v607 = vcombine.high %v393, %v393
        %v609 = vunpack.c.l.s4 1983009808
        %v610 = vunpack.c.0.s8 %v609
        %v611 = vlaneseq
        %v612 = vshrl.u32 %v611, 7
        %v613 = vsub.s32 %v610, %v612
        %v614 = vrot.slane %v393, %v613
        %v616 = vunpack.c.l.s4 1983009808
        %v617 = vunpack.c.0.s8 %v616
        %v618 = vlaneseq
        %v619 = vshrl.u32 %v618, 7
        %v620 = vsub.s32 %v617, %v619
        %v621 = vrot.slane %v607, %v620
        %v622 = vcombine.high %v614, %v614
        %v623 = vcombine.high %v394, %v394
        %v625 = vunpack.c.l.s4 1983009808
        %v626 = vunpack.c.0.s8 %v625
        %v627 = vlaneseq
        %v628 = vshrl.u32 %v627, 7
        %v629 = vsub.s32 %v626, %v628
        %v630 = vrot.slane %v394, %v629
        %v632 = vunpack.c.l.s4 1983009808
        %v633 = vunpack.c.0.s8 %v632
        %v634 = vlaneseq
        %v635 = vshrl.u32 %v634, 7
        %v636 = vsub.s32 %v633, %v635
        %v637 = vrot.slane %v623, %v636
        %v638 = vcombine.high %v630, %v630
        %v639 = vcombine.high %v637, %v637
        %v640 = vcombine.high %v395, %v395
        %v642 = vunpack.c.l.s4 1983009808
        %v643 = vunpack.c.0.s8 %v642
        %v644 = vlaneseq
        %v645 = vshrl.u32 %v644, 7
        %v646 = vsub.s32 %v643, %v645
        %v647 = vrot.slane %v395, %v646
        %v649 = vunpack.c.l.s4 1983009808
        %v650 = vunpack.c.0.s8 %v649
        %v651 = vlaneseq
        %v652 = vshrl.u32 %v651, 7
        %v653 = vsub.s32 %v650, %v652
        %v654 = vrot.slane %v640, %v653
        %v655 = vcombine.high %v647, %v647
        %v656 = vcombine.high %v396, %v396
        %v658 = vunpack.c.l.s4 1983009808
        %v659 = vunpack.c.0.s8 %v658
        %v660 = vlaneseq
        %v661 = vshrl.u32 %v660, 7
        %v662 = vsub.s32 %v659, %v661
        %v663 = vrot.slane %v396, %v662
        %v665 = vunpack.c.l.s4 1983009808
        %v666 = vunpack.c.0.s8 %v665
        %v667 = vlaneseq
        %v668 = vshrl.u32 %v667, 7
        %v669 = vsub.s32 %v666, %v668
        %v670 = vrot.slane %v656, %v669
        %v671 = vcombine.high %v663, %v663
        %v672 = vcombine.high %v670, %v670
        %v673 = vcombine.high %v397, %v397
        %v675 = vunpack.c.l.s4 1983009808
        %v676 = vunpack.c.0.s8 %v675
        %v677 = vlaneseq
        %v678 = vshrl.u32 %v677, 7
        %v679 = vsub.s32 %v676, %v678
        %v680 = vrot.slane %v397, %v679
        %v682 = vunpack.c.l.s4 1983009808
        %v683 = vunpack.c.0.s8 %v682
        %v684 = vlaneseq
        %v685 = vshrl.u32 %v684, 7
        %v686 = vsub.s32 %v683, %v685
        %v687 = vrot.slane %v673, %v686
        %v688 = vcombine.high %v680, %v680
        %v689 = vcombine.low %v432, %v440
        %v690 = vcombine.low %v439, %v441
        %v692 = vunpack.c.l.s4 1983009808
        %v693 = vunpack.c.0.s8 %v692
        %v694 = vlaneseq
        %v695 = vshrl.u32 %v694, 7
        %v696 = vsub.s32 %v693, %v695
        %v697 = vrot.slane %v689, %v696
        %v699 = vunpack.c.l.s4 1983009808
        %v700 = vunpack.c.0.s8 %v699
        %v701 = vlaneseq
        %v702 = vshrl.u32 %v701, 7
        %v703 = vsub.s32 %v700, %v702
        %v704 = vrot.slane %v690, %v703
        %v705 = vcombine.low %v697, %v704
        %v706 = vcombine.low %v449, %v457
        %v707 = vcombine.low %v456, %v465
        %v709 = vunpack.c.l.s4 1983009808
        %v710 = vunpack.c.0.s8 %v709
        %v711 = vlaneseq
        %v712 = vshrl.u32 %v711, 7
        %v713 = vsub.s32 %v710, %v712
        %v714 = vrot.slane %v706, %v713
        %v716 = vunpack.c.l.s4 1983009808
        %v717 = vunpack.c.0.s8 %v716
        %v718 = vlaneseq
        %v719 = vshrl.u32 %v718, 7
        %v720 = vsub.s32 %v717, %v719
        %v721 = vrot.slane %v707, %v720
        %v722 = vcombine.low %v714, %v721
        %v723 = vcombine.low %v473, %v472
        %v724 = vcombine.low %v474, %v482
        %v726 = vunpack.c.l.s4 1983009808
        %v727 = vunpack.c.0.s8 %v726
        %v728 = vlaneseq
        %v729 = vshrl.u32 %v728, 7
        %v730 = vsub.s32 %v727, %v729
        %v731 = vrot.slane %v723, %v730
        %v733 = vunpack.c.l.s4 1983009808
        %v734 = vunpack.c.0.s8 %v733
        %v735 = vlaneseq
        %v736 = vshrl.u32 %v735, 7
        %v737 = vsub.s32 %v734, %v736
        %v738 = vrot.slane %v724, %v737
        %v739 = vcombine.low %v731, %v738
        %v740 = vcombine.low %v490, %v489
        %v741 = vcombine.low %v498, %v506
        %v743 = vunpack.c.l.s4 1983009808
        %v744 = vunpack.c.0.s8 %v743
        %v745 = vlaneseq
        %v746 = vshrl.u32 %v745, 7
        %v747 = vsub.s32 %v744, %v746
        %v748 = vrot.slane %v740, %v747
        %v750 = vunpack.c.l.s4 1983009808
        %v751 = vunpack.c.0.s8 %v750
        %v752 = vlaneseq
        %v753 = vshrl.u32 %v752, 7
        %v754 = vsub.s32 %v751, %v753
        %v755 = vrot.slane %v741, %v754
        %v756 = vcombine.low %v748, %v755
        %v757 = vcombine.low %v505, %v507
        %v758 = vcombine.low %v515, %v523
        %v760 = vunpack.c.l.s4 1983009808
        %v761 = vunpack.c.0.s8 %v760
        %v762 = vlaneseq
        %v763 = vshrl.u32 %v762, 7
        %v764 = vsub.s32 %v761, %v763
        %v765 = vrot.slane %v757, %v764
        %v767 = vunpack.c.l.s4 1983009808
        %v768 = vunpack.c.0.s8 %v767
        %v769 = vlaneseq
        %v770 = vshrl.u32 %v769, 7
        %v771 = vsub.s32 %v768, %v770
        %v772 = vrot.slane %v758, %v771
        %v773 = vcombine.low %v765, %v772
        %v774 = vcombine.low %v522, %v531
        %v775 = vcombine.low %v539, %v538
        %v777 = vunpack.c.l.s4 1983009808
        %v778 = vunpack.c.0.s8 %v777
        %v779 = vlaneseq
        %v780 = vshrl.u32 %v779, 7
        %v781 = vsub.s32 %v778, %v780
        %v782 = vrot.slane %v774, %v781
        %v784 = vunpack.c.l.s4 1983009808
        %v785 = vunpack.c.0.s8 %v784
        %v786 = vlaneseq
        %v787 = vshrl.u32 %v786, 7
        %v788 = vsub.s32 %v785, %v787
        %v789 = vrot.slane %v775, %v788
        %v790 = vcombine.low %v782, %v789
        %v791 = vcombine.low %v540, %v548
        %v792 = vcombine.low %v556, %v555
        %v794 = vunpack.c.l.s4 1983009808
        %v795 = vunpack.c.0.s8 %v794
        %v796 = vlaneseq
        %v797 = vshrl.u32 %v796, 7
        %v798 = vsub.s32 %v795, %v797
        %v799 = vrot.slane %v791, %v798
        %v801 = vunpack.c.l.s4 1983009808
        %v802 = vunpack.c.0.s8 %v801
        %v803 = vlaneseq
        %v804 = vshrl.u32 %v803, 7
        %v805 = vsub.s32 %v802, %v804
        %v806 = vrot.slane %v792, %v805
        %v807 = vcombine.low %v799, %v806
        %v808 = vcombine.low %v564, %v572
        %v809 = vcombine.low %v571, %v573
        %v811 = vunpack.c.l.s4 1983009808
        %v812 = vunpack.c.0.s8 %v811
        %v813 = vlaneseq
        %v814 = vshrl.u32 %v813, 7
        %v815 = vsub.s32 %v812, %v814
        %v816 = vrot.slane %v808, %v815
        %v818 = vunpack.c.l.s4 1983009808
        %v819 = vunpack.c.0.s8 %v818
        %v820 = vlaneseq
        %v821 = vshrl.u32 %v820, 7
        %v822 = vsub.s32 %v819, %v821
        %v823 = vrot.slane %v809, %v822
        %v824 = vcombine.low %v816, %v823
        %v825 = vcombine.low %v581, %v589
        %v826 = vcombine.low %v588, %v597
        %v828 = vunpack.c.l.s4 1983009808
        %v829 = vunpack.c.0.s8 %v828
        %v830 = vlaneseq
        %v831 = vshrl.u32 %v830, 7
        %v832 = vsub.s32 %v829, %v831
        %v833 = vrot.slane %v825, %v832
        %v835 = vunpack.c.l.s4 1983009808
        %v836 = vunpack.c.0.s8 %v835
        %v837 = vlaneseq
        %v838 = vshrl.u32 %v837, 7
        %v839 = vsub.s32 %v836, %v838
        %v840 = vrot.slane %v826, %v839
        %v841 = vcombine.low %v833, %v840
        %v842 = vcombine.low %v605, %v604
        %v843 = vcombine.low %v606, %v614
        %v845 = vunpack.c.l.s4 1983009808
        %v846 = vunpack.c.0.s8 %v845
        %v847 = vlaneseq
        %v848 = vshrl.u32 %v847, 7
        %v849 = vsub.s32 %v846, %v848
        %v850 = vrot.slane %v842, %v849
        %v852 = vunpack.c.l.s4 1983009808
        %v853 = vunpack.c.0.s8 %v852
        %v854 = vlaneseq
        %v855 = vshrl.u32 %v854, 7
        %v856 = vsub.s32 %v853, %v855
        %v857 = vrot.slane %v843, %v856
        %v858 = vcombine.low %v850, %v857
        %v859 = vcombine.low %v622, %v621
        %v860 = vcombine.low %v630, %v638
        %v862 = vunpack.c.l.s4 1983009808
        %v863 = vunpack.c.0.s8 %v862
        %v864 = vlaneseq
        %v865 = vshrl.u32 %v864, 7
        %v866 = vsub.s32 %v863, %v865
        %v867 = vrot.slane %v859, %v866
        %v869 = vunpack.c.l.s4 1983009808
        %v870 = vunpack.c.0.s8 %v869
        %v871 = vlaneseq
        %v872 = vshrl.u32 %v871, 7
        %v873 = vsub.s32 %v870, %v872
        %v874 = vrot.slane %v860, %v873
        %v875 = vcombine.low %v867, %v874
        %v876 = vcombine.low %v637, %v639
        %v877 = vcombine.low %v647, %v655
        %v879 = vunpack.c.l.s4 1983009808
        %v880 = vunpack.c.0.s8 %v879
        %v881 = vlaneseq
        %v882 = vshrl.u32 %v881, 7
        %v883 = vsub.s32 %v880, %v882
        %v884 = vrot.slane %v876, %v883
        %v886 = vunpack.c.l.s4 1983009808
        %v887 = vunpack.c.0.s8 %v886
        %v888 = vlaneseq
        %v889 = vshrl.u32 %v888, 7
        %v890 = vsub.s32 %v887, %v889
        %v891 = vrot.slane %v877, %v890
        %v892 = vcombine.low %v884, %v891
        %v893 = vcombine.low %v654, %v663
        %v894 = vcombine.low %v671, %v670
        %v896 = vunpack.c.l.s4 1983009808
        %v897 = vunpack.c.0.s8 %v896
        %v898 = vlaneseq
        %v899 = vshrl.u32 %v898, 7
        %v900 = vsub.s32 %v897, %v899
        %v901 = vrot.slane %v893, %v900
        %v903 = vunpack.c.l.s4 1983009808
        %v904 = vunpack.c.0.s8 %v903
        %v905 = vlaneseq
        %v906 = vshrl.u32 %v905, 7
        %v907 = vsub.s32 %v904, %v906
        %v908 = vrot.slane %v894, %v907
        %v909 = vcombine.low %v901, %v908
        %v910 = vcombine.low %v672, %v680
        %v911 = vcombine.low %v688, %v687
        %v913 = vunpack.c.l.s4 1983009808
        %v914 = vunpack.c.0.s8 %v913
        %v915 = vlaneseq
        %v916 = vshrl.u32 %v915, 7
        %v917 = vsub.s32 %v914, %v916
        %v918 = vrot.slane %v910, %v917
        %v920 = vunpack.c.l.s4 1983009808
        %v921 = vunpack.c.0.s8 %v920
        %v922 = vlaneseq
        %v923 = vshrl.u32 %v922, 7
        %v924 = vsub.s32 %v921, %v923
        %v925 = vrot.slane %v911, %v924
        %v926 = vcombine.low %v918, %v925
        %v941 = vpack.c.bf16 %v722, %v705
        %v942 = vpack.c.bf16 %v756, %v739
        %v943 = vpack.c.bf16 %v790, %v773
        %v944 = vpack.c.bf16 %v824, %v807
        %v945 = vpack.c.bf16 %v858, %v841
        %v946 = vpack.c.bf16 %v892, %v875
        %v947 = vpack.c.bf16 %v926, %v909
        %v948 = vcombine.high %v456, %v456
        %v949 = vcombine.high %v489, %v489
        %v950 = vcombine.high %v522, %v522
        %v951 = vcombine.high %v555, %v555
        %v952 = vcombine.high %v588, %v588
        %v953 = vcombine.high %v621, %v621
        %v954 = vcombine.high %v654, %v654
        %v955 = vcombine.high %v687, %v687
        %vm956 = vcmask 1040384
        %vm957 = vcmask 1042434
        %vm958 = vmor %vm956, %vm957
        %vm959 = vcmask 1044484
        %vm960 = vmor %vm958, %vm959
        %vm961 = vcmask 1046534
        %vm962 = vmor %vm960, %vm961
        %v963 = vrot.slane %v432, 7
        %v964 = vrot.slane %v963, 2
        %v965 = vrot.slane %v440, 7
        %v966 = vsel %vm962, %v964, %v965
        %v967 = vrot.slane %v965, 2
        %v968 = vrot.slane %v439, 7
        %v969 = vsel %vm962, %v967, %v968
        %v970 = vrot.slane %v968, 2
        %v971 = vrot.slane %v441, 7
        %v972 = vsel %vm962, %v970, %v971
        %v973 = vrot.slane %v971, 2
        %v974 = vrot.slane %v449, 7
        %v975 = vsel %vm962, %v973, %v974
        %v976 = vrot.slane %v974, 2
        %v977 = vrot.slane %v457, 7
        %v978 = vsel %vm962, %v976, %v977
        %v979 = vrot.slane %v977, 2
        %v980 = vrot.slane %v456, 7
        %v981 = vsel %vm962, %v979, %v980
        %v982 = vrot.slane %v980, 2
        %v983 = vrot.slane %v948, 7
        %v984 = vsel %vm962, %v982, %v983
        %v985 = vrot.slane %v465, 7
        %v986 = vrot.slane %v985, 2
        %v987 = vrot.slane %v473, 7
        %v988 = vsel %vm962, %v986, %v987
        %v989 = vrot.slane %v987, 2
        %v990 = vrot.slane %v472, 7
        %v991 = vsel %vm962, %v989, %v990
        %v992 = vrot.slane %v990, 2
        %v993 = vrot.slane %v474, 7
        %v994 = vsel %vm962, %v992, %v993
        %v995 = vrot.slane %v993, 2
        %v996 = vrot.slane %v482, 7
        %v997 = vsel %vm962, %v995, %v996
        %v998 = vrot.slane %v996, 2
        %v999 = vrot.slane %v490, 7
        %v1000 = vsel %vm962, %v998, %v999
        %v1001 = vrot.slane %v999, 2
        %v1002 = vrot.slane %v489, 7
        %v1003 = vsel %vm962, %v1001, %v1002
        %v1004 = vrot.slane %v1002, 2
        %v1005 = vrot.slane %v949, 7
        %v1006 = vsel %vm962, %v1004, %v1005
        %v1007 = vrot.slane %v498, 7
        %v1008 = vrot.slane %v1007, 2
        %v1009 = vrot.slane %v506, 7
        %v1010 = vsel %vm962, %v1008, %v1009
        %v1011 = vrot.slane %v1009, 2
        %v1012 = vrot.slane %v505, 7
        %v1013 = vsel %vm962, %v1011, %v1012
        %v1014 = vrot.slane %v1012, 2
        %v1015 = vrot.slane %v507, 7
        %v1016 = vsel %vm962, %v1014, %v1015
        %v1017 = vrot.slane %v1015, 2
        %v1018 = vrot.slane %v515, 7
        %v1019 = vsel %vm962, %v1017, %v1018
        %v1020 = vrot.slane %v1018, 2
        %v1021 = vrot.slane %v523, 7
        %v1022 = vsel %vm962, %v1020, %v1021
        %v1023 = vrot.slane %v1021, 2
        %v1024 = vrot.slane %v522, 7
        %v1025 = vsel %vm962, %v1023, %v1024
        %v1026 = vrot.slane %v1024, 2
        %v1027 = vrot.slane %v950, 7
        %v1028 = vsel %vm962, %v1026, %v1027
        %v1029 = vrot.slane %v531, 7
        %v1030 = vrot.slane %v1029, 2
        %v1031 = vrot.slane %v539, 7
        %v1032 = vsel %vm962, %v1030, %v1031
        %v1033 = vrot.slane %v1031, 2
        %v1034 = vrot.slane %v538, 7
        %v1035 = vsel %vm962, %v1033, %v1034
        %v1036 = vrot.slane %v1034, 2
        %v1037 = vrot.slane %v540, 7
        %v1038 = vsel %vm962, %v1036, %v1037
        %v1039 = vrot.slane %v1037, 2
        %v1040 = vrot.slane %v548, 7
        %v1041 = vsel %vm962, %v1039, %v1040
        %v1042 = vrot.slane %v1040, 2
        %v1043 = vrot.slane %v556, 7
        %v1044 = vsel %vm962, %v1042, %v1043
        %v1045 = vrot.slane %v1043, 2
        %v1046 = vrot.slane %v555, 7
        %v1047 = vsel %vm962, %v1045, %v1046
        %v1048 = vrot.slane %v1046, 2
        %v1049 = vrot.slane %v951, 7
        %v1050 = vsel %vm962, %v1048, %v1049
        %v1051 = vrot.slane %v564, 7
        %v1052 = vrot.slane %v1051, 2
        %v1053 = vrot.slane %v572, 7
        %v1054 = vsel %vm962, %v1052, %v1053
        %v1055 = vrot.slane %v1053, 2
        %v1056 = vrot.slane %v571, 7
        %v1057 = vsel %vm962, %v1055, %v1056
        %v1058 = vrot.slane %v1056, 2
        %v1059 = vrot.slane %v573, 7
        %v1060 = vsel %vm962, %v1058, %v1059
        %v1061 = vrot.slane %v1059, 2
        %v1062 = vrot.slane %v581, 7
        %v1063 = vsel %vm962, %v1061, %v1062
        %v1064 = vrot.slane %v1062, 2
        %v1065 = vrot.slane %v589, 7
        %v1066 = vsel %vm962, %v1064, %v1065
        %v1067 = vrot.slane %v1065, 2
        %v1068 = vrot.slane %v588, 7
        %v1069 = vsel %vm962, %v1067, %v1068
        %v1070 = vrot.slane %v1068, 2
        %v1071 = vrot.slane %v952, 7
        %v1072 = vsel %vm962, %v1070, %v1071
        %v1073 = vrot.slane %v597, 7
        %v1074 = vrot.slane %v1073, 2
        %v1075 = vrot.slane %v605, 7
        %v1076 = vsel %vm962, %v1074, %v1075
        %v1077 = vrot.slane %v1075, 2
        %v1078 = vrot.slane %v604, 7
        %v1079 = vsel %vm962, %v1077, %v1078
        %v1080 = vrot.slane %v1078, 2
        %v1081 = vrot.slane %v606, 7
        %v1082 = vsel %vm962, %v1080, %v1081
        %v1083 = vrot.slane %v1081, 2
        %v1084 = vrot.slane %v614, 7
        %v1085 = vsel %vm962, %v1083, %v1084
        %v1086 = vrot.slane %v1084, 2
        %v1087 = vrot.slane %v622, 7
        %v1088 = vsel %vm962, %v1086, %v1087
        %v1089 = vrot.slane %v1087, 2
        %v1090 = vrot.slane %v621, 7
        %v1091 = vsel %vm962, %v1089, %v1090
        %v1092 = vrot.slane %v1090, 2
        %v1093 = vrot.slane %v953, 7
        %v1094 = vsel %vm962, %v1092, %v1093
        %v1095 = vrot.slane %v630, 7
        %v1096 = vrot.slane %v1095, 2
        %v1097 = vrot.slane %v638, 7
        %v1098 = vsel %vm962, %v1096, %v1097
        %v1099 = vrot.slane %v1097, 2
        %v1100 = vrot.slane %v637, 7
        %v1101 = vsel %vm962, %v1099, %v1100
        %v1102 = vrot.slane %v1100, 2
        %v1103 = vrot.slane %v639, 7
        %v1104 = vsel %vm962, %v1102, %v1103
        %v1105 = vrot.slane %v1103, 2
        %v1106 = vrot.slane %v647, 7
        %v1107 = vsel %vm962, %v1105, %v1106
        %v1108 = vrot.slane %v1106, 2
        %v1109 = vrot.slane %v655, 7
        %v1110 = vsel %vm962, %v1108, %v1109
        %v1111 = vrot.slane %v1109, 2
        %v1112 = vrot.slane %v654, 7
        %v1113 = vsel %vm962, %v1111, %v1112
        %v1114 = vrot.slane %v1112, 2
        %v1115 = vrot.slane %v954, 7
        %v1116 = vsel %vm962, %v1114, %v1115
        %v1117 = vrot.slane %v663, 7
        %v1118 = vrot.slane %v1117, 2
        %v1119 = vrot.slane %v671, 7
        %v1120 = vsel %vm962, %v1118, %v1119
        %v1121 = vrot.slane %v1119, 2
        %v1122 = vrot.slane %v670, 7
        %v1123 = vsel %vm962, %v1121, %v1122
        %v1124 = vrot.slane %v1122, 2
        %v1125 = vrot.slane %v672, 7
        %v1126 = vsel %vm962, %v1124, %v1125
        %v1127 = vrot.slane %v1125, 2
        %v1128 = vrot.slane %v680, 7
        %v1129 = vsel %vm962, %v1127, %v1128
        %v1130 = vrot.slane %v1128, 2
        %v1131 = vrot.slane %v688, 7
        %v1132 = vsel %vm962, %v1130, %v1131
        %v1133 = vrot.slane %v1131, 2
        %v1134 = vrot.slane %v687, 7
        %v1135 = vsel %vm962, %v1133, %v1134
        %v1136 = vrot.slane %v1134, 2
        %v1137 = vrot.slane %v955, 7
        %v1138 = vsel %vm962, %v1136, %v1137
        %v1139 = vcombine.low %v966, %v969
        %v1140 = vcombine.low %v972, %v975
        %v1142 = vunpack.c.l.s4 1983009808
        %v1143 = vunpack.c.0.s8 %v1142
        %v1144 = vlaneseq
        %v1145 = vshrl.u32 %v1144, 7
        %v1146 = vsub.s32 %v1143, %v1145
        %v1147 = vrot.slane %v1139, %v1146
        %v1149 = vunpack.c.l.s4 1983009808
        %v1150 = vunpack.c.0.s8 %v1149
        %v1151 = vlaneseq
        %v1152 = vshrl.u32 %v1151, 7
        %v1153 = vsub.s32 %v1150, %v1152
        %v1154 = vrot.slane %v1140, %v1153
        %v1155 = vcombine.low %v1147, %v1154
        %v1156 = vcombine.low %v978, %v981
        %v1157 = vcombine.low %v984, %v988
        %v1159 = vunpack.c.l.s4 1983009808
        %v1160 = vunpack.c.0.s8 %v1159
        %v1161 = vlaneseq
        %v1162 = vshrl.u32 %v1161, 7
        %v1163 = vsub.s32 %v1160, %v1162
        %v1164 = vrot.slane %v1156, %v1163
        %v1166 = vunpack.c.l.s4 1983009808
        %v1167 = vunpack.c.0.s8 %v1166
        %v1168 = vlaneseq
        %v1169 = vshrl.u32 %v1168, 7
        %v1170 = vsub.s32 %v1167, %v1169
        %v1171 = vrot.slane %v1157, %v1170
        %v1172 = vcombine.low %v1164, %v1171
        %v1173 = vcombine.low %v991, %v994
        %v1174 = vcombine.low %v997, %v1000
        %v1176 = vunpack.c.l.s4 1983009808
        %v1177 = vunpack.c.0.s8 %v1176
        %v1178 = vlaneseq
        %v1179 = vshrl.u32 %v1178, 7
        %v1180 = vsub.s32 %v1177, %v1179
        %v1181 = vrot.slane %v1173, %v1180
        %v1183 = vunpack.c.l.s4 1983009808
        %v1184 = vunpack.c.0.s8 %v1183
        %v1185 = vlaneseq
        %v1186 = vshrl.u32 %v1185, 7
        %v1187 = vsub.s32 %v1184, %v1186
        %v1188 = vrot.slane %v1174, %v1187
        %v1189 = vcombine.low %v1181, %v1188
        %v1190 = vcombine.low %v1003, %v1006
        %v1191 = vcombine.low %v1010, %v1013
        %v1193 = vunpack.c.l.s4 1983009808
        %v1194 = vunpack.c.0.s8 %v1193
        %v1195 = vlaneseq
        %v1196 = vshrl.u32 %v1195, 7
        %v1197 = vsub.s32 %v1194, %v1196
        %v1198 = vrot.slane %v1190, %v1197
        %v1200 = vunpack.c.l.s4 1983009808
        %v1201 = vunpack.c.0.s8 %v1200
        %v1202 = vlaneseq
        %v1203 = vshrl.u32 %v1202, 7
        %v1204 = vsub.s32 %v1201, %v1203
        %v1205 = vrot.slane %v1191, %v1204
        %v1206 = vcombine.low %v1198, %v1205
        %v1207 = vcombine.low %v1016, %v1019
        %v1208 = vcombine.low %v1022, %v1025
        %v1210 = vunpack.c.l.s4 1983009808
        %v1211 = vunpack.c.0.s8 %v1210
        %v1212 = vlaneseq
        %v1213 = vshrl.u32 %v1212, 7
        %v1214 = vsub.s32 %v1211, %v1213
        %v1215 = vrot.slane %v1207, %v1214
        %v1217 = vunpack.c.l.s4 1983009808
        %v1218 = vunpack.c.0.s8 %v1217
        %v1219 = vlaneseq
        %v1220 = vshrl.u32 %v1219, 7
        %v1221 = vsub.s32 %v1218, %v1220
        %v1222 = vrot.slane %v1208, %v1221
        %v1223 = vcombine.low %v1215, %v1222
        %v1224 = vcombine.low %v1028, %v1032
        %v1225 = vcombine.low %v1035, %v1038
        %v1227 = vunpack.c.l.s4 1983009808
        %v1228 = vunpack.c.0.s8 %v1227
        %v1229 = vlaneseq
        %v1230 = vshrl.u32 %v1229, 7
        %v1231 = vsub.s32 %v1228, %v1230
        %v1232 = vrot.slane %v1224, %v1231
        %v1234 = vunpack.c.l.s4 1983009808
        %v1235 = vunpack.c.0.s8 %v1234
        %v1236 = vlaneseq
        %v1237 = vshrl.u32 %v1236, 7
        %v1238 = vsub.s32 %v1235, %v1237
        %v1239 = vrot.slane %v1225, %v1238
        %v1240 = vcombine.low %v1232, %v1239
        %v1241 = vcombine.low %v1041, %v1044
        %v1242 = vcombine.low %v1047, %v1050
        %v1244 = vunpack.c.l.s4 1983009808
        %v1245 = vunpack.c.0.s8 %v1244
        %v1246 = vlaneseq
        %v1247 = vshrl.u32 %v1246, 7
        %v1248 = vsub.s32 %v1245, %v1247
        %v1249 = vrot.slane %v1241, %v1248
        %v1251 = vunpack.c.l.s4 1983009808
        %v1252 = vunpack.c.0.s8 %v1251
        %v1253 = vlaneseq
        %v1254 = vshrl.u32 %v1253, 7
        %v1255 = vsub.s32 %v1252, %v1254
        %v1256 = vrot.slane %v1242, %v1255
        %v1257 = vcombine.low %v1249, %v1256
        %v1258 = vcombine.low %v1054, %v1057
        %v1259 = vcombine.low %v1060, %v1063
        %v1261 = vunpack.c.l.s4 1983009808
        %v1262 = vunpack.c.0.s8 %v1261
        %v1263 = vlaneseq
        %v1264 = vshrl.u32 %v1263, 7
        %v1265 = vsub.s32 %v1262, %v1264
        %v1266 = vrot.slane %v1258, %v1265
        %v1268 = vunpack.c.l.s4 1983009808
        %v1269 = vunpack.c.0.s8 %v1268
        %v1270 = vlaneseq
        %v1271 = vshrl.u32 %v1270, 7
        %v1272 = vsub.s32 %v1269, %v1271
        %v1273 = vrot.slane %v1259, %v1272
        %v1274 = vcombine.low %v1266, %v1273
        %v1275 = vcombine.low %v1066, %v1069
        %v1276 = vcombine.low %v1072, %v1076
        %v1278 = vunpack.c.l.s4 1983009808
        %v1279 = vunpack.c.0.s8 %v1278
        %v1280 = vlaneseq
        %v1281 = vshrl.u32 %v1280, 7
        %v1282 = vsub.s32 %v1279, %v1281
        %v1283 = vrot.slane %v1275, %v1282
        %v1285 = vunpack.c.l.s4 1983009808
        %v1286 = vunpack.c.0.s8 %v1285
        %v1287 = vlaneseq
        %v1288 = vshrl.u32 %v1287, 7
        %v1289 = vsub.s32 %v1286, %v1288
        %v1290 = vrot.slane %v1276, %v1289
        %v1291 = vcombine.low %v1283, %v1290
        %v1292 = vcombine.low %v1079, %v1082
        %v1293 = vcombine.low %v1085, %v1088
        %v1295 = vunpack.c.l.s4 1983009808
        %v1296 = vunpack.c.0.s8 %v1295
        %v1297 = vlaneseq
        %v1298 = vshrl.u32 %v1297, 7
        %v1299 = vsub.s32 %v1296, %v1298
        %v1300 = vrot.slane %v1292, %v1299
        %v1302 = vunpack.c.l.s4 1983009808
        %v1303 = vunpack.c.0.s8 %v1302
        %v1304 = vlaneseq
        %v1305 = vshrl.u32 %v1304, 7
        %v1306 = vsub.s32 %v1303, %v1305
        %v1307 = vrot.slane %v1293, %v1306
        %v1308 = vcombine.low %v1300, %v1307
        %v1309 = vcombine.low %v1091, %v1094
        %v1310 = vcombine.low %v1098, %v1101
        %v1312 = vunpack.c.l.s4 1983009808
        %v1313 = vunpack.c.0.s8 %v1312
        %v1314 = vlaneseq
        %v1315 = vshrl.u32 %v1314, 7
        %v1316 = vsub.s32 %v1313, %v1315
        %v1317 = vrot.slane %v1309, %v1316
        %v1319 = vunpack.c.l.s4 1983009808
        %v1320 = vunpack.c.0.s8 %v1319
        %v1321 = vlaneseq
        %v1322 = vshrl.u32 %v1321, 7
        %v1323 = vsub.s32 %v1320, %v1322
        %v1324 = vrot.slane %v1310, %v1323
        %v1325 = vcombine.low %v1317, %v1324
        %v1326 = vcombine.low %v1104, %v1107
        %v1327 = vcombine.low %v1110, %v1113
        %v1329 = vunpack.c.l.s4 1983009808
        %v1330 = vunpack.c.0.s8 %v1329
        %v1331 = vlaneseq
        %v1332 = vshrl.u32 %v1331, 7
        %v1333 = vsub.s32 %v1330, %v1332
        %v1334 = vrot.slane %v1326, %v1333
        %v1336 = vunpack.c.l.s4 1983009808
        %v1337 = vunpack.c.0.s8 %v1336
        %v1338 = vlaneseq
        %v1339 = vshrl.u32 %v1338, 7
        %v1340 = vsub.s32 %v1337, %v1339
        %v1341 = vrot.slane %v1327, %v1340
        %v1342 = vcombine.low %v1334, %v1341
        %v1343 = vcombine.low %v1116, %v1120
        %v1344 = vcombine.low %v1123, %v1126
        %v1346 = vunpack.c.l.s4 1983009808
        %v1347 = vunpack.c.0.s8 %v1346
        %v1348 = vlaneseq
        %v1349 = vshrl.u32 %v1348, 7
        %v1350 = vsub.s32 %v1347, %v1349
        %v1351 = vrot.slane %v1343, %v1350
        %v1353 = vunpack.c.l.s4 1983009808
        %v1354 = vunpack.c.0.s8 %v1353
        %v1355 = vlaneseq
        %v1356 = vshrl.u32 %v1355, 7
        %v1357 = vsub.s32 %v1354, %v1356
        %v1358 = vrot.slane %v1344, %v1357
        %v1359 = vcombine.low %v1351, %v1358
        %v1360 = vcombine.low %v1129, %v1132
        %v1361 = vcombine.low %v1135, %v1138
        %v1363 = vunpack.c.l.s4 1983009808
        %v1364 = vunpack.c.0.s8 %v1363
        %v1365 = vlaneseq
        %v1366 = vshrl.u32 %v1365, 7
        %v1367 = vsub.s32 %v1364, %v1366
        %v1368 = vrot.slane %v1360, %v1367
        %v1370 = vunpack.c.l.s4 1983009808
        %v1371 = vunpack.c.0.s8 %v1370
        %v1372 = vlaneseq
        %v1373 = vshrl.u32 %v1372, 7
        %v1374 = vsub.s32 %v1371, %v1373
        %v1375 = vrot.slane %v1361, %v1374
        %v1376 = vcombine.low %v1368, %v1375
        %v1391 = vpack.c.bf16 %v1172, %v1155
        %v1392 = vpack.c.bf16 %v1206, %v1189
        %v1393 = vpack.c.bf16 %v1240, %v1223
        %v1394 = vpack.c.bf16 %v1274, %v1257
        %v1395 = vpack.c.bf16 %v1308, %v1291
        %v1396 = vpack.c.bf16 %v1342, %v1325
        %v1397 = vpack.c.bf16 %v1376, %v1359
        %vm1398 = vcmask 39936
        %v1400 = vsel %vm1398, %v1391, 0
        %v1403 = vsel %vm1398, %v1392, 0
        %v1406 = vsel %vm1398, %v1393, 0
        %v1409 = vsel %vm1398, %v1394, 0
        %v1412 = vsel %vm1398, %v1395, 0
        %v1415 = vsel %vm1398, %v1396, 0
        %v1418 = vsel %vm1398, %v1397, 0
        %vm1420 = vcmask 1041408
        %vm1421 = vcmask 1042432
        %v1422 = vsel %vm1420, 4294967295, 65535
        %v1423 = vsel %vm1421, %v1422, 0
        %v1425 = vand.u32 %v407, %v1423
        %1427 = vmatprep.subr.bf16.mxu0 0
        %1428 = vmatpush1.bf16.msra.mxu0 0
        %1429 = vmatprep.subr.bf16.mxu0 0
        %1430 = vmatpush1.bf16.msra.mxu0 0
        %1431 = vmatprep.subr.bf16.mxu0 0
        %1432 = vmatpush1.bf16.msra.mxu0 0
        %1433 = vmatprep.subr.bf16.mxu0 0
        %1434 = vmatpush1.bf16.msra.mxu0 0
        %1435 = vmatprep.subr.bf16.mxu0 0
        %1436 = vmatpush1.bf16.msra.mxu0 0
        %1437 = vmatprep.subr.bf16.mxu0 0
        %1438 = vmatpush1.bf16.msra.mxu0 0
        %1439 = vmatprep.subr.bf16.mxu0 0
        %1440 = vmatpush1.bf16.msra.mxu0 0
        %1441 = vmatprep.subr.bf16.mxu0 0
        %1442 = vmatpush1.bf16.msra.mxu0 %v1425
        %1443 = vmatprep.subr.bf16.mxu0 0
        %1444 = vmatpush2.bf16.msra.mxu0 0
        %1445 = vmatprep.subr.bf16.mxu0 0
        %1446 = vmatpush2.bf16.msra.mxu0 0
        %1447 = vmatprep.subr.bf16.mxu0 0
        %1448 = vmatpush2.bf16.msra.mxu0 0
        %1449 = vmatprep.subr.bf16.mxu0 0
        %1450 = vmatpush2.bf16.msra.mxu0 0
        %1451 = vmatprep.subr.bf16.mxu0 0
        %1452 = vmatpush2.bf16.msra.mxu0 0
        %1453 = vmatprep.subr.bf16.mxu0 0
        %1454 = vmatpush2.bf16.msra.mxu0 0
        %1455 = vmatprep.subr.bf16.mxu0 0
        %1456 = vmatpush2.bf16.msra.mxu0 0
        %1457 = vmatprep.subr.bf16.mxu0 0
        %1458 = vmatpush2.bf16.msra.mxu0 0
        %1459 = vmatprep.mubr.bf16.mxu0 0
        %1460 = vmatmul.mubr.bf16.gmra.mxu0 %v1400
        %v1461 = vpop.f32.mrf.mxu0
        %v1462 = vadd.f32 0.0, %v1461
        %v1463 = vpop.f32.mrf.mxu0
        %v1464 = vpop.f32.mrf.mxu0
        %v1465 = vadd.f32 0.0, %v1464
        %v1466 = vpop.f32.mrf.mxu0
        %1467 = vmatprep.mubr.bf16.mxu0 0
        %1468 = vmatmul.mubr.bf16.gmra.mxu0 %v1403
        %v1469 = vpop.f32.mrf.mxu0
        %v1470 = vadd.f32 0.0, %v1469
        %v1471 = vpop.f32.mrf.mxu0
        %v1472 = vpop.f32.mrf.mxu0
        %v1473 = vadd.f32 0.0, %v1472
        %v1474 = vpop.f32.mrf.mxu0
        %1475 = vmatprep.mubr.bf16.mxu0 0
        %1476 = vmatmul.mubr.bf16.gmra.mxu0 %v1406
        %v1477 = vpop.f32.mrf.mxu0
        %v1478 = vadd.f32 0.0, %v1477
        %v1479 = vpop.f32.mrf.mxu0
        %v1480 = vpop.f32.mrf.mxu0
        %v1481 = vadd.f32 0.0, %v1480
        %v1482 = vpop.f32.mrf.mxu0
        %1483 = vmatprep.mubr.bf16.mxu0 0
        %1484 = vmatmul.mubr.bf16.gmra.mxu0 %v1409
        %v1485 = vpop.f32.mrf.mxu0
        %v1486 = vadd.f32 0.0, %v1485
        %v1487 = vpop.f32.mrf.mxu0
        %v1488 = vpop.f32.mrf.mxu0
        %v1489 = vadd.f32 0.0, %v1488
        %v1490 = vpop.f32.mrf.mxu0
        %1491 = vmatprep.mubr.bf16.mxu0 0
        %1492 = vmatmul.mubr.bf16.gmra.mxu0 %v1412
        %v1493 = vpop.f32.mrf.mxu0
        %v1494 = vadd.f32 0.0, %v1493
        %v1495 = vpop.f32.mrf.mxu0
        %v1496 = vpop.f32.mrf.mxu0
        %v1497 = vadd.f32 0.0, %v1496
        %v1498 = vpop.f32.mrf.mxu0
        %1499 = vmatprep.mubr.bf16.mxu0 0
        %1500 = vmatmul.mubr.bf16.gmra.mxu0 %v1415
        %v1501 = vpop.f32.mrf.mxu0
        %v1502 = vadd.f32 0.0, %v1501
        %v1503 = vpop.f32.mrf.mxu0
        %v1504 = vpop.f32.mrf.mxu0
        %v1505 = vadd.f32 0.0, %v1504
        %v1506 = vpop.f32.mrf.mxu0
        %1507 = vmatprep.mubr.bf16.mxu0 0
        %1508 = vmatmul.mubr.bf16.gmra.mxu0 %v1418
        %v1509 = vpop.f32.mrf.mxu0
        %v1510 = vadd.f32 0.0, %v1509
        %v1511 = vpop.f32.mrf.mxu0
        %v1512 = vpop.f32.mrf.mxu0
        %v1513 = vadd.f32 0.0, %v1512
        %v1514 = vpop.f32.mrf.mxu0
        %1515 = vdwg.mxu0
        %v1517 = vsel %vm1398, %v941, 0
        %v1520 = vsel %vm1398, %v942, 0
        %v1523 = vsel %vm1398, %v943, 0
        %v1526 = vsel %vm1398, %v944, 0
        %v1529 = vsel %vm1398, %v945, 0
        %v1532 = vsel %vm1398, %v946, 0
        %v1535 = vsel %vm1398, %v947, 0
        %v1538 = vand.u32 %v406, %v1423
        %1540 = vmatprep.subr.bf16.mxu0 0
        %1541 = vmatpush1.bf16.msra.mxu0 0
        %1542 = vmatprep.subr.bf16.mxu0 0
        %1543 = vmatpush1.bf16.msra.mxu0 0
        %1544 = vmatprep.subr.bf16.mxu0 0
        %1545 = vmatpush1.bf16.msra.mxu0 0
        %1546 = vmatprep.subr.bf16.mxu0 0
        %1547 = vmatpush1.bf16.msra.mxu0 0
        %1548 = vmatprep.subr.bf16.mxu0 0
        %1549 = vmatpush1.bf16.msra.mxu0 0
        %1550 = vmatprep.subr.bf16.mxu0 0
        %1551 = vmatpush1.bf16.msra.mxu0 0
        %1552 = vmatprep.subr.bf16.mxu0 0
        %1553 = vmatpush1.bf16.msra.mxu0 0
        %1554 = vmatprep.subr.bf16.mxu0 0
        %1555 = vmatpush1.bf16.msra.mxu0 %v1538
        %1556 = vmatprep.subr.bf16.mxu0 0
        %1557 = vmatpush2.bf16.msra.mxu0 0
        %1558 = vmatprep.subr.bf16.mxu0 0
        %1559 = vmatpush2.bf16.msra.mxu0 0
        %1560 = vmatprep.subr.bf16.mxu0 0
        %1561 = vmatpush2.bf16.msra.mxu0 0
        %1562 = vmatprep.subr.bf16.mxu0 0
        %1563 = vmatpush2.bf16.msra.mxu0 0
        %1564 = vmatprep.subr.bf16.mxu0 0
        %1565 = vmatpush2.bf16.msra.mxu0 0
        %1566 = vmatprep.subr.bf16.mxu0 0
        %1567 = vmatpush2.bf16.msra.mxu0 0
        %1568 = vmatprep.subr.bf16.mxu0 0
        %1569 = vmatpush2.bf16.msra.mxu0 0
        %1570 = vmatprep.subr.bf16.mxu0 0
        %1571 = vmatpush2.bf16.msra.mxu0 0
        %1572 = vmatprep.mubr.bf16.mxu0 0
        %1573 = vmatmul.mubr.bf16.gmra.mxu0 %v1517
        %v1574 = vpop.f32.mrf.mxu0
        %v1575 = vadd.f32 %v1462, %v1574
        %v1576 = vpop.f32.mrf.mxu0
        %v1577 = vpop.f32.mrf.mxu0
        %v1578 = vadd.f32 %v1465, %v1577
        %v1579 = vpop.f32.mrf.mxu0
        %1580 = vmatprep.mubr.bf16.mxu0 0
        %1581 = vmatmul.mubr.bf16.gmra.mxu0 %v1520
        %v1582 = vpop.f32.mrf.mxu0
        %v1583 = vadd.f32 %v1470, %v1582
        %v1584 = vpop.f32.mrf.mxu0
        %v1585 = vpop.f32.mrf.mxu0
        %v1586 = vadd.f32 %v1473, %v1585
        %v1587 = vpop.f32.mrf.mxu0
        %1588 = vmatprep.mubr.bf16.mxu0 0
        %1589 = vmatmul.mubr.bf16.gmra.mxu0 %v1523
        %v1590 = vpop.f32.mrf.mxu0
        %v1591 = vadd.f32 %v1478, %v1590
        %v1592 = vpop.f32.mrf.mxu0
        %v1593 = vpop.f32.mrf.mxu0
        %v1594 = vadd.f32 %v1481, %v1593
        %v1595 = vpop.f32.mrf.mxu0
        %1596 = vmatprep.mubr.bf16.mxu0 0
        %1597 = vmatmul.mubr.bf16.gmra.mxu0 %v1526
        %v1598 = vpop.f32.mrf.mxu0
        %v1599 = vadd.f32 %v1486, %v1598
        %v1600 = vpop.f32.mrf.mxu0
        %v1601 = vpop.f32.mrf.mxu0
        %v1602 = vadd.f32 %v1489, %v1601
        %v1603 = vpop.f32.mrf.mxu0
        %1604 = vmatprep.mubr.bf16.mxu0 0
        %1605 = vmatmul.mubr.bf16.gmra.mxu0 %v1529
        %v1606 = vpop.f32.mrf.mxu0
        %v1607 = vadd.f32 %v1494, %v1606
        %v1608 = vpop.f32.mrf.mxu0
        %v1609 = vpop.f32.mrf.mxu0
        %v1610 = vadd.f32 %v1497, %v1609
        %v1611 = vpop.f32.mrf.mxu0
        %1612 = vmatprep.mubr.bf16.mxu0 0
        %1613 = vmatmul.mubr.bf16.gmra.mxu0 %v1532
        %v1614 = vpop.f32.mrf.mxu0
        %v1615 = vadd.f32 %v1502, %v1614
        %v1616 = vpop.f32.mrf.mxu0
        %v1617 = vpop.f32.mrf.mxu0
        %v1618 = vadd.f32 %v1505, %v1617
        %v1619 = vpop.f32.mrf.mxu0
        %1620 = vmatprep.mubr.bf16.mxu0 0
        %1621 = vmatmul.mubr.bf16.gmra.mxu0 %v1535
        %v1622 = vpop.f32.mrf.mxu0
        %v1623 = vadd.f32 %v1510, %v1622
        %v1624 = vpop.f32.mrf.mxu0
        %v1625 = vpop.f32.mrf.mxu0
        %v1626 = vadd.f32 %v1513, %v1625
        %v1627 = vpop.f32.mrf.mxu0
        %1628 = vdwg.mxu0
        %v1629 = vcombine.low %v440, %v439
        %v1630 = vcombine.low %v441, %v449
        %v1632 = vunpack.c.l.s4 1983009808
        %v1633 = vunpack.c.0.s8 %v1632
        %v1634 = vlaneseq
        %v1635 = vshrl.u32 %v1634, 7
        %v1636 = vsub.s32 %v1633, %v1635
        %v1637 = vrot.slane %v1629, %v1636
        %v1639 = vunpack.c.l.s4 1983009808
        %v1640 = vunpack.c.0.s8 %v1639
        %v1641 = vlaneseq
        %v1642 = vshrl.u32 %v1641, 7
        %v1643 = vsub.s32 %v1640, %v1642
        %v1644 = vrot.slane %v1630, %v1643
        %v1645 = vcombine.low %v1637, %v1644
        %v1646 = vcombine.low %v457, %v456
        %v1647 = vcombine.low %v948, %v473
        %v1649 = vunpack.c.l.s4 1983009808
        %v1650 = vunpack.c.0.s8 %v1649
        %v1651 = vlaneseq
        %v1652 = vshrl.u32 %v1651, 7
        %v1653 = vsub.s32 %v1650, %v1652
        %v1654 = vrot.slane %v1646, %v1653
        %v1656 = vunpack.c.l.s4 1983009808
        %v1657 = vunpack.c.0.s8 %v1656
        %v1658 = vlaneseq
        %v1659 = vshrl.u32 %v1658, 7
        %v1660 = vsub.s32 %v1657, %v1659
        %v1661 = vrot.slane %v1647, %v1660
        %v1662 = vcombine.low %v1654, %v1661
        %v1663 = vcombine.low %v472, %v474
        %v1664 = vcombine.low %v482, %v490
        %v1666 = vunpack.c.l.s4 1983009808
        %v1667 = vunpack.c.0.s8 %v1666
        %v1668 = vlaneseq
        %v1669 = vshrl.u32 %v1668, 7
        %v1670 = vsub.s32 %v1667, %v1669
        %v1671 = vrot.slane %v1663, %v1670
        %v1673 = vunpack.c.l.s4 1983009808
        %v1674 = vunpack.c.0.s8 %v1673
        %v1675 = vlaneseq
        %v1676 = vshrl.u32 %v1675, 7
        %v1677 = vsub.s32 %v1674, %v1676
        %v1678 = vrot.slane %v1664, %v1677
        %v1679 = vcombine.low %v1671, %v1678
        %v1680 = vcombine.low %v489, %v949
        %v1681 = vcombine.low %v506, %v505
        %v1683 = vunpack.c.l.s4 1983009808
        %v1684 = vunpack.c.0.s8 %v1683
        %v1685 = vlaneseq
        %v1686 = vshrl.u32 %v1685, 7
        %v1687 = vsub.s32 %v1684, %v1686
        %v1688 = vrot.slane %v1680, %v1687
        %v1690 = vunpack.c.l.s4 1983009808
        %v1691 = vunpack.c.0.s8 %v1690
        %v1692 = vlaneseq
        %v1693 = vshrl.u32 %v1692, 7
        %v1694 = vsub.s32 %v1691, %v1693
        %v1695 = vrot.slane %v1681, %v1694
        %v1696 = vcombine.low %v1688, %v1695
        %v1697 = vcombine.low %v507, %v515
        %v1698 = vcombine.low %v523, %v522
        %v1700 = vunpack.c.l.s4 1983009808
        %v1701 = vunpack.c.0.s8 %v1700
        %v1702 = vlaneseq
        %v1703 = vshrl.u32 %v1702, 7
        %v1704 = vsub.s32 %v1701, %v1703
        %v1705 = vrot.slane %v1697, %v1704
        %v1707 = vunpack.c.l.s4 1983009808
        %v1708 = vunpack.c.0.s8 %v1707
        %v1709 = vlaneseq
        %v1710 = vshrl.u32 %v1709, 7
        %v1711 = vsub.s32 %v1708, %v1710
        %v1712 = vrot.slane %v1698, %v1711
        %v1713 = vcombine.low %v1705, %v1712
        %v1714 = vcombine.low %v950, %v539
        %v1715 = vcombine.low %v538, %v540
        %v1717 = vunpack.c.l.s4 1983009808
        %v1718 = vunpack.c.0.s8 %v1717
        %v1719 = vlaneseq
        %v1720 = vshrl.u32 %v1719, 7
        %v1721 = vsub.s32 %v1718, %v1720
        %v1722 = vrot.slane %v1714, %v1721
        %v1724 = vunpack.c.l.s4 1983009808
        %v1725 = vunpack.c.0.s8 %v1724
        %v1726 = vlaneseq
        %v1727 = vshrl.u32 %v1726, 7
        %v1728 = vsub.s32 %v1725, %v1727
        %v1729 = vrot.slane %v1715, %v1728
        %v1730 = vcombine.low %v1722, %v1729
        %v1731 = vcombine.low %v548, %v556
        %v1732 = vcombine.low %v555, %v951
        %v1734 = vunpack.c.l.s4 1983009808
        %v1735 = vunpack.c.0.s8 %v1734
        %v1736 = vlaneseq
        %v1737 = vshrl.u32 %v1736, 7
        %v1738 = vsub.s32 %v1735, %v1737
        %v1739 = vrot.slane %v1731, %v1738
        %v1741 = vunpack.c.l.s4 1983009808
        %v1742 = vunpack.c.0.s8 %v1741
        %v1743 = vlaneseq
        %v1744 = vshrl.u32 %v1743, 7
        %v1745 = vsub.s32 %v1742, %v1744
        %v1746 = vrot.slane %v1732, %v1745
        %v1747 = vcombine.low %v1739, %v1746
        %v1748 = vcombine.low %v572, %v571
        %v1749 = vcombine.low %v573, %v581
        %v1751 = vunpack.c.l.s4 1983009808
        %v1752 = vunpack.c.0.s8 %v1751
        %v1753 = vlaneseq
        %v1754 = vshrl.u32 %v1753, 7
        %v1755 = vsub.s32 %v1752, %v1754
        %v1756 = vrot.slane %v1748, %v1755
        %v1758 = vunpack.c.l.s4 1983009808
        %v1759 = vunpack.c.0.s8 %v1758
        %v1760 = vlaneseq
        %v1761 = vshrl.u32 %v1760, 7
        %v1762 = vsub.s32 %v1759, %v1761
        %v1763 = vrot.slane %v1749, %v1762
        %v1764 = vcombine.low %v1756, %v1763
        %v1765 = vcombine.low %v589, %v588
        %v1766 = vcombine.low %v952, %v605
        %v1768 = vunpack.c.l.s4 1983009808
        %v1769 = vunpack.c.0.s8 %v1768
        %v1770 = vlaneseq
        %v1771 = vshrl.u32 %v1770, 7
        %v1772 = vsub.s32 %v1769, %v1771
        %v1773 = vrot.slane %v1765, %v1772
        %v1775 = vunpack.c.l.s4 1983009808
        %v1776 = vunpack.c.0.s8 %v1775
        %v1777 = vlaneseq
        %v1778 = vshrl.u32 %v1777, 7
        %v1779 = vsub.s32 %v1776, %v1778
        %v1780 = vrot.slane %v1766, %v1779
        %v1781 = vcombine.low %v1773, %v1780
        %v1782 = vcombine.low %v604, %v606
        %v1783 = vcombine.low %v614, %v622
        %v1785 = vunpack.c.l.s4 1983009808
        %v1786 = vunpack.c.0.s8 %v1785
        %v1787 = vlaneseq
        %v1788 = vshrl.u32 %v1787, 7
        %v1789 = vsub.s32 %v1786, %v1788
        %v1790 = vrot.slane %v1782, %v1789
        %v1792 = vunpack.c.l.s4 1983009808
        %v1793 = vunpack.c.0.s8 %v1792
        %v1794 = vlaneseq
        %v1795 = vshrl.u32 %v1794, 7
        %v1796 = vsub.s32 %v1793, %v1795
        %v1797 = vrot.slane %v1783, %v1796
        %v1798 = vcombine.low %v1790, %v1797
        %v1799 = vcombine.low %v621, %v953
        %v1800 = vcombine.low %v638, %v637
        %v1802 = vunpack.c.l.s4 1983009808
        %v1803 = vunpack.c.0.s8 %v1802
        %v1804 = vlaneseq
        %v1805 = vshrl.u32 %v1804, 7
        %v1806 = vsub.s32 %v1803, %v1805
        %v1807 = vrot.slane %v1799, %v1806
        %v1809 = vunpack.c.l.s4 1983009808
        %v1810 = vunpack.c.0.s8 %v1809
        %v1811 = vlaneseq
        %v1812 = vshrl.u32 %v1811, 7
        %v1813 = vsub.s32 %v1810, %v1812
        %v1814 = vrot.slane %v1800, %v1813
        %v1815 = vcombine.low %v1807, %v1814
        %v1816 = vcombine.low %v639, %v647
        %v1817 = vcombine.low %v655, %v654
        %v1819 = vunpack.c.l.s4 1983009808
        %v1820 = vunpack.c.0.s8 %v1819
        %v1821 = vlaneseq
        %v1822 = vshrl.u32 %v1821, 7
        %v1823 = vsub.s32 %v1820, %v1822
        %v1824 = vrot.slane %v1816, %v1823
        %v1826 = vunpack.c.l.s4 1983009808
        %v1827 = vunpack.c.0.s8 %v1826
        %v1828 = vlaneseq
        %v1829 = vshrl.u32 %v1828, 7
        %v1830 = vsub.s32 %v1827, %v1829
        %v1831 = vrot.slane %v1817, %v1830
        %v1832 = vcombine.low %v1824, %v1831
        %v1833 = vcombine.low %v954, %v671
        %v1834 = vcombine.low %v670, %v672
        %v1836 = vunpack.c.l.s4 1983009808
        %v1837 = vunpack.c.0.s8 %v1836
        %v1838 = vlaneseq
        %v1839 = vshrl.u32 %v1838, 7
        %v1840 = vsub.s32 %v1837, %v1839
        %v1841 = vrot.slane %v1833, %v1840
        %v1843 = vunpack.c.l.s4 1983009808
        %v1844 = vunpack.c.0.s8 %v1843
        %v1845 = vlaneseq
        %v1846 = vshrl.u32 %v1845, 7
        %v1847 = vsub.s32 %v1844, %v1846
        %v1848 = vrot.slane %v1834, %v1847
        %v1849 = vcombine.low %v1841, %v1848
        %v1850 = vcombine.low %v680, %v688
        %v1851 = vcombine.low %v687, %v955
        %v1853 = vunpack.c.l.s4 1983009808
        %v1854 = vunpack.c.0.s8 %v1853
        %v1855 = vlaneseq
        %v1856 = vshrl.u32 %v1855, 7
        %v1857 = vsub.s32 %v1854, %v1856
        %v1858 = vrot.slane %v1850, %v1857
        %v1860 = vunpack.c.l.s4 1983009808
        %v1861 = vunpack.c.0.s8 %v1860
        %v1862 = vlaneseq
        %v1863 = vshrl.u32 %v1862, 7
        %v1864 = vsub.s32 %v1861, %v1863
        %v1865 = vrot.slane %v1851, %v1864
        %v1866 = vcombine.low %v1858, %v1865
        %v1881 = vpack.c.bf16 %v1662, %v1645
        %v1882 = vpack.c.bf16 %v1696, %v1679
        %v1883 = vpack.c.bf16 %v1730, %v1713
        %v1884 = vpack.c.bf16 %v1764, %v1747
        %v1885 = vpack.c.bf16 %v1798, %v1781
        %v1886 = vpack.c.bf16 %v1832, %v1815
        %v1887 = vpack.c.bf16 %v1866, %v1849
        %v1889 = vsel %vm1398, %v1881, 0
        %v1892 = vsel %vm1398, %v1882, 0
        %v1895 = vsel %vm1398, %v1883, 0
        %v1898 = vsel %vm1398, %v1884, 0
        %v1901 = vsel %vm1398, %v1885, 0
        %v1904 = vsel %vm1398, %v1886, 0
        %v1907 = vsel %vm1398, %v1887, 0
        %v1910 = vand.u32 %v408, %v1423
        %1912 = vmatprep.subr.bf16.mxu0 0
        %1913 = vmatpush1.bf16.msra.mxu0 0
        %1914 = vmatprep.subr.bf16.mxu0 0
        %1915 = vmatpush1.bf16.msra.mxu0 0
        %1916 = vmatprep.subr.bf16.mxu0 0
        %1917 = vmatpush1.bf16.msra.mxu0 0
        %1918 = vmatprep.subr.bf16.mxu0 0
        %1919 = vmatpush1.bf16.msra.mxu0 0
        %1920 = vmatprep.subr.bf16.mxu0 0
        %1921 = vmatpush1.bf16.msra.mxu0 0
        %1922 = vmatprep.subr.bf16.mxu0 0
        %1923 = vmatpush1.bf16.msra.mxu0 0
        %1924 = vmatprep.subr.bf16.mxu0 0
        %1925 = vmatpush1.bf16.msra.mxu0 0
        %1926 = vmatprep.subr.bf16.mxu0 0
        %1927 = vmatpush1.bf16.msra.mxu0 %v1910
        %1928 = vmatprep.subr.bf16.mxu0 0
        %1929 = vmatpush2.bf16.msra.mxu0 0
        %1930 = vmatprep.subr.bf16.mxu0 0
        %1931 = vmatpush2.bf16.msra.mxu0 0
        %1932 = vmatprep.subr.bf16.mxu0 0
        %1933 = vmatpush2.bf16.msra.mxu0 0
        %1934 = vmatprep.subr.bf16.mxu0 0
        %1935 = vmatpush2.bf16.msra.mxu0 0
        %1936 = vmatprep.subr.bf16.mxu0 0
        %1937 = vmatpush2.bf16.msra.mxu0 0
        %1938 = vmatprep.subr.bf16.mxu0 0
        %1939 = vmatpush2.bf16.msra.mxu0 0
        %1940 = vmatprep.subr.bf16.mxu0 0
        %1941 = vmatpush2.bf16.msra.mxu0 0
        %1942 = vmatprep.subr.bf16.mxu0 0
        %1943 = vmatpush2.bf16.msra.mxu0 0
        %1944 = vmatprep.mubr.bf16.mxu0 0
        %1945 = vmatmul.mubr.bf16.gmra.mxu0 %v1889
        %v1946 = vpop.f32.mrf.mxu0
        %v1947 = vadd.f32 0.0, %v1946
        %v1948 = vpop.f32.mrf.mxu0
        %v1949 = vpop.f32.mrf.mxu0
        %v1950 = vadd.f32 0.0, %v1949
        %v1951 = vpop.f32.mrf.mxu0
        %1952 = vmatprep.mubr.bf16.mxu0 0
        %1953 = vmatmul.mubr.bf16.gmra.mxu0 %v1892
        %v1954 = vpop.f32.mrf.mxu0
        %v1955 = vadd.f32 0.0, %v1954
        %v1956 = vpop.f32.mrf.mxu0
        %v1957 = vpop.f32.mrf.mxu0
        %v1958 = vadd.f32 0.0, %v1957
        %v1959 = vpop.f32.mrf.mxu0
        %1960 = vmatprep.mubr.bf16.mxu0 0
        %1961 = vmatmul.mubr.bf16.gmra.mxu0 %v1895
        %v1962 = vpop.f32.mrf.mxu0
        %v1963 = vadd.f32 0.0, %v1962
        %v1964 = vpop.f32.mrf.mxu0
        %v1965 = vpop.f32.mrf.mxu0
        %v1966 = vadd.f32 0.0, %v1965
        %v1967 = vpop.f32.mrf.mxu0
        %1968 = vmatprep.mubr.bf16.mxu0 0
        %1969 = vmatmul.mubr.bf16.gmra.mxu0 %v1898
        %v1970 = vpop.f32.mrf.mxu0
        %v1971 = vadd.f32 0.0, %v1970
        %v1972 = vpop.f32.mrf.mxu0
        %v1973 = vpop.f32.mrf.mxu0
        %v1974 = vadd.f32 0.0, %v1973
        %v1975 = vpop.f32.mrf.mxu0
        %1976 = vmatprep.mubr.bf16.mxu0 0
        %1977 = vmatmul.mubr.bf16.gmra.mxu0 %v1901
        %v1978 = vpop.f32.mrf.mxu0
        %v1979 = vadd.f32 0.0, %v1978
        %v1980 = vpop.f32.mrf.mxu0
        %v1981 = vpop.f32.mrf.mxu0
        %v1982 = vadd.f32 0.0, %v1981
        %v1983 = vpop.f32.mrf.mxu0
        %1984 = vmatprep.mubr.bf16.mxu0 0
        %1985 = vmatmul.mubr.bf16.gmra.mxu0 %v1904
        %v1986 = vpop.f32.mrf.mxu0
        %v1987 = vadd.f32 0.0, %v1986
        %v1988 = vpop.f32.mrf.mxu0
        %v1989 = vpop.f32.mrf.mxu0
        %v1990 = vadd.f32 0.0, %v1989
        %v1991 = vpop.f32.mrf.mxu0
        %1992 = vmatprep.mubr.bf16.mxu0 0
        %1993 = vmatmul.mubr.bf16.gmra.mxu0 %v1907
        %v1994 = vpop.f32.mrf.mxu0
        %v1995 = vadd.f32 0.0, %v1994
        %v1996 = vpop.f32.mrf.mxu0
        %v1997 = vpop.f32.mrf.mxu0
        %v1998 = vadd.f32 0.0, %v1997
        %v1999 = vpop.f32.mrf.mxu0
        %2000 = vdwg.mxu0
        %v2001 = vadd.f32 %v1575, %v1947
        %v2002 = vadd.f32 %v1578, %v1950
        %v2003 = vadd.f32 %v1583, %v1955
        %v2004 = vadd.f32 %v1586, %v1958
        %v2005 = vadd.f32 %v1591, %v1963
        %v2006 = vadd.f32 %v1594, %v1966
        %v2007 = vadd.f32 %v1599, %v1971
        %v2008 = vadd.f32 %v1602, %v1974
        %v2009 = vadd.f32 %v1607, %v1979
        %v2010 = vadd.f32 %v1610, %v1982
        %v2011 = vadd.f32 %v1615, %v1987
        %v2012 = vadd.f32 %v1618, %v1990
        %v2013 = vadd.f32 %v1623, %v1995
        %v2014 = vadd.f32 %v1626, %v1998
        %v2015 = vld [vmem:[%s3] sm:$0x1]
        %v2017 = vlaneseq
        %v2018 = vshrl.u32 %v2017, 7
        %v2019 = vsub.s32 0, %v2018
        %v2020 = vrot.slane %v2015, %v2019
        %v2022 = vadd.f32 %v2001, %v2020
        %v2023 = vadd.f32 %v2002, %v2020
        %v2024 = vadd.f32 %v2003, %v2020
        %v2025 = vadd.f32 %v2004, %v2020
        %v2026 = vadd.f32 %v2005, %v2020
        %v2027 = vadd.f32 %v2006, %v2020
        %v2028 = vadd.f32 %v2007, %v2020
        %v2029 = vadd.f32 %v2008, %v2020
        %v2030 = vadd.f32 %v2009, %v2020
        %v2031 = vadd.f32 %v2010, %v2020
        %v2032 = vadd.f32 %v2011, %v2020
        %v2033 = vadd.f32 %v2012, %v2020
        %v2034 = vadd.f32 %v2013, %v2020
        %v2035 = vadd.f32 %v2014, %v2020
        %v2036 = vmax.f32 %v2022, 0.0
        %v2037 = vmax.f32 %v2023, 0.0
        %v2038 = vmax.f32 %v2024, 0.0
        %v2039 = vmax.f32 %v2025, 0.0
        %v2040 = vmax.f32 %v2026, 0.0
        %v2041 = vmax.f32 %v2027, 0.0
        %v2042 = vmax.f32 %v2028, 0.0
        %v2043 = vmax.f32 %v2029, 0.0
        %v2044 = vmax.f32 %v2030, 0.0
        %v2045 = vmax.f32 %v2031, 0.0
        %v2046 = vmax.f32 %v2032, 0.0
        %v2047 = vmax.f32 %v2033, 0.0
        %v2048 = vmax.f32 %v2034, 0.0
        %v2049 = vmax.f32 %v2035, 0.0
        %v2064 = vcombine.high %v2036, %v2036
        %v2066 = vunpack.c.l.s4 1983009808
        %v2067 = vunpack.c.0.s8 %v2066
        %v2068 = vlaneseq
        %v2069 = vshrl.u32 %v2068, 7
        %v2070 = vsub.s32 %v2067, %v2069
        %v2071 = vrot.slane %v2036, %v2070
        %v2073 = vunpack.c.l.s4 1983009808
        %v2074 = vunpack.c.0.s8 %v2073
        %v2075 = vlaneseq
        %v2076 = vshrl.u32 %v2075, 7
        %v2077 = vsub.s32 %v2074, %v2076
        %v2078 = vrot.slane %v2064, %v2077
        %v2079 = vcombine.high %v2071, %v2071
        %v2080 = vcombine.high %v2078, %v2078
        %v2081 = vcombine.high %v2037, %v2037
        %v2083 = vunpack.c.l.s4 1983009808
        %v2084 = vunpack.c.0.s8 %v2083
        %v2085 = vlaneseq
        %v2086 = vshrl.u32 %v2085, 7
        %v2087 = vsub.s32 %v2084, %v2086
        %v2088 = vrot.slane %v2037, %v2087
        %v2090 = vunpack.c.l.s4 1983009808
        %v2091 = vunpack.c.0.s8 %v2090
        %v2092 = vlaneseq
        %v2093 = vshrl.u32 %v2092, 7
        %v2094 = vsub.s32 %v2091, %v2093
        %v2095 = vrot.slane %v2081, %v2094
        %v2096 = vcombine.high %v2088, %v2088
        %v2097 = vcombine.high %v2095, %v2095
        %v2098 = vcombine.high %v2038, %v2038
        %v2100 = vunpack.c.l.s4 1983009808
        %v2101 = vunpack.c.0.s8 %v2100
        %v2102 = vlaneseq
        %v2103 = vshrl.u32 %v2102, 7
        %v2104 = vsub.s32 %v2101, %v2103
        %v2105 = vrot.slane %v2038, %v2104
        %v2107 = vunpack.c.l.s4 1983009808
        %v2108 = vunpack.c.0.s8 %v2107
        %v2109 = vlaneseq
        %v2110 = vshrl.u32 %v2109, 7
        %v2111 = vsub.s32 %v2108, %v2110
        %v2112 = vrot.slane %v2098, %v2111
        %v2113 = vcombine.high %v2105, %v2105
        %v2114 = vcombine.high %v2112, %v2112
        %v2115 = vcombine.high %v2039, %v2039
        %v2117 = vunpack.c.l.s4 1983009808
        %v2118 = vunpack.c.0.s8 %v2117
        %v2119 = vlaneseq
        %v2120 = vshrl.u32 %v2119, 7
        %v2121 = vsub.s32 %v2118, %v2120
        %v2122 = vrot.slane %v2039, %v2121
        %v2124 = vunpack.c.l.s4 1983009808
        %v2125 = vunpack.c.0.s8 %v2124
        %v2126 = vlaneseq
        %v2127 = vshrl.u32 %v2126, 7
        %v2128 = vsub.s32 %v2125, %v2127
        %v2129 = vrot.slane %v2115, %v2128
        %v2130 = vcombine.high %v2122, %v2122
        %v2131 = vcombine.high %v2129, %v2129
        %v2132 = vcombine.high %v2040, %v2040
        %v2134 = vunpack.c.l.s4 1983009808
        %v2135 = vunpack.c.0.s8 %v2134
        %v2136 = vlaneseq
        %v2137 = vshrl.u32 %v2136, 7
        %v2138 = vsub.s32 %v2135, %v2137
        %v2139 = vrot.slane %v2040, %v2138
        %v2141 = vunpack.c.l.s4 1983009808
        %v2142 = vunpack.c.0.s8 %v2141
        %v2143 = vlaneseq
        %v2144 = vshrl.u32 %v2143, 7
        %v2145 = vsub.s32 %v2142, %v2144
        %v2146 = vrot.slane %v2132, %v2145
        %v2147 = vcombine.high %v2139, %v2139
        %v2148 = vcombine.high %v2146, %v2146
        %v2149 = vcombine.high %v2041, %v2041
        %v2151 = vunpack.c.l.s4 1983009808
        %v2152 = vunpack.c.0.s8 %v2151
        %v2153 = vlaneseq
        %v2154 = vshrl.u32 %v2153, 7
        %v2155 = vsub.s32 %v2152, %v2154
        %v2156 = vrot.slane %v2041, %v2155
        %v2158 = vunpack.c.l.s4 1983009808
        %v2159 = vunpack.c.0.s8 %v2158
        %v2160 = vlaneseq
        %v2161 = vshrl.u32 %v2160, 7
        %v2162 = vsub.s32 %v2159, %v2161
        %v2163 = vrot.slane %v2149, %v2162
        %v2164 = vcombine.high %v2156, %v2156
        %v2165 = vcombine.high %v2163, %v2163
        %v2166 = vcombine.high %v2042, %v2042
        %v2168 = vunpack.c.l.s4 1983009808
        %v2169 = vunpack.c.0.s8 %v2168
        %v2170 = vlaneseq
        %v2171 = vshrl.u32 %v2170, 7
        %v2172 = vsub.s32 %v2169, %v2171
        %v2173 = vrot.slane %v2042, %v2172
        %v2175 = vunpack.c.l.s4 1983009808
        %v2176 = vunpack.c.0.s8 %v2175
        %v2177 = vlaneseq
        %v2178 = vshrl.u32 %v2177, 7
        %v2179 = vsub.s32 %v2176, %v2178
        %v2180 = vrot.slane %v2166, %v2179
        %v2181 = vcombine.high %v2173, %v2173
        %v2182 = vcombine.high %v2180, %v2180
        %v2183 = vcombine.high %v2043, %v2043
        %v2185 = vunpack.c.l.s4 1983009808
        %v2186 = vunpack.c.0.s8 %v2185
        %v2187 = vlaneseq
        %v2188 = vshrl.u32 %v2187, 7
        %v2189 = vsub.s32 %v2186, %v2188
        %v2190 = vrot.slane %v2043, %v2189
        %v2192 = vunpack.c.l.s4 1983009808
        %v2193 = vunpack.c.0.s8 %v2192
        %v2194 = vlaneseq
        %v2195 = vshrl.u32 %v2194, 7
        %v2196 = vsub.s32 %v2193, %v2195
        %v2197 = vrot.slane %v2183, %v2196
        %v2198 = vcombine.high %v2190, %v2190
        %v2199 = vcombine.high %v2197, %v2197
        %v2200 = vcombine.high %v2044, %v2044
        %v2202 = vunpack.c.l.s4 1983009808
        %v2203 = vunpack.c.0.s8 %v2202
        %v2204 = vlaneseq
        %v2205 = vshrl.u32 %v2204, 7
        %v2206 = vsub.s32 %v2203, %v2205
        %v2207 = vrot.slane %v2044, %v2206
        %v2209 = vunpack.c.l.s4 1983009808
        %v2210 = vunpack.c.0.s8 %v2209
        %v2211 = vlaneseq
        %v2212 = vshrl.u32 %v2211, 7
        %v2213 = vsub.s32 %v2210, %v2212
        %v2214 = vrot.slane %v2200, %v2213
        %v2215 = vcombine.high %v2207, %v2207
        %v2216 = vcombine.high %v2214, %v2214
        %v2217 = vcombine.high %v2045, %v2045
        %v2219 = vunpack.c.l.s4 1983009808
        %v2220 = vunpack.c.0.s8 %v2219
        %v2221 = vlaneseq
        %v2222 = vshrl.u32 %v2221, 7
        %v2223 = vsub.s32 %v2220, %v2222
        %v2224 = vrot.slane %v2045, %v2223
        %v2226 = vunpack.c.l.s4 1983009808
        %v2227 = vunpack.c.0.s8 %v2226
        %v2228 = vlaneseq
        %v2229 = vshrl.u32 %v2228, 7
        %v2230 = vsub.s32 %v2227, %v2229
        %v2231 = vrot.slane %v2217, %v2230
        %v2232 = vcombine.high %v2224, %v2224
        %v2233 = vcombine.high %v2231, %v2231
        %v2234 = vcombine.high %v2046, %v2046
        %v2236 = vunpack.c.l.s4 1983009808
        %v2237 = vunpack.c.0.s8 %v2236
        %v2238 = vlaneseq
        %v2239 = vshrl.u32 %v2238, 7
        %v2240 = vsub.s32 %v2237, %v2239
        %v2241 = vrot.slane %v2046, %v2240
        %v2243 = vunpack.c.l.s4 1983009808
        %v2244 = vunpack.c.0.s8 %v2243
        %v2245 = vlaneseq
        %v2246 = vshrl.u32 %v2245, 7
        %v2247 = vsub.s32 %v2244, %v2246
        %v2248 = vrot.slane %v2234, %v2247
        %v2249 = vcombine.high %v2241, %v2241
        %v2250 = vcombine.high %v2248, %v2248
        %v2251 = vcombine.high %v2047, %v2047
        %v2253 = vunpack.c.l.s4 1983009808
        %v2254 = vunpack.c.0.s8 %v2253
        %v2255 = vlaneseq
        %v2256 = vshrl.u32 %v2255, 7
        %v2257 = vsub.s32 %v2254, %v2256
        %v2258 = vrot.slane %v2047, %v2257
        %v2260 = vunpack.c.l.s4 1983009808
        %v2261 = vunpack.c.0.s8 %v2260
        %v2262 = vlaneseq
        %v2263 = vshrl.u32 %v2262, 7
        %v2264 = vsub.s32 %v2261, %v2263
        %v2265 = vrot.slane %v2251, %v2264
        %v2266 = vcombine.high %v2258, %v2258
        %v2267 = vcombine.high %v2265, %v2265
        %v2268 = vcombine.high %v2048, %v2048
        %v2270 = vunpack.c.l.s4 1983009808
        %v2271 = vunpack.c.0.s8 %v2270
        %v2272 = vlaneseq
        %v2273 = vshrl.u32 %v2272, 7
        %v2274 = vsub.s32 %v2271, %v2273
        %v2275 = vrot.slane %v2048, %v2274
        %v2277 = vunpack.c.l.s4 1983009808
        %v2278 = vunpack.c.0.s8 %v2277
        %v2279 = vlaneseq
        %v2280 = vshrl.u32 %v2279, 7
        %v2281 = vsub.s32 %v2278, %v2280
        %v2282 = vrot.slane %v2268, %v2281
        %v2283 = vcombine.high %v2275, %v2275
        %v2284 = vcombine.high %v2282, %v2282
        %v2285 = vcombine.high %v2049, %v2049
        %v2287 = vunpack.c.l.s4 1983009808
        %v2288 = vunpack.c.0.s8 %v2287
        %v2289 = vlaneseq
        %v2290 = vshrl.u32 %v2289, 7
        %v2291 = vsub.s32 %v2288, %v2290
        %v2292 = vrot.slane %v2049, %v2291
        %v2294 = vunpack.c.l.s4 1983009808
        %v2295 = vunpack.c.0.s8 %v2294
        %v2296 = vlaneseq
        %v2297 = vshrl.u32 %v2296, 7
        %v2298 = vsub.s32 %v2295, %v2297
        %v2299 = vrot.slane %v2285, %v2298
        %v2300 = vcombine.high %v2292, %v2292
        %v2301 = vcombine.high %v2299, %v2299
        %vm2358 = vcmask 58368
        %v2359 = vsel %vm2358, %v2071, -inf
        %v2360 = vrot.slane %v2359, 4
        %v2361 = vmax.f32 %v2359, %v2360
        %v2362 = vrot.slane %v2361, 2
        %v2363 = vmax.f32 %v2361, %v2362
        %v2364 = vrot.slane %v2363, 1
        %v2365 = vmax.f32 %v2363, %v2364
        %v2366 = vsel %vm2358, %v2079, -inf
        %v2367 = vrot.slane %v2366, 4
        %v2368 = vmax.f32 %v2366, %v2367
        %v2369 = vrot.slane %v2368, 2
        %v2370 = vmax.f32 %v2368, %v2369
        %v2371 = vrot.slane %v2370, 1
        %v2372 = vmax.f32 %v2370, %v2371
        %v2373 = vsel %vm2358, %v2078, -inf
        %v2374 = vrot.slane %v2373, 4
        %v2375 = vmax.f32 %v2373, %v2374
        %v2376 = vrot.slane %v2375, 2
        %v2377 = vmax.f32 %v2375, %v2376
        %v2378 = vrot.slane %v2377, 1
        %v2379 = vmax.f32 %v2377, %v2378
        %v2380 = vsel %vm2358, %v2080, -inf
        %v2381 = vrot.slane %v2380, 4
        %v2382 = vmax.f32 %v2380, %v2381
        %v2383 = vrot.slane %v2382, 2
        %v2384 = vmax.f32 %v2382, %v2383
        %v2385 = vrot.slane %v2384, 1
        %v2386 = vmax.f32 %v2384, %v2385
        %v2387 = vsel %vm2358, %v2088, -inf
        %v2388 = vrot.slane %v2387, 4
        %v2389 = vmax.f32 %v2387, %v2388
        %v2390 = vrot.slane %v2389, 2
        %v2391 = vmax.f32 %v2389, %v2390
        %v2392 = vrot.slane %v2391, 1
        %v2393 = vmax.f32 %v2391, %v2392
        %v2394 = vsel %vm2358, %v2096, -inf
        %v2395 = vrot.slane %v2394, 4
        %v2396 = vmax.f32 %v2394, %v2395
        %v2397 = vrot.slane %v2396, 2
        %v2398 = vmax.f32 %v2396, %v2397
        %v2399 = vrot.slane %v2398, 1
        %v2400 = vmax.f32 %v2398, %v2399
        %v2401 = vsel %vm2358, %v2095, -inf
        %v2402 = vrot.slane %v2401, 4
        %v2403 = vmax.f32 %v2401, %v2402
        %v2404 = vrot.slane %v2403, 2
        %v2405 = vmax.f32 %v2403, %v2404
        %v2406 = vrot.slane %v2405, 1
        %v2407 = vmax.f32 %v2405, %v2406
        %v2408 = vsel %vm2358, %v2097, -inf
        %v2409 = vrot.slane %v2408, 4
        %v2410 = vmax.f32 %v2408, %v2409
        %v2411 = vrot.slane %v2410, 2
        %v2412 = vmax.f32 %v2410, %v2411
        %v2413 = vrot.slane %v2412, 1
        %v2414 = vmax.f32 %v2412, %v2413
        %v2415 = vsel %vm2358, %v2105, -inf
        %v2416 = vrot.slane %v2415, 4
        %v2417 = vmax.f32 %v2415, %v2416
        %v2418 = vrot.slane %v2417, 2
        %v2419 = vmax.f32 %v2417, %v2418
        %v2420 = vrot.slane %v2419, 1
        %v2421 = vmax.f32 %v2419, %v2420
        %v2422 = vsel %vm2358, %v2113, -inf
        %v2423 = vrot.slane %v2422, 4
        %v2424 = vmax.f32 %v2422, %v2423
        %v2425 = vrot.slane %v2424, 2
        %v2426 = vmax.f32 %v2424, %v2425
        %v2427 = vrot.slane %v2426, 1
        %v2428 = vmax.f32 %v2426, %v2427
        %v2429 = vsel %vm2358, %v2112, -inf
        %v2430 = vrot.slane %v2429, 4
        %v2431 = vmax.f32 %v2429, %v2430
        %v2432 = vrot.slane %v2431, 2
        %v2433 = vmax.f32 %v2431, %v2432
        %v2434 = vrot.slane %v2433, 1
        %v2435 = vmax.f32 %v2433, %v2434
        %v2436 = vsel %vm2358, %v2114, -inf
        %v2437 = vrot.slane %v2436, 4
        %v2438 = vmax.f32 %v2436, %v2437
        %v2439 = vrot.slane %v2438, 2
        %v2440 = vmax.f32 %v2438, %v2439
        %v2441 = vrot.slane %v2440, 1
        %v2442 = vmax.f32 %v2440, %v2441
        %v2443 = vsel %vm2358, %v2122, -inf
        %v2444 = vrot.slane %v2443, 4
        %v2445 = vmax.f32 %v2443, %v2444
        %v2446 = vrot.slane %v2445, 2
        %v2447 = vmax.f32 %v2445, %v2446
        %v2448 = vrot.slane %v2447, 1
        %v2449 = vmax.f32 %v2447, %v2448
        %v2450 = vsel %vm2358, %v2130, -inf
        %v2451 = vrot.slane %v2450, 4
        %v2452 = vmax.f32 %v2450, %v2451
        %v2453 = vrot.slane %v2452, 2
        %v2454 = vmax.f32 %v2452, %v2453
        %v2455 = vrot.slane %v2454, 1
        %v2456 = vmax.f32 %v2454, %v2455
        %v2457 = vsel %vm2358, %v2129, -inf
        %v2458 = vrot.slane %v2457, 4
        %v2459 = vmax.f32 %v2457, %v2458
        %v2460 = vrot.slane %v2459, 2
        %v2461 = vmax.f32 %v2459, %v2460
        %v2462 = vrot.slane %v2461, 1
        %v2463 = vmax.f32 %v2461, %v2462
        %v2464 = vsel %vm2358, %v2131, -inf
        %v2465 = vrot.slane %v2464, 4
        %v2466 = vmax.f32 %v2464, %v2465
        %v2467 = vrot.slane %v2466, 2
        %v2468 = vmax.f32 %v2466, %v2467
        %v2469 = vrot.slane %v2468, 1
        %v2470 = vmax.f32 %v2468, %v2469
        %v2471 = vsel %vm2358, %v2139, -inf
        %v2472 = vrot.slane %v2471, 4
        %v2473 = vmax.f32 %v2471, %v2472
        %v2474 = vrot.slane %v2473, 2
        %v2475 = vmax.f32 %v2473, %v2474
        %v2476 = vrot.slane %v2475, 1
        %v2477 = vmax.f32 %v2475, %v2476
        %v2478 = vsel %vm2358, %v2147, -inf
        %v2479 = vrot.slane %v2478, 4
        %v2480 = vmax.f32 %v2478, %v2479
        %v2481 = vrot.slane %v2480, 2
        %v2482 = vmax.f32 %v2480, %v2481
        %v2483 = vrot.slane %v2482, 1
        %v2484 = vmax.f32 %v2482, %v2483
        %v2485 = vsel %vm2358, %v2146, -inf
        %v2486 = vrot.slane %v2485, 4
        %v2487 = vmax.f32 %v2485, %v2486
        %v2488 = vrot.slane %v2487, 2
        %v2489 = vmax.f32 %v2487, %v2488
        %v2490 = vrot.slane %v2489, 1
        %v2491 = vmax.f32 %v2489, %v2490
        %v2492 = vsel %vm2358, %v2148, -inf
        %v2493 = vrot.slane %v2492, 4
        %v2494 = vmax.f32 %v2492, %v2493
        %v2495 = vrot.slane %v2494, 2
        %v2496 = vmax.f32 %v2494, %v2495
        %v2497 = vrot.slane %v2496, 1
        %v2498 = vmax.f32 %v2496, %v2497
        %v2499 = vsel %vm2358, %v2156, -inf
        %v2500 = vrot.slane %v2499, 4
        %v2501 = vmax.f32 %v2499, %v2500
        %v2502 = vrot.slane %v2501, 2
        %v2503 = vmax.f32 %v2501, %v2502
        %v2504 = vrot.slane %v2503, 1
        %v2505 = vmax.f32 %v2503, %v2504
        %v2506 = vsel %vm2358, %v2164, -inf
        %v2507 = vrot.slane %v2506, 4
        %v2508 = vmax.f32 %v2506, %v2507
        %v2509 = vrot.slane %v2508, 2
        %v2510 = vmax.f32 %v2508, %v2509
        %v2511 = vrot.slane %v2510, 1
        %v2512 = vmax.f32 %v2510, %v2511
        %v2513 = vsel %vm2358, %v2163, -inf
        %v2514 = vrot.slane %v2513, 4
        %v2515 = vmax.f32 %v2513, %v2514
        %v2516 = vrot.slane %v2515, 2
        %v2517 = vmax.f32 %v2515, %v2516
        %v2518 = vrot.slane %v2517, 1
        %v2519 = vmax.f32 %v2517, %v2518
        %v2520 = vsel %vm2358, %v2165, -inf
        %v2521 = vrot.slane %v2520, 4
        %v2522 = vmax.f32 %v2520, %v2521
        %v2523 = vrot.slane %v2522, 2
        %v2524 = vmax.f32 %v2522, %v2523
        %v2525 = vrot.slane %v2524, 1
        %v2526 = vmax.f32 %v2524, %v2525
        %v2527 = vsel %vm2358, %v2173, -inf
        %v2528 = vrot.slane %v2527, 4
        %v2529 = vmax.f32 %v2527, %v2528
        %v2530 = vrot.slane %v2529, 2
        %v2531 = vmax.f32 %v2529, %v2530
        %v2532 = vrot.slane %v2531, 1
        %v2533 = vmax.f32 %v2531, %v2532
        %v2534 = vsel %vm2358, %v2181, -inf
        %v2535 = vrot.slane %v2534, 4
        %v2536 = vmax.f32 %v2534, %v2535
        %v2537 = vrot.slane %v2536, 2
        %v2538 = vmax.f32 %v2536, %v2537
        %v2539 = vrot.slane %v2538, 1
        %v2540 = vmax.f32 %v2538, %v2539
        %v2541 = vsel %vm2358, %v2180, -inf
        %v2542 = vrot.slane %v2541, 4
        %v2543 = vmax.f32 %v2541, %v2542
        %v2544 = vrot.slane %v2543, 2
        %v2545 = vmax.f32 %v2543, %v2544
        %v2546 = vrot.slane %v2545, 1
        %v2547 = vmax.f32 %v2545, %v2546
        %v2548 = vsel %vm2358, %v2182, -inf
        %v2549 = vrot.slane %v2548, 4
        %v2550 = vmax.f32 %v2548, %v2549
        %v2551 = vrot.slane %v2550, 2
        %v2552 = vmax.f32 %v2550, %v2551
        %v2553 = vrot.slane %v2552, 1
        %v2554 = vmax.f32 %v2552, %v2553
        %v2555 = vsel %vm2358, %v2190, -inf
        %v2556 = vrot.slane %v2555, 4
        %v2557 = vmax.f32 %v2555, %v2556
        %v2558 = vrot.slane %v2557, 2
        %v2559 = vmax.f32 %v2557, %v2558
        %v2560 = vrot.slane %v2559, 1
        %v2561 = vmax.f32 %v2559, %v2560
        %v2562 = vsel %vm2358, %v2198, -inf
        %v2563 = vrot.slane %v2562, 4
        %v2564 = vmax.f32 %v2562, %v2563
        %v2565 = vrot.slane %v2564, 2
        %v2566 = vmax.f32 %v2564, %v2565
        %v2567 = vrot.slane %v2566, 1
        %v2568 = vmax.f32 %v2566, %v2567
        %v2569 = vsel %vm2358, %v2197, -inf
        %v2570 = vrot.slane %v2569, 4
        %v2571 = vmax.f32 %v2569, %v2570
        %v2572 = vrot.slane %v2571, 2
        %v2573 = vmax.f32 %v2571, %v2572
        %v2574 = vrot.slane %v2573, 1
        %v2575 = vmax.f32 %v2573, %v2574
        %v2576 = vsel %vm2358, %v2199, -inf
        %v2577 = vrot.slane %v2576, 4
        %v2578 = vmax.f32 %v2576, %v2577
        %v2579 = vrot.slane %v2578, 2
        %v2580 = vmax.f32 %v2578, %v2579
        %v2581 = vrot.slane %v2580, 1
        %v2582 = vmax.f32 %v2580, %v2581
        %v2583 = vsel %vm2358, %v2207, -inf
        %v2584 = vrot.slane %v2583, 4
        %v2585 = vmax.f32 %v2583, %v2584
        %v2586 = vrot.slane %v2585, 2
        %v2587 = vmax.f32 %v2585, %v2586
        %v2588 = vrot.slane %v2587, 1
        %v2589 = vmax.f32 %v2587, %v2588
        %v2590 = vsel %vm2358, %v2215, -inf
        %v2591 = vrot.slane %v2590, 4
        %v2592 = vmax.f32 %v2590, %v2591
        %v2593 = vrot.slane %v2592, 2
        %v2594 = vmax.f32 %v2592, %v2593
        %v2595 = vrot.slane %v2594, 1
        %v2596 = vmax.f32 %v2594, %v2595
        %v2597 = vsel %vm2358, %v2214, -inf
        %v2598 = vrot.slane %v2597, 4
        %v2599 = vmax.f32 %v2597, %v2598
        %v2600 = vrot.slane %v2599, 2
        %v2601 = vmax.f32 %v2599, %v2600
        %v2602 = vrot.slane %v2601, 1
        %v2603 = vmax.f32 %v2601, %v2602
        %v2604 = vsel %vm2358, %v2216, -inf
        %v2605 = vrot.slane %v2604, 4
        %v2606 = vmax.f32 %v2604, %v2605
        %v2607 = vrot.slane %v2606, 2
        %v2608 = vmax.f32 %v2606, %v2607
        %v2609 = vrot.slane %v2608, 1
        %v2610 = vmax.f32 %v2608, %v2609
        %v2611 = vsel %vm2358, %v2224, -inf
        %v2612 = vrot.slane %v2611, 4
        %v2613 = vmax.f32 %v2611, %v2612
        %v2614 = vrot.slane %v2613, 2
        %v2615 = vmax.f32 %v2613, %v2614
        %v2616 = vrot.slane %v2615, 1
        %v2617 = vmax.f32 %v2615, %v2616
        %v2618 = vsel %vm2358, %v2232, -inf
        %v2619 = vrot.slane %v2618, 4
        %v2620 = vmax.f32 %v2618, %v2619
        %v2621 = vrot.slane %v2620, 2
        %v2622 = vmax.f32 %v2620, %v2621
        %v2623 = vrot.slane %v2622, 1
        %v2624 = vmax.f32 %v2622, %v2623
        %v2625 = vsel %vm2358, %v2231, -inf
        %v2626 = vrot.slane %v2625, 4
        %v2627 = vmax.f32 %v2625, %v2626
        %v2628 = vrot.slane %v2627, 2
        %v2629 = vmax.f32 %v2627, %v2628
        %v2630 = vrot.slane %v2629, 1
        %v2631 = vmax.f32 %v2629, %v2630
        %v2632 = vsel %vm2358, %v2233, -inf
        %v2633 = vrot.slane %v2632, 4
        %v2634 = vmax.f32 %v2632, %v2633
        %v2635 = vrot.slane %v2634, 2
        %v2636 = vmax.f32 %v2634, %v2635
        %v2637 = vrot.slane %v2636, 1
        %v2638 = vmax.f32 %v2636, %v2637
        %v2639 = vsel %vm2358, %v2241, -inf
        %v2640 = vrot.slane %v2639, 4
        %v2641 = vmax.f32 %v2639, %v2640
        %v2642 = vrot.slane %v2641, 2
        %v2643 = vmax.f32 %v2641, %v2642
        %v2644 = vrot.slane %v2643, 1
        %v2645 = vmax.f32 %v2643, %v2644
        %v2646 = vsel %vm2358, %v2249, -inf
        %v2647 = vrot.slane %v2646, 4
        %v2648 = vmax.f32 %v2646, %v2647
        %v2649 = vrot.slane %v2648, 2
        %v2650 = vmax.f32 %v2648, %v2649
        %v2651 = vrot.slane %v2650, 1
        %v2652 = vmax.f32 %v2650, %v2651
        %v2653 = vsel %vm2358, %v2248, -inf
        %v2654 = vrot.slane %v2653, 4
        %v2655 = vmax.f32 %v2653, %v2654
        %v2656 = vrot.slane %v2655, 2
        %v2657 = vmax.f32 %v2655, %v2656
        %v2658 = vrot.slane %v2657, 1
        %v2659 = vmax.f32 %v2657, %v2658
        %v2660 = vsel %vm2358, %v2250, -inf
        %v2661 = vrot.slane %v2660, 4
        %v2662 = vmax.f32 %v2660, %v2661
        %v2663 = vrot.slane %v2662, 2
        %v2664 = vmax.f32 %v2662, %v2663
        %v2665 = vrot.slane %v2664, 1
        %v2666 = vmax.f32 %v2664, %v2665
        %v2667 = vsel %vm2358, %v2258, -inf
        %v2668 = vrot.slane %v2667, 4
        %v2669 = vmax.f32 %v2667, %v2668
        %v2670 = vrot.slane %v2669, 2
        %v2671 = vmax.f32 %v2669, %v2670
        %v2672 = vrot.slane %v2671, 1
        %v2673 = vmax.f32 %v2671, %v2672
        %v2674 = vsel %vm2358, %v2266, -inf
        %v2675 = vrot.slane %v2674, 4
        %v2676 = vmax.f32 %v2674, %v2675
        %v2677 = vrot.slane %v2676, 2
        %v2678 = vmax.f32 %v2676, %v2677
        %v2679 = vrot.slane %v2678, 1
        %v2680 = vmax.f32 %v2678, %v2679
        %v2681 = vsel %vm2358, %v2265, -inf
        %v2682 = vrot.slane %v2681, 4
        %v2683 = vmax.f32 %v2681, %v2682
        %v2684 = vrot.slane %v2683, 2
        %v2685 = vmax.f32 %v2683, %v2684
        %v2686 = vrot.slane %v2685, 1
        %v2687 = vmax.f32 %v2685, %v2686
        %v2688 = vsel %vm2358, %v2267, -inf
        %v2689 = vrot.slane %v2688, 4
        %v2690 = vmax.f32 %v2688, %v2689
        %v2691 = vrot.slane %v2690, 2
        %v2692 = vmax.f32 %v2690, %v2691
        %v2693 = vrot.slane %v2692, 1
        %v2694 = vmax.f32 %v2692, %v2693
        %v2695 = vsel %vm2358, %v2275, -inf
        %v2696 = vrot.slane %v2695, 4
        %v2697 = vmax.f32 %v2695, %v2696
        %v2698 = vrot.slane %v2697, 2
        %v2699 = vmax.f32 %v2697, %v2698
        %v2700 = vrot.slane %v2699, 1
        %v2701 = vmax.f32 %v2699, %v2700
        %v2702 = vsel %vm2358, %v2283, -inf
        %v2703 = vrot.slane %v2702, 4
        %v2704 = vmax.f32 %v2702, %v2703
        %v2705 = vrot.slane %v2704, 2
        %v2706 = vmax.f32 %v2704, %v2705
        %v2707 = vrot.slane %v2706, 1
        %v2708 = vmax.f32 %v2706, %v2707
        %v2709 = vsel %vm2358, %v2282, -inf
        %v2710 = vrot.slane %v2709, 4
        %v2711 = vmax.f32 %v2709, %v2710
        %v2712 = vrot.slane %v2711, 2
        %v2713 = vmax.f32 %v2711, %v2712
        %v2714 = vrot.slane %v2713, 1
        %v2715 = vmax.f32 %v2713, %v2714
        %v2716 = vsel %vm2358, %v2284, -inf
        %v2717 = vrot.slane %v2716, 4
        %v2718 = vmax.f32 %v2716, %v2717
        %v2719 = vrot.slane %v2718, 2
        %v2720 = vmax.f32 %v2718, %v2719
        %v2721 = vrot.slane %v2720, 1
        %v2722 = vmax.f32 %v2720, %v2721
        %v2723 = vsel %vm2358, %v2292, -inf
        %v2724 = vrot.slane %v2723, 4
        %v2725 = vmax.f32 %v2723, %v2724
        %v2726 = vrot.slane %v2725, 2
        %v2727 = vmax.f32 %v2725, %v2726
        %v2728 = vrot.slane %v2727, 1
        %v2729 = vmax.f32 %v2727, %v2728
        %v2730 = vsel %vm2358, %v2300, -inf
        %v2731 = vrot.slane %v2730, 4
        %v2732 = vmax.f32 %v2730, %v2731
        %v2733 = vrot.slane %v2732, 2
        %v2734 = vmax.f32 %v2732, %v2733
        %v2735 = vrot.slane %v2734, 1
        %v2736 = vmax.f32 %v2734, %v2735
        %v2737 = vsel %vm2358, %v2299, -inf
        %v2738 = vrot.slane %v2737, 4
        %v2739 = vmax.f32 %v2737, %v2738
        %v2740 = vrot.slane %v2739, 2
        %v2741 = vmax.f32 %v2739, %v2740
        %v2742 = vrot.slane %v2741, 1
        %v2743 = vmax.f32 %v2741, %v2742
        %v2744 = vsel %vm2358, %v2301, -inf
        %v2745 = vrot.slane %v2744, 4
        %v2746 = vmax.f32 %v2744, %v2745
        %v2747 = vrot.slane %v2746, 2
        %v2748 = vmax.f32 %v2746, %v2747
        %v2749 = vrot.slane %v2748, 1
        %v2750 = vmax.f32 %v2748, %v2749
        %v2751 = vld [vmem:[%s2] sm:$0xf]
        %v2752 = vld [vmem:[%s2 + $0x4] sm:$0xf]
        %v2753 = vld [vmem:[%s2 + $0x8] sm:$0xf]
        %v2754 = vpack.c.bf16 %v2365, %v2365
        %v2755 = vpack.c.bf16 %v2372, %v2372
        %v2756 = vpack.c.bf16 %v2379, %v2379
        %v2757 = vpack.c.bf16 %v2386, %v2386
        %v2758 = vpack.c.bf16 %v2393, %v2393
        %v2759 = vpack.c.bf16 %v2414, %v2414
        %v2760 = vpack.c.bf16 %v2421, %v2421
        %v2761 = vpack.c.bf16 %v2428, %v2428
        %v2762 = vpack.c.bf16 %v2435, %v2435
        %v2763 = vpack.c.bf16 %v2442, %v2442
        %v2764 = vpack.c.bf16 %v2463, %v2463
        %v2765 = vpack.c.bf16 %v2470, %v2470
        %v2766 = vpack.c.bf16 %v2477, %v2477
        %v2767 = vpack.c.bf16 %v2484, %v2484
        %v2768 = vpack.c.bf16 %v2491, %v2491
        %v2769 = vpack.c.bf16 %v2512, %v2512
        %v2770 = vpack.c.bf16 %v2519, %v2519
        %v2771 = vpack.c.bf16 %v2526, %v2526
        %v2772 = vpack.c.bf16 %v2533, %v2533
        %v2773 = vpack.c.bf16 %v2540, %v2540
        %v2774 = vpack.c.bf16 %v2561, %v2561
        %v2775 = vpack.c.bf16 %v2568, %v2568
        %v2776 = vpack.c.bf16 %v2575, %v2575
        %v2777 = vpack.c.bf16 %v2582, %v2582
        %v2778 = vpack.c.bf16 %v2589, %v2589
        %v2779 = vpack.c.bf16 %v2610, %v2610
        %v2780 = vpack.c.bf16 %v2617, %v2617
        %v2781 = vpack.c.bf16 %v2624, %v2624
        %v2782 = vpack.c.bf16 %v2631, %v2631
        %v2783 = vpack.c.bf16 %v2638, %v2638
        %v2784 = vpack.c.bf16 %v2659, %v2659
        %v2785 = vpack.c.bf16 %v2666, %v2666
        %v2786 = vpack.c.bf16 %v2673, %v2673
        %v2787 = vpack.c.bf16 %v2680, %v2680
        %v2788 = vpack.c.bf16 %v2687, %v2687
        %v2789 = vpack.c.bf16 %v2708, %v2708
        %v2790 = vpack.c.bf16 %v2715, %v2715
        %v2791 = vpack.c.bf16 %v2722, %v2722
        %v2792 = vpack.c.bf16 %v2729, %v2729
        %v2793 = vpack.c.bf16 %v2736, %v2736
        %v2794 = vpack.c.bf16 %v2400, %v2400
        %v2795 = vpack.c.bf16 %v2449, %v2449
        %v2796 = vpack.c.bf16 %v2498, %v2498
        %v2797 = vpack.c.bf16 %v2547, %v2547
        %v2798 = vpack.c.bf16 %v2596, %v2596
        %v2799 = vpack.c.bf16 %v2645, %v2645
        %v2800 = vpack.c.bf16 %v2694, %v2694
        %v2801 = vpack.c.bf16 %v2743, %v2743
        %v2842 = vunpack.c.l.b16 %v2755
        %v2843 = vunpack.c.l.b16 %v2756
        %v2844 = vunpack.c.l.b16 %v2757
        %v2845 = vunpack.c.l.b16 %v2758
        %v2846 = vunpack.c.l.b16 %v2794
        %v2847 = vunpack.c.l.b16 %v2760
        %v2848 = vunpack.c.l.b16 %v2761
        %v2849 = vunpack.c.l.b16 %v2762
        %v2850 = vunpack.c.l.b16 %v2763
        %v2851 = vunpack.c.l.b16 %v2795
        %v2852 = vunpack.c.l.b16 %v2765
        %v2853 = vunpack.c.l.b16 %v2766
        %v2854 = vunpack.c.l.b16 %v2767
        %v2855 = vunpack.c.l.b16 %v2768
        %v2856 = vunpack.c.l.b16 %v2796
        %v2857 = vunpack.c.l.b16 %v2770
        %v2858 = vunpack.c.l.b16 %v2771
        %v2859 = vunpack.c.l.b16 %v2772
        %v2860 = vunpack.c.l.b16 %v2773
        %v2861 = vunpack.c.l.b16 %v2797
        %v2862 = vunpack.c.l.b16 %v2775
        %v2863 = vunpack.c.l.b16 %v2776
        %v2864 = vunpack.c.l.b16 %v2777
        %v2865 = vunpack.c.l.b16 %v2778
        %v2866 = vunpack.c.l.b16 %v2798
        %v2867 = vunpack.c.l.b16 %v2780
        %v2868 = vunpack.c.l.b16 %v2781
        %v2869 = vunpack.c.l.b16 %v2782
        %v2870 = vunpack.c.l.b16 %v2783
        %v2871 = vunpack.c.l.b16 %v2799
        %v2872 = vunpack.c.l.b16 %v2785
        %v2873 = vunpack.c.l.b16 %v2786
        %v2874 = vunpack.c.l.b16 %v2787
        %v2875 = vunpack.c.l.b16 %v2788
        %v2876 = vunpack.c.l.b16 %v2800
        %v2877 = vunpack.c.l.b16 %v2790
        %v2878 = vunpack.c.l.b16 %v2791
        %v2879 = vunpack.c.l.b16 %v2792
        %v2880 = vunpack.c.l.b16 %v2793
        %v2881 = vunpack.c.l.b16 %v2801
        %vm2882 = vcmask 1041409
        %v2883 = vsel %vm2882, %v2843, %v2842
        %v2884 = vsel %vm957, %v2844, %v2883
        %vm2885 = vcmask 1043459
        %v2886 = vsel %vm2885, %v2845, %v2884
        %v2887 = vsel %vm959, %v2846, %v2886
        %vm2888 = vcmask 1045509
        %v2889 = vsel %vm2888, %v2847, %v2887
        %v2890 = vsel %vm961, %v2848, %v2889
        %vm2891 = vcmask 1047559
        %v2892 = vsel %vm2891, %v2849, %v2890
        %v2893 = vsel %vm2882, %v2851, %v2850
        %v2894 = vsel %vm957, %v2852, %v2893
        %v2895 = vsel %vm2885, %v2853, %v2894
        %v2896 = vsel %vm959, %v2854, %v2895
        %v2897 = vsel %vm2888, %v2855, %v2896
        %v2898 = vsel %vm961, %v2856, %v2897
        %v2899 = vsel %vm2891, %v2857, %v2898
        %v2900 = vsel %vm2882, %v2859, %v2858
        %v2901 = vsel %vm957, %v2860, %v2900
        %v2902 = vsel %vm2885, %v2861, %v2901
        %v2903 = vsel %vm959, %v2862, %v2902
        %v2904 = vsel %vm2888, %v2863, %v2903
        %v2905 = vsel %vm961, %v2864, %v2904
        %v2906 = vsel %vm2891, %v2865, %v2905
        %v2907 = vsel %vm2882, %v2867, %v2866
        %v2908 = vsel %vm957, %v2868, %v2907
        %v2909 = vsel %vm2885, %v2869, %v2908
        %v2910 = vsel %vm959, %v2870, %v2909
        %v2911 = vsel %vm2888, %v2871, %v2910
        %v2912 = vsel %vm961, %v2872, %v2911
        %v2913 = vsel %vm2891, %v2873, %v2912
        %v2914 = vsel %vm2882, %v2875, %v2874
        %v2915 = vsel %vm957, %v2876, %v2914
        %v2916 = vsel %vm2885, %v2877, %v2915
        %v2917 = vsel %vm959, %v2878, %v2916
        %v2918 = vsel %vm2888, %v2879, %v2917
        %v2919 = vsel %vm961, %v2880, %v2918
        %v2920 = vsel %vm2891, %v2881, %v2919
        %v2921 = vpack.c.b16 %v2899, %v2892
        %v2922 = vpack.c.b16 %v2913, %v2906
        %v2923 = vpack.c.b16 %v2920, %v2920
        %vm2924 = vcmask 64512
        %v2926 = vsel %vm2924, %v2921, 0
        %v2929 = vsel %vm2924, %v2922, 0
        %v2932 = vsel %vm2924, %v2923, 0
        %vm2934 = vcmask 1043456
        %v2936 = vsel %vm2934, %v2752, 0
        %2938 = vmatprep.subr.bf16.mxu0 0
        %2939 = vmatpush1.bf16.msra.mxu0 0
        %2940 = vmatprep.subr.bf16.mxu0 0
        %2941 = vmatpush1.bf16.msra.mxu0 0
        %2942 = vmatprep.subr.bf16.mxu0 0
        %2943 = vmatpush1.bf16.msra.mxu0 0
        %2944 = vmatprep.subr.bf16.mxu0 0
        %2945 = vmatpush1.bf16.msra.mxu0 0
        %2946 = vmatprep.subr.bf16.mxu0 0
        %2947 = vmatpush1.bf16.msra.mxu0 0
        %2948 = vmatprep.subr.bf16.mxu0 0
        %2949 = vmatpush1.bf16.msra.mxu0 0
        %2950 = vmatprep.subr.bf16.mxu0 0
        %2951 = vmatpush1.bf16.msra.mxu0 0
        %2952 = vmatprep.subr.bf16.mxu0 0
        %2953 = vmatpush1.bf16.msra.mxu0 %v2936
        %2954 = vmatprep.subr.bf16.mxu0 0
        %2955 = vmatpush2.bf16.msra.mxu0 0
        %2956 = vmatprep.subr.bf16.mxu0 0
        %2957 = vmatpush2.bf16.msra.mxu0 0
        %2958 = vmatprep.subr.bf16.mxu0 0
        %2959 = vmatpush2.bf16.msra.mxu0 0
        %2960 = vmatprep.subr.bf16.mxu0 0
        %2961 = vmatpush2.bf16.msra.mxu0 0
        %2962 = vmatprep.subr.bf16.mxu0 0
        %2963 = vmatpush2.bf16.msra.mxu0 0
        %2964 = vmatprep.subr.bf16.mxu0 0
        %2965 = vmatpush2.bf16.msra.mxu0 0
        %2966 = vmatprep.subr.bf16.mxu0 0
        %2967 = vmatpush2.bf16.msra.mxu0 0
        %2968 = vmatprep.subr.bf16.mxu0 0
        %2969 = vmatpush2.bf16.msra.mxu0 0
        %2970 = vmatprep.mubr.bf16.mxu0 0
        %2971 = vmatmul.mubr.bf16.gmra.mxu0 %v2926
        %v2972 = vpop.f32.mrf.mxu0
        %v2973 = vadd.f32 0.0, %v2972
        %v2974 = vpop.f32.mrf.mxu0
        %v2975 = vpop.f32.mrf.mxu0
        %v2976 = vadd.f32 0.0, %v2975
        %v2977 = vpop.f32.mrf.mxu0
        %2978 = vmatprep.mubr.bf16.mxu0 0
        %2979 = vmatmul.mubr.bf16.gmra.mxu0 %v2929
        %v2980 = vpop.f32.mrf.mxu0
        %v2981 = vadd.f32 0.0, %v2980
        %v2982 = vpop.f32.mrf.mxu0
        %v2983 = vpop.f32.mrf.mxu0
        %v2984 = vadd.f32 0.0, %v2983
        %v2985 = vpop.f32.mrf.mxu0
        %2986 = vmatprep.mubr.bf16.mxu0 0
        %2987 = vmatmul.mubr.bf16.gmra.mxu0 %v2932
        %v2988 = vpop.f32.mrf.mxu0
        %v2989 = vadd.f32 0.0, %v2988
        %v2990 = vpop.f32.mrf.mxu0
        %v2991 = vpop.f32.mrf.mxu0
        %v2992 = vpop.f32.mrf.mxu0
        %2993 = vdwg.mxu0
        %v3002 = vunpack.c.l.b16 %v2754
        %v3003 = vunpack.c.l.b16 %v2759
        %v3004 = vunpack.c.l.b16 %v2764
        %v3005 = vunpack.c.l.b16 %v2769
        %v3006 = vunpack.c.l.b16 %v2774
        %v3007 = vunpack.c.l.b16 %v2779
        %v3008 = vunpack.c.l.b16 %v2784
        %v3009 = vunpack.c.l.b16 %v2789
        %v3010 = vsel %vm2882, %v2842, %v3002
        %v3011 = vsel %vm957, %v2843, %v3010
        %v3012 = vsel %vm2885, %v2844, %v3011
        %v3013 = vsel %vm959, %v2845, %v3012
        %v3014 = vsel %vm2888, %v3003, %v3013
        %v3015 = vsel %vm961, %v2847, %v3014
        %v3016 = vsel %vm2891, %v2848, %v3015
        %v3017 = vsel %vm2882, %v2850, %v2849
        %v3018 = vsel %vm957, %v3004, %v3017
        %v3019 = vsel %vm2885, %v2852, %v3018
        %v3020 = vsel %vm959, %v2853, %v3019
        %v3021 = vsel %vm2888, %v2854, %v3020
        %v3022 = vsel %vm961, %v2855, %v3021
        %v3023 = vsel %vm2891, %v3005, %v3022
        %v3024 = vsel %vm2882, %v2858, %v2857
        %v3025 = vsel %vm957, %v2859, %v3024
        %v3026 = vsel %vm2885, %v2860, %v3025
        %v3027 = vsel %vm959, %v3006, %v3026
        %v3028 = vsel %vm2888, %v2862, %v3027
        %v3029 = vsel %vm961, %v2863, %v3028
        %v3030 = vsel %vm2891, %v2864, %v3029
        %v3031 = vsel %vm2882, %v3007, %v2865
        %v3032 = vsel %vm957, %v2867, %v3031
        %v3033 = vsel %vm2885, %v2868, %v3032
        %v3034 = vsel %vm959, %v2869, %v3033
        %v3035 = vsel %vm2888, %v2870, %v3034
        %v3036 = vsel %vm961, %v3008, %v3035
        %v3037 = vsel %vm2891, %v2872, %v3036
        %v3038 = vsel %vm2882, %v2874, %v2873
        %v3039 = vsel %vm957, %v2875, %v3038
        %v3040 = vsel %vm2885, %v3009, %v3039
        %v3041 = vsel %vm959, %v2877, %v3040
        %v3042 = vsel %vm2888, %v2878, %v3041
        %v3043 = vsel %vm961, %v2879, %v3042
        %v3044 = vsel %vm2891, %v2880, %v3043
        %v3045 = vpack.c.b16 %v3023, %v3016
        %v3046 = vpack.c.b16 %v3037, %v3030
        %v3047 = vpack.c.b16 %v3044, %v3044
        %v3049 = vsel %vm2924, %v3045, 0
        %v3052 = vsel %vm2924, %v3046, 0
        %v3055 = vsel %vm2924, %v3047, 0
        %v3058 = vsel %vm2934, %v2751, 0
        %3060 = vmatprep.subr.bf16.mxu0 0
        %3061 = vmatpush1.bf16.msra.mxu0 0
        %3062 = vmatprep.subr.bf16.mxu0 0
        %3063 = vmatpush1.bf16.msra.mxu0 0
        %3064 = vmatprep.subr.bf16.mxu0 0
        %3065 = vmatpush1.bf16.msra.mxu0 0
        %3066 = vmatprep.subr.bf16.mxu0 0
        %3067 = vmatpush1.bf16.msra.mxu0 0
        %3068 = vmatprep.subr.bf16.mxu0 0
        %3069 = vmatpush1.bf16.msra.mxu0 0
        %3070 = vmatprep.subr.bf16.mxu0 0
        %3071 = vmatpush1.bf16.msra.mxu0 0
        %3072 = vmatprep.subr.bf16.mxu0 0
        %3073 = vmatpush1.bf16.msra.mxu0 0
        %3074 = vmatprep.subr.bf16.mxu0 0
        %3075 = vmatpush1.bf16.msra.mxu0 %v3058
        %3076 = vmatprep.subr.bf16.mxu0 0
        %3077 = vmatpush2.bf16.msra.mxu0 0
        %3078 = vmatprep.subr.bf16.mxu0 0
        %3079 = vmatpush2.bf16.msra.mxu0 0
        %3080 = vmatprep.subr.bf16.mxu0 0
        %3081 = vmatpush2.bf16.msra.mxu0 0
        %3082 = vmatprep.subr.bf16.mxu0 0
        %3083 = vmatpush2.bf16.msra.mxu0 0
        %3084 = vmatprep.subr.bf16.mxu0 0
        %3085 = vmatpush2.bf16.msra.mxu0 0
        %3086 = vmatprep.subr.bf16.mxu0 0
        %3087 = vmatpush2.bf16.msra.mxu0 0
        %3088 = vmatprep.subr.bf16.mxu0 0
        %3089 = vmatpush2.bf16.msra.mxu0 0
        %3090 = vmatprep.subr.bf16.mxu0 0
        %3091 = vmatpush2.bf16.msra.mxu0 0
        %3092 = vmatprep.mubr.bf16.mxu0 0
        %3093 = vmatmul.mubr.bf16.gmra.mxu0 %v3049
        %v3094 = vpop.f32.mrf.mxu0
        %v3095 = vadd.f32 %v2973, %v3094
        %v3096 = vpop.f32.mrf.mxu0
        %v3097 = vpop.f32.mrf.mxu0
        %v3098 = vadd.f32 %v2976, %v3097
        %v3099 = vpop.f32.mrf.mxu0
        %3100 = vmatprep.mubr.bf16.mxu0 0
        %3101 = vmatmul.mubr.bf16.gmra.mxu0 %v3052
        %v3102 = vpop.f32.mrf.mxu0
        %v3103 = vadd.f32 %v2981, %v3102
        %v3104 = vpop.f32.mrf.mxu0
        %v3105 = vpop.f32.mrf.mxu0
        %v3106 = vadd.f32 %v2984, %v3105
        %v3107 = vpop.f32.mrf.mxu0
        %3108 = vmatprep.mubr.bf16.mxu0 0
        %3109 = vmatmul.mubr.bf16.gmra.mxu0 %v3055
        %v3110 = vpop.f32.mrf.mxu0
        %v3111 = vadd.f32 %v2989, %v3110
        %v3112 = vpop.f32.mrf.mxu0
        %v3113 = vpop.f32.mrf.mxu0
        %v3114 = vpop.f32.mrf.mxu0
        %3115 = vdwg.mxu0
        %v3116 = vpack.c.bf16 %v2407, %v2407
        %v3117 = vpack.c.bf16 %v2456, %v2456
        %v3118 = vpack.c.bf16 %v2505, %v2505
        %v3119 = vpack.c.bf16 %v2554, %v2554
        %v3120 = vpack.c.bf16 %v2603, %v2603
        %v3121 = vpack.c.bf16 %v2652, %v2652
        %v3122 = vpack.c.bf16 %v2701, %v2701
        %v3123 = vpack.c.bf16 %v2750, %v2750
        %v3132 = vunpack.c.l.b16 %v3116
        %v3133 = vunpack.c.l.b16 %v3117
        %v3134 = vunpack.c.l.b16 %v3118
        %v3135 = vunpack.c.l.b16 %v3119
        %v3136 = vunpack.c.l.b16 %v3120
        %v3137 = vunpack.c.l.b16 %v3121
        %v3138 = vunpack.c.l.b16 %v3122
        %v3139 = vunpack.c.l.b16 %v3123
        %v3140 = vsel %vm2882, %v2844, %v2843
        %v3141 = vsel %vm957, %v2845, %v3140
        %v3142 = vsel %vm2885, %v2846, %v3141
        %v3143 = vsel %vm959, %v3132, %v3142
        %v3144 = vsel %vm2888, %v2848, %v3143
        %v3145 = vsel %vm961, %v2849, %v3144
        %v3146 = vsel %vm2891, %v2850, %v3145
        %v3147 = vsel %vm2882, %v3133, %v2851
        %v3148 = vsel %vm957, %v2853, %v3147
        %v3149 = vsel %vm2885, %v2854, %v3148
        %v3150 = vsel %vm959, %v2855, %v3149
        %v3151 = vsel %vm2888, %v2856, %v3150
        %v3152 = vsel %vm961, %v3134, %v3151
        %v3153 = vsel %vm2891, %v2858, %v3152
        %v3154 = vsel %vm2882, %v2860, %v2859
        %v3155 = vsel %vm957, %v2861, %v3154
        %v3156 = vsel %vm2885, %v3135, %v3155
        %v3157 = vsel %vm959, %v2863, %v3156
        %v3158 = vsel %vm2888, %v2864, %v3157
        %v3159 = vsel %vm961, %v2865, %v3158
        %v3160 = vsel %vm2891, %v2866, %v3159
        %v3161 = vsel %vm2882, %v2868, %v3136
        %v3162 = vsel %vm957, %v2869, %v3161
        %v3163 = vsel %vm2885, %v2870, %v3162
        %v3164 = vsel %vm959, %v2871, %v3163
        %v3165 = vsel %vm2888, %v3137, %v3164
        %v3166 = vsel %vm961, %v2873, %v3165
        %v3167 = vsel %vm2891, %v2874, %v3166
        %v3168 = vsel %vm2882, %v2876, %v2875
        %v3169 = vsel %vm957, %v3138, %v3168
        %v3170 = vsel %vm2885, %v2878, %v3169
        %v3171 = vsel %vm959, %v2879, %v3170
        %v3172 = vsel %vm2888, %v2880, %v3171
        %v3173 = vsel %vm961, %v2881, %v3172
        %v3174 = vsel %vm2891, %v3139, %v3173
        %v3175 = vpack.c.b16 %v3153, %v3146
        %v3176 = vpack.c.b16 %v3167, %v3160
        %v3177 = vpack.c.b16 %v3174, %v3174
        %v3179 = vsel %vm2924, %v3175, 0
        %v3182 = vsel %vm2924, %v3176, 0
        %v3185 = vsel %vm2924, %v3177, 0
        %v3188 = vsel %vm2934, %v2753, 0
        %3190 = vmatprep.subr.bf16.mxu0 0
        %3191 = vmatpush1.bf16.msra.mxu0 0
        %3192 = vmatprep.subr.bf16.mxu0 0
        %3193 = vmatpush1.bf16.msra.mxu0 0
        %3194 = vmatprep.subr.bf16.mxu0 0
        %3195 = vmatpush1.bf16.msra.mxu0 0
        %3196 = vmatprep.subr.bf16.mxu0 0
        %3197 = vmatpush1.bf16.msra.mxu0 0
        %3198 = vmatprep.subr.bf16.mxu0 0
        %3199 = vmatpush1.bf16.msra.mxu0 0
        %3200 = vmatprep.subr.bf16.mxu0 0
        %3201 = vmatpush1.bf16.msra.mxu0 0
        %3202 = vmatprep.subr.bf16.mxu0 0
        %3203 = vmatpush1.bf16.msra.mxu0 0
        %3204 = vmatprep.subr.bf16.mxu0 0
        %3205 = vmatpush1.bf16.msra.mxu0 %v3188
        %3206 = vmatprep.subr.bf16.mxu0 0
        %3207 = vmatpush2.bf16.msra.mxu0 0
        %3208 = vmatprep.subr.bf16.mxu0 0
        %3209 = vmatpush2.bf16.msra.mxu0 0
        %3210 = vmatprep.subr.bf16.mxu0 0
        %3211 = vmatpush2.bf16.msra.mxu0 0
        %3212 = vmatprep.subr.bf16.mxu0 0
        %3213 = vmatpush2.bf16.msra.mxu0 0
        %3214 = vmatprep.subr.bf16.mxu0 0
        %3215 = vmatpush2.bf16.msra.mxu0 0
        %3216 = vmatprep.subr.bf16.mxu0 0
        %3217 = vmatpush2.bf16.msra.mxu0 0
        %3218 = vmatprep.subr.bf16.mxu0 0
        %3219 = vmatpush2.bf16.msra.mxu0 0
        %3220 = vmatprep.subr.bf16.mxu0 0
        %3221 = vmatpush2.bf16.msra.mxu0 0
        %3222 = vmatprep.mubr.bf16.mxu0 0
        %3223 = vmatmul.mubr.bf16.gmra.mxu0 %v3179
        %v3224 = vpop.f32.mrf.mxu0
        %v3225 = vadd.f32 0.0, %v3224
        %v3226 = vpop.f32.mrf.mxu0
        %v3227 = vpop.f32.mrf.mxu0
        %v3228 = vadd.f32 0.0, %v3227
        %v3229 = vpop.f32.mrf.mxu0
        %3230 = vmatprep.mubr.bf16.mxu0 0
        %3231 = vmatmul.mubr.bf16.gmra.mxu0 %v3182
        %v3232 = vpop.f32.mrf.mxu0
        %v3233 = vadd.f32 0.0, %v3232
        %v3234 = vpop.f32.mrf.mxu0
        %v3235 = vpop.f32.mrf.mxu0
        %v3236 = vadd.f32 0.0, %v3235
        %v3237 = vpop.f32.mrf.mxu0
        %3238 = vmatprep.mubr.bf16.mxu0 0
        %3239 = vmatmul.mubr.bf16.gmra.mxu0 %v3185
        %v3240 = vpop.f32.mrf.mxu0
        %v3241 = vadd.f32 0.0, %v3240
        %v3242 = vpop.f32.mrf.mxu0
        %v3243 = vpop.f32.mrf.mxu0
        %v3244 = vpop.f32.mrf.mxu0
        %3245 = vdwg.mxu0
        %v3246 = vadd.f32 %v3095, %v3225
        %v3247 = vadd.f32 %v3098, %v3228
        %v3248 = vadd.f32 %v3103, %v3233
        %v3249 = vadd.f32 %v3106, %v3236
        %v3250 = vadd.f32 %v3111, %v3241
        %v3251 = vld [vmem:[#allocation2] sm:$0x1]
        %v3253 = vlaneseq
        %v3254 = vshrl.u32 %v3253, 7
        %v3255 = vsub.s32 0, %v3254
        %v3256 = vrot.slane %v3251, %v3255
        %v3258 = vadd.f32 %v3246, %v3256
        %v3259 = vadd.f32 %v3247, %v3256
        %v3260 = vadd.f32 %v3248, %v3256
        %v3261 = vadd.f32 %v3249, %v3256
        %v3262 = vadd.f32 %v3250, %v3256
        %v3263 = vmax.f32 %v3258, 0.0
        %v3264 = vmax.f32 %v3259, 0.0
        %v3265 = vmax.f32 %v3260, 0.0
        %v3266 = vmax.f32 %v3261, 0.0
        %v3267 = vmax.f32 %v3262, 0.0
        %v3273 = vcombine.high %v3263, %v3263
        %v3275 = vunpack.c.l.s4 1966171168
        %v3276 = vunpack.c.0.s8 %v3275
        %v3277 = vlaneseq
        %v3278 = vshrl.u32 %v3277, 7
        %v3279 = vsub.s32 %v3276, %v3278
        %v3280 = vrot.slane %v3263, %v3279
        %v3282 = vunpack.c.l.s4 1966171168
        %v3283 = vunpack.c.0.s8 %v3282
        %v3284 = vlaneseq
        %v3285 = vshrl.u32 %v3284, 7
        %v3286 = vsub.s32 %v3283, %v3285
        %v3287 = vrot.slane %v3273, %v3286
        %v3288 = vcombine.high %v3280, %v3280
        %v3289 = vcombine.high %v3287, %v3287
        %v3291 = vunpack.c.l.s4 1966171168
        %v3292 = vunpack.c.0.s8 %v3291
        %v3293 = vlaneseq
        %v3294 = vshrl.u32 %v3293, 7
        %v3295 = vsub.s32 %v3292, %v3294
        %v3296 = vrot.slane %v3280, %v3295
        %v3298 = vunpack.c.l.s4 1966171168
        %v3299 = vunpack.c.0.s8 %v3298
        %v3300 = vlaneseq
        %v3301 = vshrl.u32 %v3300, 7
        %v3302 = vsub.s32 %v3299, %v3301
        %v3303 = vrot.slane %v3287, %v3302
        %v3305 = vunpack.c.l.s4 1966171168
        %v3306 = vunpack.c.0.s8 %v3305
        %v3307 = vlaneseq
        %v3308 = vshrl.u32 %v3307, 7
        %v3309 = vsub.s32 %v3306, %v3308
        %v3310 = vrot.slane %v3288, %v3309
        %v3312 = vunpack.c.l.s4 1966171168
        %v3313 = vunpack.c.0.s8 %v3312
        %v3314 = vlaneseq
        %v3315 = vshrl.u32 %v3314, 7
        %v3316 = vsub.s32 %v3313, %v3315
        %v3317 = vrot.slane %v3289, %v3316
        %v3318 = vcombine.high %v3296, %v3296
        %v3319 = vcombine.high %v3303, %v3303
        %v3320 = vcombine.high %v3310, %v3310
        %v3321 = vcombine.high %v3317, %v3317
        %v3322 = vcombine.high %v3264, %v3264
        %v3324 = vunpack.c.l.s4 1966171168
        %v3325 = vunpack.c.0.s8 %v3324
        %v3326 = vlaneseq
        %v3327 = vshrl.u32 %v3326, 7
        %v3328 = vsub.s32 %v3325, %v3327
        %v3329 = vrot.slane %v3264, %v3328
        %v3331 = vunpack.c.l.s4 1966171168
        %v3332 = vunpack.c.0.s8 %v3331
        %v3333 = vlaneseq
        %v3334 = vshrl.u32 %v3333, 7
        %v3335 = vsub.s32 %v3332, %v3334
        %v3336 = vrot.slane %v3322, %v3335
        %v3337 = vcombine.high %v3329, %v3329
        %v3338 = vcombine.high %v3336, %v3336
        %v3340 = vunpack.c.l.s4 1966171168
        %v3341 = vunpack.c.0.s8 %v3340
        %v3342 = vlaneseq
        %v3343 = vshrl.u32 %v3342, 7
        %v3344 = vsub.s32 %v3341, %v3343
        %v3345 = vrot.slane %v3329, %v3344
        %v3347 = vunpack.c.l.s4 1966171168
        %v3348 = vunpack.c.0.s8 %v3347
        %v3349 = vlaneseq
        %v3350 = vshrl.u32 %v3349, 7
        %v3351 = vsub.s32 %v3348, %v3350
        %v3352 = vrot.slane %v3336, %v3351
        %v3354 = vunpack.c.l.s4 1966171168
        %v3355 = vunpack.c.0.s8 %v3354
        %v3356 = vlaneseq
        %v3357 = vshrl.u32 %v3356, 7
        %v3358 = vsub.s32 %v3355, %v3357
        %v3359 = vrot.slane %v3337, %v3358
        %v3361 = vunpack.c.l.s4 1966171168
        %v3362 = vunpack.c.0.s8 %v3361
        %v3363 = vlaneseq
        %v3364 = vshrl.u32 %v3363, 7
        %v3365 = vsub.s32 %v3362, %v3364
        %v3366 = vrot.slane %v3338, %v3365
        %v3367 = vcombine.high %v3345, %v3345
        %v3368 = vcombine.high %v3352, %v3352
        %v3369 = vcombine.high %v3359, %v3359
        %v3370 = vcombine.high %v3366, %v3366
        %v3371 = vcombine.high %v3265, %v3265
        %v3373 = vunpack.c.l.s4 1966171168
        %v3374 = vunpack.c.0.s8 %v3373
        %v3375 = vlaneseq
        %v3376 = vshrl.u32 %v3375, 7
        %v3377 = vsub.s32 %v3374, %v3376
        %v3378 = vrot.slane %v3265, %v3377
        %v3380 = vunpack.c.l.s4 1966171168
        %v3381 = vunpack.c.0.s8 %v3380
        %v3382 = vlaneseq
        %v3383 = vshrl.u32 %v3382, 7
        %v3384 = vsub.s32 %v3381, %v3383
        %v3385 = vrot.slane %v3371, %v3384
        %v3386 = vcombine.high %v3378, %v3378
        %v3387 = vcombine.high %v3385, %v3385
        %v3389 = vunpack.c.l.s4 1966171168
        %v3390 = vunpack.c.0.s8 %v3389
        %v3391 = vlaneseq
        %v3392 = vshrl.u32 %v3391, 7
        %v3393 = vsub.s32 %v3390, %v3392
        %v3394 = vrot.slane %v3378, %v3393
        %v3396 = vunpack.c.l.s4 1966171168
        %v3397 = vunpack.c.0.s8 %v3396
        %v3398 = vlaneseq
        %v3399 = vshrl.u32 %v3398, 7
        %v3400 = vsub.s32 %v3397, %v3399
        %v3401 = vrot.slane %v3385, %v3400
        %v3403 = vunpack.c.l.s4 1966171168
        %v3404 = vunpack.c.0.s8 %v3403
        %v3405 = vlaneseq
        %v3406 = vshrl.u32 %v3405, 7
        %v3407 = vsub.s32 %v3404, %v3406
        %v3408 = vrot.slane %v3386, %v3407
        %v3410 = vunpack.c.l.s4 1966171168
        %v3411 = vunpack.c.0.s8 %v3410
        %v3412 = vlaneseq
        %v3413 = vshrl.u32 %v3412, 7
        %v3414 = vsub.s32 %v3411, %v3413
        %v3415 = vrot.slane %v3387, %v3414
        %v3416 = vcombine.high %v3394, %v3394
        %v3417 = vcombine.high %v3401, %v3401
        %v3418 = vcombine.high %v3408, %v3408
        %v3419 = vcombine.high %v3415, %v3415
        %v3420 = vcombine.high %v3266, %v3266
        %v3422 = vunpack.c.l.s4 1966171168
        %v3423 = vunpack.c.0.s8 %v3422
        %v3424 = vlaneseq
        %v3425 = vshrl.u32 %v3424, 7
        %v3426 = vsub.s32 %v3423, %v3425
        %v3427 = vrot.slane %v3266, %v3426
        %v3429 = vunpack.c.l.s4 1966171168
        %v3430 = vunpack.c.0.s8 %v3429
        %v3431 = vlaneseq
        %v3432 = vshrl.u32 %v3431, 7
        %v3433 = vsub.s32 %v3430, %v3432
        %v3434 = vrot.slane %v3420, %v3433
        %v3435 = vcombine.high %v3427, %v3427
        %v3436 = vcombine.high %v3434, %v3434
        %v3438 = vunpack.c.l.s4 1966171168
        %v3439 = vunpack.c.0.s8 %v3438
        %v3440 = vlaneseq
        %v3441 = vshrl.u32 %v3440, 7
        %v3442 = vsub.s32 %v3439, %v3441
        %v3443 = vrot.slane %v3427, %v3442
        %v3445 = vunpack.c.l.s4 1966171168
        %v3446 = vunpack.c.0.s8 %v3445
        %v3447 = vlaneseq
        %v3448 = vshrl.u32 %v3447, 7
        %v3449 = vsub.s32 %v3446, %v3448
        %v3450 = vrot.slane %v3434, %v3449
        %v3452 = vunpack.c.l.s4 1966171168
        %v3453 = vunpack.c.0.s8 %v3452
        %v3454 = vlaneseq
        %v3455 = vshrl.u32 %v3454, 7
        %v3456 = vsub.s32 %v3453, %v3455
        %v3457 = vrot.slane %v3435, %v3456
        %v3459 = vunpack.c.l.s4 1966171168
        %v3460 = vunpack.c.0.s8 %v3459
        %v3461 = vlaneseq
        %v3462 = vshrl.u32 %v3461, 7
        %v3463 = vsub.s32 %v3460, %v3462
        %v3464 = vrot.slane %v3436, %v3463
        %v3465 = vcombine.high %v3443, %v3443
        %v3466 = vcombine.high %v3450, %v3450
        %v3467 = vcombine.high %v3457, %v3457
        %v3468 = vcombine.high %v3464, %v3464
        %v3469 = vcombine.high %v3267, %v3267
        %v3471 = vunpack.c.l.s4 1966171168
        %v3472 = vunpack.c.0.s8 %v3471
        %v3473 = vlaneseq
        %v3474 = vshrl.u32 %v3473, 7
        %v3475 = vsub.s32 %v3472, %v3474
        %v3476 = vrot.slane %v3267, %v3475
        %v3478 = vunpack.c.l.s4 1966171168
        %v3479 = vunpack.c.0.s8 %v3478
        %v3480 = vlaneseq
        %v3481 = vshrl.u32 %v3480, 7
        %v3482 = vsub.s32 %v3479, %v3481
        %v3483 = vrot.slane %v3469, %v3482
        %v3484 = vcombine.high %v3476, %v3476
        %v3485 = vcombine.high %v3483, %v3483
        %v3487 = vunpack.c.l.s4 1966171168
        %v3488 = vunpack.c.0.s8 %v3487
        %v3489 = vlaneseq
        %v3490 = vshrl.u32 %v3489, 7
        %v3491 = vsub.s32 %v3488, %v3490
        %v3492 = vrot.slane %v3476, %v3491
        %v3494 = vunpack.c.l.s4 1966171168
        %v3495 = vunpack.c.0.s8 %v3494
        %v3496 = vlaneseq
        %v3497 = vshrl.u32 %v3496, 7
        %v3498 = vsub.s32 %v3495, %v3497
        %v3499 = vrot.slane %v3483, %v3498
        %v3501 = vunpack.c.l.s4 1966171168
        %v3502 = vunpack.c.0.s8 %v3501
        %v3503 = vlaneseq
        %v3504 = vshrl.u32 %v3503, 7
        %v3505 = vsub.s32 %v3502, %v3504
        %v3506 = vrot.slane %v3484, %v3505
        %v3508 = vunpack.c.l.s4 1966171168
        %v3509 = vunpack.c.0.s8 %v3508
        %v3510 = vlaneseq
        %v3511 = vshrl.u32 %v3510, 7
        %v3512 = vsub.s32 %v3509, %v3511
        %v3513 = vrot.slane %v3485, %v3512
        %v3514 = vcombine.high %v3492, %v3492
        %v3515 = vcombine.high %v3499, %v3499
        %v3516 = vcombine.high %v3506, %v3506
        %v3517 = vcombine.high %v3513, %v3513
        %v3558 = vadd.f32 %v3296, 0.0
        %v3559 = vadd.f32 %v3310, 0.0
        %v3560 = vadd.f32 %v3318, 0.0
        %v3561 = vadd.f32 %v3320, 0.0
        %v3562 = vadd.f32 %v3303, 0.0
        %v3563 = vadd.f32 %v3317, 0.0
        %v3564 = vadd.f32 %v3319, 0.0
        %v3565 = vadd.f32 %v3321, 0.0
        %v3566 = vadd.f32 %v3345, 0.0
        %v3567 = vadd.f32 %v3359, 0.0
        %v3568 = vadd.f32 %v3367, 0.0
        %v3569 = vadd.f32 %v3369, 0.0
        %v3570 = vadd.f32 %v3352, 0.0
        %v3571 = vadd.f32 %v3366, 0.0
        %v3572 = vadd.f32 %v3368, 0.0
        %v3573 = vadd.f32 %v3370, 0.0
        %v3574 = vadd.f32 %v3394, 0.0
        %v3575 = vadd.f32 %v3408, 0.0
        %v3576 = vadd.f32 %v3416, 0.0
        %v3577 = vadd.f32 %v3418, 0.0
        %v3578 = vadd.f32 %v3401, 0.0
        %v3579 = vadd.f32 %v3415, 0.0
        %v3580 = vadd.f32 %v3417, 0.0
        %v3581 = vadd.f32 %v3419, 0.0
        %v3582 = vadd.f32 %v3443, 0.0
        %v3583 = vadd.f32 %v3457, 0.0
        %v3584 = vadd.f32 %v3465, 0.0
        %v3585 = vadd.f32 %v3467, 0.0
        %v3586 = vadd.f32 %v3450, 0.0
        %v3587 = vadd.f32 %v3464, 0.0
        %v3588 = vadd.f32 %v3466, 0.0
        %v3589 = vadd.f32 %v3468, 0.0
        %v3590 = vadd.f32 %v3492, 0.0
        %v3591 = vadd.f32 %v3506, 0.0
        %v3592 = vadd.f32 %v3514, 0.0
        %v3593 = vadd.f32 %v3516, 0.0
        %v3594 = vadd.f32 %v3499, 0.0
        %v3595 = vadd.f32 %v3513, 0.0
        %v3596 = vadd.f32 %v3515, 0.0
        %v3597 = vadd.f32 %v3517, 0.0
        %v3638 = vcombine.low %v3558, %v3559
        %v3639 = vcombine.low %v3560, %v3561
        %v3641 = vunpack.c.l.s4 1966171168
        %v3642 = vunpack.c.0.s8 %v3641
        %v3643 = vlaneseq
        %v3644 = vshrl.u32 %v3643, 7
        %v3645 = vsub.s32 %v3642, %v3644
        %v3646 = vrot.slane %v3638, %v3645
        %v3648 = vunpack.c.l.s4 1966171168
        %v3649 = vunpack.c.0.s8 %v3648
        %v3650 = vlaneseq
        %v3651 = vshrl.u32 %v3650, 7
        %v3652 = vsub.s32 %v3649, %v3651
        %v3653 = vrot.slane %v3639, %v3652
        %v3655 = vunpack.c.l.s4 1966171168
        %v3656 = vunpack.c.0.s8 %v3655
        %v3657 = vlaneseq
        %v3658 = vshrl.u32 %v3657, 7
        %v3659 = vsub.s32 %v3656, %v3658
        %v3660 = vrot.slane %v3562, %v3659
        %v3661 = vcombine.low %v3646, %v3653
        %v3663 = vunpack.c.l.s4 1966171168
        %v3664 = vunpack.c.0.s8 %v3663
        %v3665 = vlaneseq
        %v3666 = vshrl.u32 %v3665, 7
        %v3667 = vsub.s32 %v3664, %v3666
        %v3668 = vrot.slane %v3661, %v3667
        %v3670 = vunpack.c.l.s4 1966171168
        %v3671 = vunpack.c.0.s8 %v3670
        %v3672 = vlaneseq
        %v3673 = vshrl.u32 %v3672, 7
        %v3674 = vsub.s32 %v3671, %v3673
        %v3675 = vrot.slane %v3660, %v3674
        %v3676 = vcombine.low %v3668, %v3675
        %v3677 = vcombine.low %v3563, %v3564
        %v3678 = vcombine.low %v3565, %v3566
        %v3680 = vunpack.c.l.s4 1966171168
        %v3681 = vunpack.c.0.s8 %v3680
        %v3682 = vlaneseq
        %v3683 = vshrl.u32 %v3682, 7
        %v3684 = vsub.s32 %v3681, %v3683
        %v3685 = vrot.slane %v3677, %v3684
        %v3687 = vunpack.c.l.s4 1966171168
        %v3688 = vunpack.c.0.s8 %v3687
        %v3689 = vlaneseq
        %v3690 = vshrl.u32 %v3689, 7
        %v3691 = vsub.s32 %v3688, %v3690
        %v3692 = vrot.slane %v3678, %v3691
        %v3694 = vunpack.c.l.s4 1966171168
        %v3695 = vunpack.c.0.s8 %v3694
        %v3696 = vlaneseq
        %v3697 = vshrl.u32 %v3696, 7
        %v3698 = vsub.s32 %v3695, %v3697
        %v3699 = vrot.slane %v3567, %v3698
        %v3700 = vcombine.low %v3685, %v3692
        %v3702 = vunpack.c.l.s4 1966171168
        %v3703 = vunpack.c.0.s8 %v3702
        %v3704 = vlaneseq
        %v3705 = vshrl.u32 %v3704, 7
        %v3706 = vsub.s32 %v3703, %v3705
        %v3707 = vrot.slane %v3700, %v3706
        %v3709 = vunpack.c.l.s4 1966171168
        %v3710 = vunpack.c.0.s8 %v3709
        %v3711 = vlaneseq
        %v3712 = vshrl.u32 %v3711, 7
        %v3713 = vsub.s32 %v3710, %v3712
        %v3714 = vrot.slane %v3699, %v3713
        %v3715 = vcombine.low %v3707, %v3714
        %v3716 = vcombine.low %v3568, %v3569
        %v3717 = vcombine.low %v3570, %v3571
        %v3719 = vunpack.c.l.s4 1966171168
        %v3720 = vunpack.c.0.s8 %v3719
        %v3721 = vlaneseq
        %v3722 = vshrl.u32 %v3721, 7
        %v3723 = vsub.s32 %v3720, %v3722
        %v3724 = vrot.slane %v3716, %v3723
        %v3726 = vunpack.c.l.s4 1966171168
        %v3727 = vunpack.c.0.s8 %v3726
        %v3728 = vlaneseq
        %v3729 = vshrl.u32 %v3728, 7
        %v3730 = vsub.s32 %v3727, %v3729
        %v3731 = vrot.slane %v3717, %v3730
        %v3733 = vunpack.c.l.s4 1966171168
        %v3734 = vunpack.c.0.s8 %v3733
        %v3735 = vlaneseq
        %v3736 = vshrl.u32 %v3735, 7
        %v3737 = vsub.s32 %v3734, %v3736
        %v3738 = vrot.slane %v3572, %v3737
        %v3739 = vcombine.low %v3724, %v3731
        %v3741 = vunpack.c.l.s4 1966171168
        %v3742 = vunpack.c.0.s8 %v3741
        %v3743 = vlaneseq
        %v3744 = vshrl.u32 %v3743, 7
        %v3745 = vsub.s32 %v3742, %v3744
        %v3746 = vrot.slane %v3739, %v3745
        %v3748 = vunpack.c.l.s4 1966171168
        %v3749 = vunpack.c.0.s8 %v3748
        %v3750 = vlaneseq
        %v3751 = vshrl.u32 %v3750, 7
        %v3752 = vsub.s32 %v3749, %v3751
        %v3753 = vrot.slane %v3738, %v3752
        %v3754 = vcombine.low %v3746, %v3753
        %v3755 = vcombine.low %v3573, %v3574
        %v3756 = vcombine.low %v3575, %v3576
        %v3758 = vunpack.c.l.s4 1966171168
        %v3759 = vunpack.c.0.s8 %v3758
        %v3760 = vlaneseq
        %v3761 = vshrl.u32 %v3760, 7
        %v3762 = vsub.s32 %v3759, %v3761
        %v3763 = vrot.slane %v3755, %v3762
        %v3765 = vunpack.c.l.s4 1966171168
        %v3766 = vunpack.c.0.s8 %v3765
        %v3767 = vlaneseq
        %v3768 = vshrl.u32 %v3767, 7
        %v3769 = vsub.s32 %v3766, %v3768
        %v3770 = vrot.slane %v3756, %v3769
        %v3772 = vunpack.c.l.s4 1966171168
        %v3773 = vunpack.c.0.s8 %v3772
        %v3774 = vlaneseq
        %v3775 = vshrl.u32 %v3774, 7
        %v3776 = vsub.s32 %v3773, %v3775
        %v3777 = vrot.slane %v3577, %v3776
        %v3778 = vcombine.low %v3763, %v3770
        %v3780 = vunpack.c.l.s4 1966171168
        %v3781 = vunpack.c.0.s8 %v3780
        %v3782 = vlaneseq
        %v3783 = vshrl.u32 %v3782, 7
        %v3784 = vsub.s32 %v3781, %v3783
        %v3785 = vrot.slane %v3778, %v3784
        %v3787 = vunpack.c.l.s4 1966171168
        %v3788 = vunpack.c.0.s8 %v3787
        %v3789 = vlaneseq
        %v3790 = vshrl.u32 %v3789, 7
        %v3791 = vsub.s32 %v3788, %v3790
        %v3792 = vrot.slane %v3777, %v3791
        %v3793 = vcombine.low %v3785, %v3792
        %v3794 = vcombine.low %v3578, %v3579
        %v3795 = vcombine.low %v3580, %v3581
        %v3797 = vunpack.c.l.s4 1966171168
        %v3798 = vunpack.c.0.s8 %v3797
        %v3799 = vlaneseq
        %v3800 = vshrl.u32 %v3799, 7
        %v3801 = vsub.s32 %v3798, %v3800
        %v3802 = vrot.slane %v3794, %v3801
        %v3804 = vunpack.c.l.s4 1966171168
        %v3805 = vunpack.c.0.s8 %v3804
        %v3806 = vlaneseq
        %v3807 = vshrl.u32 %v3806, 7
        %v3808 = vsub.s32 %v3805, %v3807
        %v3809 = vrot.slane %v3795, %v3808
        %v3811 = vunpack.c.l.s4 1966171168
        %v3812 = vunpack.c.0.s8 %v3811
        %v3813 = vlaneseq
        %v3814 = vshrl.u32 %v3813, 7
        %v3815 = vsub.s32 %v3812, %v3814
        %v3816 = vrot.slane %v3582, %v3815
        %v3817 = vcombine.low %v3802, %v3809
        %v3819 = vunpack.c.l.s4 1966171168
        %v3820 = vunpack.c.0.s8 %v3819
        %v3821 = vlaneseq
        %v3822 = vshrl.u32 %v3821, 7
        %v3823 = vsub.s32 %v3820, %v3822
        %v3824 = vrot.slane %v3817, %v3823
        %v3826 = vunpack.c.l.s4 1966171168
        %v3827 = vunpack.c.0.s8 %v3826
        %v3828 = vlaneseq
        %v3829 = vshrl.u32 %v3828, 7
        %v3830 = vsub.s32 %v3827, %v3829
        %v3831 = vrot.slane %v3816, %v3830
        %v3832 = vcombine.low %v3824, %v3831
        %v3833 = vcombine.low %v3583, %v3584
        %v3834 = vcombine.low %v3585, %v3586
        %v3836 = vunpack.c.l.s4 1966171168
        %v3837 = vunpack.c.0.s8 %v3836
        %v3838 = vlaneseq
        %v3839 = vshrl.u32 %v3838, 7
        %v3840 = vsub.s32 %v3837, %v3839
        %v3841 = vrot.slane %v3833, %v3840
        %v3843 = vunpack.c.l.s4 1966171168
        %v3844 = vunpack.c.0.s8 %v3843
        %v3845 = vlaneseq
        %v3846 = vshrl.u32 %v3845, 7
        %v3847 = vsub.s32 %v3844, %v3846
        %v3848 = vrot.slane %v3834, %v3847
        %v3850 = vunpack.c.l.s4 1966171168
        %v3851 = vunpack.c.0.s8 %v3850
        %v3852 = vlaneseq
        %v3853 = vshrl.u32 %v3852, 7
        %v3854 = vsub.s32 %v3851, %v3853
        %v3855 = vrot.slane %v3587, %v3854
        %v3856 = vcombine.low %v3841, %v3848
        %v3858 = vunpack.c.l.s4 1966171168
        %v3859 = vunpack.c.0.s8 %v3858
        %v3860 = vlaneseq
        %v3861 = vshrl.u32 %v3860, 7
        %v3862 = vsub.s32 %v3859, %v3861
        %v3863 = vrot.slane %v3856, %v3862
        %v3865 = vunpack.c.l.s4 1966171168
        %v3866 = vunpack.c.0.s8 %v3865
        %v3867 = vlaneseq
        %v3868 = vshrl.u32 %v3867, 7
        %v3869 = vsub.s32 %v3866, %v3868
        %v3870 = vrot.slane %v3855, %v3869
        %v3871 = vcombine.low %v3863, %v3870
        %v3872 = vcombine.low %v3588, %v3589
        %v3873 = vcombine.low %v3590, %v3591
        %v3875 = vunpack.c.l.s4 1966171168
        %v3876 = vunpack.c.0.s8 %v3875
        %v3877 = vlaneseq
        %v3878 = vshrl.u32 %v3877, 7
        %v3879 = vsub.s32 %v3876, %v3878
        %v3880 = vrot.slane %v3872, %v3879
        %v3882 = vunpack.c.l.s4 1966171168
        %v3883 = vunpack.c.0.s8 %v3882
        %v3884 = vlaneseq
        %v3885 = vshrl.u32 %v3884, 7
        %v3886 = vsub.s32 %v3883, %v3885
        %v3887 = vrot.slane %v3873, %v3886
        %v3889 = vunpack.c.l.s4 1966171168
        %v3890 = vunpack.c.0.s8 %v3889
        %v3891 = vlaneseq
        %v3892 = vshrl.u32 %v3891, 7
        %v3893 = vsub.s32 %v3890, %v3892
        %v3894 = vrot.slane %v3592, %v3893
        %v3895 = vcombine.low %v3880, %v3887
        %v3897 = vunpack.c.l.s4 1966171168
        %v3898 = vunpack.c.0.s8 %v3897
        %v3899 = vlaneseq
        %v3900 = vshrl.u32 %v3899, 7
        %v3901 = vsub.s32 %v3898, %v3900
        %v3902 = vrot.slane %v3895, %v3901
        %v3904 = vunpack.c.l.s4 1966171168
        %v3905 = vunpack.c.0.s8 %v3904
        %v3906 = vlaneseq
        %v3907 = vshrl.u32 %v3906, 7
        %v3908 = vsub.s32 %v3905, %v3907
        %v3909 = vrot.slane %v3894, %v3908
        %v3910 = vcombine.low %v3902, %v3909
        %v3911 = vcombine.low %v3593, %v3594
        %v3912 = vcombine.low %v3595, %v3596
        %v3914 = vunpack.c.l.s4 1966171168
        %v3915 = vunpack.c.0.s8 %v3914
        %v3916 = vlaneseq
        %v3917 = vshrl.u32 %v3916, 7
        %v3918 = vsub.s32 %v3915, %v3917
        %v3919 = vrot.slane %v3911, %v3918
        %v3921 = vunpack.c.l.s4 1966171168
        %v3922 = vunpack.c.0.s8 %v3921
        %v3923 = vlaneseq
        %v3924 = vshrl.u32 %v3923, 7
        %v3925 = vsub.s32 %v3922, %v3924
        %v3926 = vrot.slane %v3912, %v3925
        %v3928 = vunpack.c.l.s4 1966171168
        %v3929 = vunpack.c.0.s8 %v3928
        %v3930 = vlaneseq
        %v3931 = vshrl.u32 %v3930, 7
        %v3932 = vsub.s32 %v3929, %v3931
        %v3933 = vrot.slane %v3597, %v3932
        %v3934 = vcombine.low %v3919, %v3926
        %v3936 = vunpack.c.l.s4 1966171168
        %v3937 = vunpack.c.0.s8 %v3936
        %v3938 = vlaneseq
        %v3939 = vshrl.u32 %v3938, 7
        %v3940 = vsub.s32 %v3937, %v3939
        %v3941 = vrot.slane %v3934, %v3940
        %v3943 = vunpack.c.l.s4 1966171168
        %v3944 = vunpack.c.0.s8 %v3943
        %v3945 = vlaneseq
        %v3946 = vshrl.u32 %v3945, 7
        %v3947 = vsub.s32 %v3944, %v3946
        %v3948 = vrot.slane %v3933, %v3947
        %v3949 = vcombine.low %v3941, %v3948
        %v3958 = vpack.c.bf16 %v3676, %v3676
        %v3959 = vpack.c.bf16 %v3715, %v3715
        %v3960 = vpack.c.bf16 %v3754, %v3754
        %v3961 = vpack.c.bf16 %v3793, %v3793
        %v3962 = vpack.c.bf16 %v3832, %v3832
        %v3963 = vpack.c.bf16 %v3871, %v3871
        %v3964 = vpack.c.bf16 %v3910, %v3910
        %v3965 = vpack.c.bf16 %v3949, %v3949
        %v3966 = vld [vmem:[%s5] sm:$0x7]
        %v3967 = vpack.c.bf16 %v398, %v398
        %v3968 = vpack.c.bf16 %v399, %v399
        %v3969 = vpack.c.bf16 %v400, %v400
        %v3970 = vpack.c.bf16 %v401, %v401
        %v3971 = vpack.c.bf16 %v402, %v402
        %v3972 = vpack.c.bf16 %v403, %v403
        %v3973 = vpack.c.bf16 %v404, %v404
        %v3974 = vpack.c.bf16 %v405, %v405
        %v3975 = vld [vmem:[%s6] sm:$0x3]
        %v3984 = vunpack.c.l.b16 %v3967
        %v3985 = vunpack.c.l.b16 %v3968
        %v3986 = vunpack.c.l.b16 %v3969
        %v3987 = vunpack.c.l.b16 %v3970
        %v3988 = vunpack.c.l.b16 %v3971
        %v3989 = vunpack.c.l.b16 %v3972
        %v3990 = vunpack.c.l.b16 %v3973
        %v3991 = vunpack.c.l.b16 %v3974
        %v3992 = vrot.slane %v3984, 7
        %v3993 = vrot.slane %v3985, 6
        %v3994 = vsel %vm2882, %v3993, %v3992
        %v3995 = vrot.slane %v3986, 5
        %v3996 = vsel %vm957, %v3995, %v3994
        %v3997 = vrot.slane %v3987, 4
        %v3998 = vsel %vm2885, %v3997, %v3996
        %v3999 = vrot.slane %v3988, 3
        %v4000 = vsel %vm959, %v3999, %v3998
        %v4001 = vrot.slane %v3989, 2
        %v4002 = vsel %vm2888, %v4001, %v4000
        %v4003 = vrot.slane %v3990, 1
        %v4004 = vsel %vm961, %v4003, %v4002
        %v4005 = vsel %vm2891, %v3991, %v4004
        %v4006 = vpack.c.b16 %v4005, %v4005
        %4007 = vrot.lane.b32.xlu0 %v4006, 123
        %v4008 = vpop.permute.xlu0 %4007
        %vm4009 = vcmask 31744
        %v4011 = vsel %vm4009, %v4008, 0
        %v4014 = vsel %vm1420, %v3975, 0
        %4016 = vmatprep.subr.bf16.mxu0 0
        %4017 = vmatpush1.bf16.msra.mxu0 0
        %4018 = vmatprep.subr.bf16.mxu0 0
        %4019 = vmatpush1.bf16.msra.mxu0 0
        %4020 = vmatprep.subr.bf16.mxu0 0
        %4021 = vmatpush1.bf16.msra.mxu0 0
        %4022 = vmatprep.subr.bf16.mxu0 0
        %4023 = vmatpush1.bf16.msra.mxu0 0
        %4024 = vmatprep.subr.bf16.mxu0 0
        %4025 = vmatpush1.bf16.msra.mxu0 0
        %4026 = vmatprep.subr.bf16.mxu0 0
        %4027 = vmatpush1.bf16.msra.mxu0 0
        %4028 = vmatprep.subr.bf16.mxu0 0
        %4029 = vmatpush1.bf16.msra.mxu0 0
        %4030 = vmatprep.subr.bf16.mxu0 0
        %4031 = vmatpush1.bf16.msra.mxu0 %v4014
        %4032 = vmatprep.subr.bf16.mxu0 0
        %4033 = vmatpush2.bf16.msra.mxu0 0
        %4034 = vmatprep.subr.bf16.mxu0 0
        %4035 = vmatpush2.bf16.msra.mxu0 0
        %4036 = vmatprep.subr.bf16.mxu0 0
        %4037 = vmatpush2.bf16.msra.mxu0 0
        %4038 = vmatprep.subr.bf16.mxu0 0
        %4039 = vmatpush2.bf16.msra.mxu0 0
        %4040 = vmatprep.subr.bf16.mxu0 0
        %4041 = vmatpush2.bf16.msra.mxu0 0
        %4042 = vmatprep.subr.bf16.mxu0 0
        %4043 = vmatpush2.bf16.msra.mxu0 0
        %4044 = vmatprep.subr.bf16.mxu0 0
        %4045 = vmatpush2.bf16.msra.mxu0 0
        %4046 = vmatprep.subr.bf16.mxu0 0
        %4047 = vmatpush2.bf16.msra.mxu0 0
        %4048 = vmatprep.mubr.bf16.mxu0 0
        %4049 = vmatmul.mubr.bf16.gmra.mxu0 %v4011
        %v4050 = vpop.f32.mrf.mxu0
        %v4051 = vadd.f32 0.0, %v4050
        %v4052 = vpop.f32.mrf.mxu0
        %v4053 = vpop.f32.mrf.mxu0
        %v4054 = vpop.f32.mrf.mxu0
        %4055 = vdwg.mxu0
        %v4064 = vunpack.c.l.b16 %v3958
        %v4065 = vunpack.c.l.b16 %v3959
        %v4066 = vunpack.c.l.b16 %v3960
        %v4067 = vunpack.c.l.b16 %v3961
        %v4068 = vunpack.c.l.b16 %v3962
        %v4069 = vunpack.c.l.b16 %v3963
        %v4070 = vunpack.c.l.b16 %v3964
        %v4071 = vunpack.c.l.b16 %v3965
        %4072 = vset.pattern.permute.xlu0 0
        %4073 = vperm.xlu0 %4072, %v4064
        %v4074 = vpop.permute.xlu0 %4073
        %4075 = vset.pattern.permute.xlu0 0
        %4076 = vperm.xlu0 %4075, %v4065
        %v4077 = vpop.permute.xlu0 %4076
        %4078 = vset.pattern.permute.xlu0 0
        %4079 = vperm.xlu0 %4078, %v4066
        %v4080 = vpop.permute.xlu0 %4079
        %4081 = vset.pattern.permute.xlu0 0
        %4082 = vperm.xlu0 %4081, %v4067
        %v4083 = vpop.permute.xlu0 %4082
        %4084 = vset.pattern.permute.xlu0 0
        %4085 = vperm.xlu0 %4084, %v4068
        %v4086 = vpop.permute.xlu0 %4085
        %4087 = vset.pattern.permute.xlu0 0
        %4088 = vperm.xlu0 %4087, %v4069
        %v4089 = vpop.permute.xlu0 %4088
        %4090 = vset.pattern.permute.xlu0 0
        %4091 = vperm.xlu0 %4090, %v4070
        %v4092 = vpop.permute.xlu0 %4091
        %4093 = vset.pattern.permute.xlu0 0
        %4094 = vperm.xlu0 %4093, %v4071
        %v4095 = vpop.permute.xlu0 %4094
        %v4096 = vlaneseq
        %v4097 = vand.u32 %v4096, 127
        %v4098 = vlaneseq
        %v4099 = vshrl.u32 %v4098, 7
        %v4100 = vsub.s32 %v4097, %v4099
        %v4101 = vrot.slane %v4074, %v4100
        %v4102 = vlaneseq
        %v4103 = vshrl.u32 %v4102, 7
        %v4104 = vsub.s32 %v4097, %v4103
        %v4105 = vrot.slane %v4077, %v4104
        %v4106 = vlaneseq
        %v4107 = vshrl.u32 %v4106, 7
        %v4108 = vsub.s32 %v4097, %v4107
        %v4109 = vrot.slane %v4080, %v4108
        %v4110 = vlaneseq
        %v4111 = vshrl.u32 %v4110, 7
        %v4112 = vsub.s32 %v4097, %v4111
        %v4113 = vrot.slane %v4083, %v4112
        %v4114 = vlaneseq
        %v4115 = vshrl.u32 %v4114, 7
        %v4116 = vsub.s32 %v4097, %v4115
        %v4117 = vrot.slane %v4086, %v4116
        %v4118 = vlaneseq
        %v4119 = vshrl.u32 %v4118, 7
        %v4120 = vsub.s32 %v4097, %v4119
        %v4121 = vrot.slane %v4089, %v4120
        %v4122 = vlaneseq
        %v4123 = vshrl.u32 %v4122, 7
        %v4124 = vsub.s32 %v4097, %v4123
        %v4125 = vrot.slane %v4092, %v4124
        %v4126 = vlaneseq
        %v4127 = vshrl.u32 %v4126, 7
        %v4128 = vsub.s32 %v4097, %v4127
        %v4129 = vrot.slane %v4095, %v4128
        %v4130 = vsel %vm2882, %v4105, %v4101
        %v4131 = vsel %vm957, %v4109, %v4130
        %v4132 = vsel %vm2885, %v4113, %v4131
        %v4133 = vsel %vm959, %v4117, %v4132
        %v4134 = vsel %vm2888, %v4121, %v4133
        %v4135 = vsel %vm961, %v4125, %v4134
        %v4136 = vsel %vm2891, %v4129, %v4135
        %v4137 = vpack.c.b16 %v4136, %v4136
        %v4139 = vsel %vm1398, %v4137, 0
        %v4142 = vand.u32 %v3966, %v1423
        %4144 = vmatprep.subr.bf16.mxu0 0
        %4145 = vmatpush1.bf16.msra.mxu0 0
        %4146 = vmatprep.subr.bf16.mxu0 0
        %4147 = vmatpush1.bf16.msra.mxu0 0
        %4148 = vmatprep.subr.bf16.mxu0 0
        %4149 = vmatpush1.bf16.msra.mxu0 0
        %4150 = vmatprep.subr.bf16.mxu0 0
        %4151 = vmatpush1.bf16.msra.mxu0 0
        %4152 = vmatprep.subr.bf16.mxu0 0
        %4153 = vmatpush1.bf16.msra.mxu0 0
        %4154 = vmatprep.subr.bf16.mxu0 0
        %4155 = vmatpush1.bf16.msra.mxu0 0
        %4156 = vmatprep.subr.bf16.mxu0 0
        %4157 = vmatpush1.bf16.msra.mxu0 0
        %4158 = vmatprep.subr.bf16.mxu0 0
        %4159 = vmatpush1.bf16.msra.mxu0 %v4142
        %4160 = vmatprep.subr.bf16.mxu0 0
        %4161 = vmatpush2.bf16.msra.mxu0 0
        %4162 = vmatprep.subr.bf16.mxu0 0
        %4163 = vmatpush2.bf16.msra.mxu0 0
        %4164 = vmatprep.subr.bf16.mxu0 0
        %4165 = vmatpush2.bf16.msra.mxu0 0
        %4166 = vmatprep.subr.bf16.mxu0 0
        %4167 = vmatpush2.bf16.msra.mxu0 0
        %4168 = vmatprep.subr.bf16.mxu0 0
        %4169 = vmatpush2.bf16.msra.mxu0 0
        %4170 = vmatprep.subr.bf16.mxu0 0
        %4171 = vmatpush2.bf16.msra.mxu0 0
        %4172 = vmatprep.subr.bf16.mxu0 0
        %4173 = vmatpush2.bf16.msra.mxu0 0
        %4174 = vmatprep.subr.bf16.mxu0 0
        %4175 = vmatpush2.bf16.msra.mxu0 0
        %4176 = vmatprep.mubr.bf16.mxu0 0
        %4177 = vmatmul.mubr.bf16.gmra.mxu0 %v4139
        %v4178 = vpop.f32.mrf.mxu0
        %v4179 = vadd.f32 %v4051, %v4178
        %v4180 = vpop.f32.mrf.mxu0
        %v4181 = vpop.f32.mrf.mxu0
        %v4182 = vpop.f32.mrf.mxu0
        %4183 = vdwg.mxu0
        %v4184 = vld [vmem:[%s7] sm:$0x1]
        %v4186 = vlaneseq
        %v4187 = vshrl.u32 %v4186, 7
        %v4188 = vsub.s32 0, %v4187
        %v4189 = vrot.slane %v4184, %v4188
        %v4191 = vadd.f32 %v4179, %v4189
        %v4192 = vmax.f32 %v4191, 0.0
        %v4193 = vpack.c.bf16 %v4192, %v4192
        %v4194 = vld [vmem:[%s8] sm:$0xf]
        %v4195 = vld [vmem:[%s8 + $0x4] sm:$0xf]
        %v4196 = vld [vmem:[%s8 + $0x8] sm:$0xf]
        %v4197 = vld [vmem:[%s8 + $0xc] sm:$0xf]
        %v4198 = vld [vmem:[%s9] sm:$0x1]
        %v4200 = vlaneseq
        %v4201 = vshrl.u32 %v4200, 7
        %v4202 = vsub.s32 0, %v4201
        %v4203 = vrot.slane %v4198, %v4202
        %v4209 = vunpack.c.l.b16 %v4194
        %v4210 = vunpack.c.l.b16 %v4195
        %v4211 = vunpack.c.l.b16 %v4196
        %v4212 = vunpack.c.l.b16 %v4197
        %v4213 = vpack.c.b16 %v4210, %v4209
        %v4214 = vpack.c.b16 %v4212, %v4211
        %vm4217 = vcmask 261120
        %v4219 = vsel %vm4217, %v4193, 0
        %4221 = vmatprep.subr.bf16.mxu0 0
        %4222 = vmatpush1.bf16.msra.mxu0 0
        %4223 = vmatprep.subr.bf16.mxu0 0
        %4224 = vmatpush1.bf16.msra.mxu0 0
        %4225 = vmatprep.subr.bf16.mxu0 0
        %4226 = vmatpush1.bf16.msra.mxu0 0
        %4227 = vmatprep.subr.bf16.mxu0 0
        %4228 = vmatpush1.bf16.msra.mxu0 0
        %4229 = vmatprep.subr.bf16.mxu0 0
        %4230 = vmatpush1.bf16.msra.mxu0 0
        %4231 = vmatprep.subr.bf16.mxu0 0
        %4232 = vmatpush1.bf16.msra.mxu0 0
        %4233 = vmatprep.subr.bf16.mxu0 0
        %4234 = vmatpush1.bf16.msra.mxu0 %v4214
        %4235 = vmatprep.subr.bf16.mxu0 0
        %4236 = vmatpush1.bf16.msra.mxu0 %v4213
        %4237 = vmatprep.subr.bf16.mxu0 0
        %4238 = vmatpush2.bf16.msra.mxu0 0
        %4239 = vmatprep.subr.bf16.mxu0 0
        %4240 = vmatpush2.bf16.msra.mxu0 0
        %4241 = vmatprep.subr.bf16.mxu0 0
        %4242 = vmatpush2.bf16.msra.mxu0 0
        %4243 = vmatprep.subr.bf16.mxu0 0
        %4244 = vmatpush2.bf16.msra.mxu0 0
        %4245 = vmatprep.subr.bf16.mxu0 0
        %4246 = vmatpush2.bf16.msra.mxu0 0
        %4247 = vmatprep.subr.bf16.mxu0 0
        %4248 = vmatpush2.bf16.msra.mxu0 0
        %4249 = vmatprep.subr.bf16.mxu0 0
        %4250 = vmatpush2.bf16.msra.mxu0 0
        %4251 = vmatprep.subr.bf16.mxu0 0
        %4252 = vmatpush2.bf16.msra.mxu0 0
        %4253 = vmatprep.mubr.bf16.mxu0 0
        %4254 = vmatmul.mubr.bf16.gmra.mxu0 %v4219
        %v4255 = vpop.f32.mrf.mxu0
        %v4256 = vadd.f32 %v4203, %v4255
        %v4257 = vpop.f32.mrf.mxu0
        %v4258 = vpop.f32.mrf.mxu0
        %v4259 = vpop.f32.mrf.mxu0
        %4260 = vdwg.mxu0
        %4261 = vst [vmem:[%s357] sm:$0xff] %v4256
        %s4262 = sand.u32 %s249, 1
        %s4263 = scalar_lea.sflag [#allocation4], %s4262
        %s4264 = sand.u32 %s249, 1
        %s4265 = smul.addr %s4264, 8
        %s4266 = scalar_lea.vmem [#allocation3], %s4265
        // Predicated region
        $region61: #{tpu_custom_call.1} parent=59 // pred_check
          %p4267 = pneg %p259
        $region62: #{tpu_custom_call.1} parent=59 // pred_check_branch
          %4269 = sbr.rel (%p4267) target = $region64
        $region63: #{tpu_custom_call.1} parent=59 // pred_region
          %s4271 = ssub.s32 128, 128
          %4272 = vsyncadd %s4263, %s4271
          %s4273 = smul.addr %s26, 128
          %s4274 = scalar_lea.hbm %s10, %s4273
          %s4276 = sshll.u32 %s4266, 4
          %s4277 = int_to_ptr.vmem [resolvable:$true] %s4276
          %4279 = dma.vmem_to_hbm [thread:$0]  %s4277, 128, %s4274, %s4263
        $region64: #{tpu_custom_call.1} parent=59 // pred_fallthru
          _
      $region60: #{tpu_custom_call.1} parent=5 // pred_fallthru
        _
      %p4280 = scmp.le.s32.totalorder 2, %s21
      // Predicated region
      $region65: #{tpu_custom_call.1} parent=5 // pred_check
        %p4281 = pneg %p4280
      $region66: #{tpu_custom_call.1} parent=5 // pred_check_branch
        %4283 = sbr.rel (%p4281) target = $region68
      $region67: #{tpu_custom_call.1} parent=5 // pred_region
        %s4284 = ssub.s32 %s21, 2
        // Predicated region
        $region69: #{tpu_custom_call.1} parent=67 // pred_check
          %p4285 = pneg %p265
        $region70: #{tpu_custom_call.1} parent=67 // pred_check_branch
          %4287 = sbr.rel (%p4285) target = $region72
        $region71: #{tpu_custom_call.1} parent=67 // pred_region
          %s4288 = sand.u32 %s250, 1
          %s4289 = scalar_lea.sflag [#allocation4], %s4288
          %s4290 = sand.u32 %s250, 1
          %s4291 = smul.addr %s4290, 8
          %s4292 = scalar_lea.vmem [#allocation3], %s4291
          %4293 = dma.done %s4289, 128
        $region72: #{tpu_custom_call.1} parent=67 // pred_fallthru
          _
      $region68: #{tpu_custom_call.1} parent=5 // pred_fallthru
        _
    $region6: #{tpu_custom_call.1} parent=1 // loop_footer
      %s25 = sadd.s32 1, %s21
    $region7: #{tpu_custom_call.1} parent=1 // loop_footer_branch
      %20 = sbr.rel target = $region3
    $region8: #{tpu_custom_call.1} parent=1 // loop_exit
      _
    %4294 = vsyncpa [#allocation4], 1
    %s4295 = scalar_lea.sflag [#allocation4], 1
    %4296 = vsyncpa %s4295, 1

</llo_original>
